<compile_context>
chip_gen: v7x
topology: tpu7x:2x2x1
jax: 0.10.0
libtpu: 0.0.40
codegen_flags: <defaults>
</compile_context>

<pallas_src>
import functools

import jax
import jax.numpy as jnp
from jax import lax
from jax.experimental import pallas as pl
from jax.experimental.pallas import tpu as pltpu

_MXU_DTYPE = jnp.bfloat16   # MXU input dtype (f32 accumulation everywhere)
_LN_EPS = 1e-5              # PyTorch nn.LayerNorm default
_NEG_BIG = -1e30            # finite additive mask value (NaN-safe)


def _vmem_limit_bytes(default=48 * 1024 * 1024):
    """~80% of physical VMEM: ~51 MiB on v7x (64 MiB), ~102 MiB on v5e/v6e."""
    try:
        cap = int(pltpu.get_tpu_info().vmem_capacity_bytes)
        return int(cap * 0.8)
    except Exception:
        return default


def _layernorm(z, w, b, eps=_LN_EPS):
    mu = jnp.mean(z, axis=-1, keepdims=True)
    var = jnp.mean((z - mu) ** 2, axis=-1, keepdims=True)
    return (z - mu) * lax.rsqrt(var + eps) * w + b


def block_kernel(x_ref, ln1w_ref, ln1b_ref, wqkv_ref, wp_ref, bp_ref,
                 ln2w_ref, ln2b_ref, w1_ref, b1_ref, w2_ref, b2_ref,
                 o_ref, *, n_head):
    """One transformer Block on a (block_b, T, C) activation tile."""
    x = x_ref[...]                                  # (BB, T, C) f32
    BB, T, C = x.shape
    hs = C // n_head

    # ---------- LayerNorm 1 + multi-head causal self-attention ----------
    h = _layernorm(x, ln1w_ref[...], ln1b_ref[...])
    h2 = h.reshape(BB * T, C).astype(_MXU_DTYPE)

    # Fused Q/K/V projection: one (BB*T, C) @ (C, 3C) MXU matmul, bf16 in /
    # f32 accumulate.  1/sqrt(hs) is already folded into the Q weight slice.
    qkv = jnp.dot(h2, wqkv_ref[...], preferred_element_type=jnp.float32)
    q2 = qkv[:, :C]
    k2 = qkv[:, C:2 * C]
    v2 = qkv[:, 2 * C:]

    def split_heads(z2):
        # (BB*T, C) -> (BB*n_head, T, hs), heads stacked along the batch axis.
        heads = [z2[:, hh * hs:(hh + 1) * hs].reshape(BB, T, hs)
                 for hh in range(n_head)]
        return jnp.concatenate(heads, axis=0).astype(_MXU_DTYPE)

    qh = split_heads(q2)
    kh = split_heads(k2)
    vh = split_heads(v2)

    # Finite additive causal mask built once per grid step (NaN-safe).
    row = lax.broadcasted_iota(jnp.int32, (T, T), 0)
    col = lax.broadcasted_iota(jnp.int32, (T, T), 1)
    bias = jnp.where(col <= row, jnp.float32(0.0), jnp.float32(_NEG_BIG))

    # Batched over BB * n_head in a single pair of einsums (no head loop).
    wei = jnp.einsum('bqd,bkd->bqk', qh, kh,
                     preferred_element_type=jnp.float32)        # (BB*H, T, T)
    wei = wei + bias
    wei = wei - jnp.max(wei, axis=-1, keepdims=True)
    p = jnp.exp(wei)
    p = p * pl.reciprocal(jnp.sum(p, axis=-1, keepdims=True), approx=True)

    oh = jnp.einsum('bqk,bkd->bqd', p.astype(_MXU_DTYPE), vh,
                    preferred_element_type=jnp.float32)         # (BB*H, T, hs)

    # Merge heads back into a contiguous (BB*T, C) buffer, then ONE K=C
    # matmul against the output projection (head-sum happens inside the MXU).
    attn_in = jnp.concatenate(
        [oh[hh * BB:(hh + 1) * BB] for hh in range(n_head)], axis=-1
    ).reshape(BB * T, C).astype(_MXU_DTYPE)
    attn = jnp.dot(attn_in, wp_ref[...],
                   preferred_element_type=jnp.float32) + bp_ref[...]
    x = x + attn.reshape(BB, T, C)                  # dropout == identity (eval)

    # ---------- LayerNorm 2 + feed-forward ----------
    h = _layernorm(x, ln2w_ref[...], ln2b_ref[...])
    h2 = h.reshape(BB * T, C).astype(_MXU_DTYPE)
    ff = jnp.dot(h2, w1_ref[...],
                 preferred_element_type=jnp.float32) + b1_ref[...]
    ff = jnp.maximum(ff, 0.0).astype(_MXU_DTYPE)
    ff = jnp.dot(ff, w2_ref[...],
                 preferred_element_type=jnp.float32) + b2_ref[...]
    x = x + ff.reshape(BB, T, C)                    # dropout == identity (eval)

    o_ref[...] = x.astype(o_ref.dtype)


def block_forward(x, p, n_head, *, block_b=None):
    """y = Block(x) for x of shape (B, T, C); Linear weights are (in, out)."""
    B, T, C = x.shape
    if block_b is None:
        # Two fat batch tiles (one per v7x TensorCore) when B is even,
        # otherwise a single resident tile.  Fewer, fatter steps -> higher MXU
        # row utilization and amortized per-step pipeline overhead.
        block_b = B // 2 if (B >= 2 and B % 2 == 0) else B
    assert B % block_b == 0, (B, block_b)
    grid = (B // block_b,)

    # Host-side weight prep: pre-cast matmul weights to bf16 (no per-step VPU
    # casts, half the weight DMA bytes / resident VMEM), fuse Q/K/V into one
    # (C, 3C) weight and fold 1/sqrt(head_size) into the Q slice.
    hs = C // n_head
    scale = float(hs) ** -0.5
    wqkv = jnp.concatenate([p['wq'] * scale, p['wk'], p['wv']],
                           axis=1).astype(_MXU_DTYPE)            # (C, 3C)
    wp = p['wp'].astype(_MXU_DTYPE)
    w1 = p['w1'].astype(_MXU_DTYPE)
    w2 = p['w2'].astype(_MXU_DTYPE)

    weights = (p['ln1_w'], p['ln1_b'], wqkv, wp, p['bp'],
               p['ln2_w'], p['ln2_b'], w1, p['b1'], w2, p['b2'])

    def row_map(i):
        return (i, 0, 0)

    def full_spec(a):
        # Full-extent weight block, constant index_map -> fetched once.
        return pl.BlockSpec(a.shape, lambda i, _nd=a.ndim: (0,) * _nd)

    in_specs = [pl.BlockSpec((block_b, T, C), row_map)]
    in_specs += [full_spec(w) for w in weights]

    kernel = functools.partial(block_kernel, n_head=n_head)
    return pl.pallas_call(
        kernel,
        out_shape=jax.ShapeDtypeStruct(x.shape, x.dtype),
        grid=grid,
        in_specs=in_specs,
        out_specs=pl.BlockSpec((block_b, T, C), row_map),
        compiler_params=pltpu.CompilerParams(
            dimension_semantics=("parallel",),      # shard batch tiles across TCs
            vmem_limit_bytes=_vmem_limit_bytes(),   # generation-aware budget
        ),
    )(x, *weights)


def init_block_params(key, n_embed):
    keys = iter(jax.random.split(key, 6))

    def dense(shape):
        return jax.random.normal(next(keys), shape, jnp.float32) * 0.02

    C = n_embed
    return {
        'ln1_w': jnp.ones((1, C), jnp.float32),
        'ln1_b': jnp.zeros((1, C), jnp.float32),
        'wq': dense((C, C)),                   # bias=False in the PyTorch module
        'wk': dense((C, C)),
        'wv': dense((C, C)),
        'wp': dense((C, C)),
        'bp': jnp.zeros((1, C), jnp.float32),
        'ln2_w': jnp.ones((1, C), jnp.float32),
        'ln2_b': jnp.zeros((1, C), jnp.float32),
        'w1': dense((C, 4 * C)),
        'b1': jnp.zeros((1, 4 * C), jnp.float32),
        'w2': dense((4 * C, C)),
        'b2': jnp.zeros((1, C), jnp.float32),
    }


def _block_ref(x, p, n_head):
    """Pure-JAX f32 reference of Block.forward (eval mode)."""
    B, T, C = x.shape
    hs = C // n_head

    def ln(z, w, b):
        mu = z.mean(-1, keepdims=True)
        var = ((z - mu) ** 2).mean(-1, keepdims=True)
        return (z - mu) / jnp.sqrt(var + _LN_EPS) * w + b

    h = ln(x, p['ln1_w'], p['ln1_b'])
    q = (h @ p['wq']).reshape(B, T, n_head, hs).transpose(0, 2, 1, 3)
    k = (h @ p['wk']).reshape(B, T, n_head, hs).transpose(0, 2, 1, 3)
    v = (h @ p['wv']).reshape(B, T, n_head, hs).transpose(0, 2, 1, 3)
    wei = (q @ jnp.swapaxes(k, -1, -2)) * (hs ** -0.5)
    mask = jnp.tril(jnp.ones((T, T), bool))
    wei = jnp.where(mask, wei, -jnp.inf)
    wei = jax.nn.softmax(wei, axis=-1)
    out = (wei @ v).transpose(0, 2, 1, 3).reshape(B, T, C)
    out = out @ p['wp'] + p['bp']
    x = x + out
    h = ln(x, p['ln2_w'], p['ln2_b'])
    ff = jnp.maximum(h @ p['w1'] + p['b1'], 0.0) @ p['w2'] + p['b2']
    return x + ff


if __name__ == "__main__":
    # Small but lane-aligned shapes: C multiple of 128, T >= 8 sublanes.
    B, T, C, n_head = 8, 16, 128, 4

    key = jax.random.PRNGKey(0)
    kx, kp = jax.random.split(key)
    params = init_block_params(kp, C)
    x = jax.random.normal(kx, (B, T, C), jnp.float32)

    # block_b=4 -> grid=(2,): two fat parallel tiles (one per v7x TensorCore).
    out = block_forward(x, params, n_head, block_b=4)
    out = jax.block_until_ready(out)

    ref = _block_ref(x, params, n_head)

    assert out.shape == (B, T, C), out.shape
    assert bool(jnp.all(jnp.isfinite(out)))
    assert bool(jnp.allclose(out, ref, atol=5e-2, rtol=5e-2)), \
        float(jnp.max(jnp.abs(out - ref)))
    print("KERNEL_OK")
</pallas_src>

<mosaic_0001>
module attributes {stable_mosaic.version = 11 : i64} {
  func.func @block_kernel(%arg0: i32, %arg1: memref<4x16x128xf32, #tpu.memory_space<vmem>>, %arg2: memref<1x128xf32, #tpu.memory_space<vmem>>, %arg3: memref<1x128xf32, #tpu.memory_space<vmem>>, %arg4: memref<128x384xbf16, #tpu.memory_space<vmem>>, %arg5: memref<128x128xbf16, #tpu.memory_space<vmem>>, %arg6: memref<1x128xf32, #tpu.memory_space<vmem>>, %arg7: memref<1x128xf32, #tpu.memory_space<vmem>>, %arg8: memref<1x128xf32, #tpu.memory_space<vmem>>, %arg9: memref<128x512xbf16, #tpu.memory_space<vmem>>, %arg10: memref<1x512xf32, #tpu.memory_space<vmem>>, %arg11: memref<512x128xbf16, #tpu.memory_space<vmem>>, %arg12: memref<1x128xf32, #tpu.memory_space<vmem>>, %arg13: memref<4x16x128xf32, #tpu.memory_space<vmem>>) attributes {dimension_semantics = [#tpu.dimension_semantics<parallel>], iteration_bounds = array<i64: 2>, scalar_prefetch = 0 : i64, scratch_operands = 0 : i64, tpu.core_type = #tpu.core_type<tc>, window_params = [{transform_indices = @transform_0, window_bounds = array<i64: 4, 16, 128>}, {pipeline_mode = #tpu.pipeline_mode<synchronous>, transform_indices = @transform_1, window_bounds = array<i64: 1, 128>}, {pipeline_mode = #tpu.pipeline_mode<synchronous>, transform_indices = @transform_2, window_bounds = array<i64: 1, 128>}, {pipeline_mode = #tpu.pipeline_mode<synchronous>, transform_indices = @transform_3, window_bounds = array<i64: 128, 384>}, {pipeline_mode = #tpu.pipeline_mode<synchronous>, transform_indices = @transform_4, window_bounds = array<i64: 128, 128>}, {pipeline_mode = #tpu.pipeline_mode<synchronous>, transform_indices = @transform_5, window_bounds = array<i64: 1, 128>}, {pipeline_mode = #tpu.pipeline_mode<synchronous>, transform_indices = @transform_6, window_bounds = array<i64: 1, 128>}, {pipeline_mode = #tpu.pipeline_mode<synchronous>, transform_indices = @transform_7, window_bounds = array<i64: 1, 128>}, {pipeline_mode = #tpu.pipeline_mode<synchronous>, transform_indices = @transform_8, window_bounds = array<i64: 128, 512>}, {pipeline_mode = #tpu.pipeline_mode<synchronous>, transform_indices = @transform_9, window_bounds = array<i64: 1, 512>}, {pipeline_mode = #tpu.pipeline_mode<synchronous>, transform_indices = @transform_10, window_bounds = array<i64: 512, 128>}, {pipeline_mode = #tpu.pipeline_mode<synchronous>, transform_indices = @transform_11, window_bounds = array<i64: 1, 128>}, {transform_indices = @transform_12, window_bounds = array<i64: 4, 16, 128>}]} {
    %c0 = arith.constant 0 : index
    %c0_0 = arith.constant 0 : index
    %c0_1 = arith.constant 0 : index
    %0 = vector.load %arg1[%c0, %c0_0, %c0_1] : memref<4x16x128xf32, #tpu.memory_space<vmem>>, vector<4x16x128xf32>
    %c0_2 = arith.constant 0 : index
    %c0_3 = arith.constant 0 : index
    %1 = vector.load %arg2[%c0_2, %c0_3] : memref<1x128xf32, #tpu.memory_space<vmem>>, vector<1x128xf32>
    %c0_4 = arith.constant 0 : index
    %c0_5 = arith.constant 0 : index
    %2 = vector.load %arg3[%c0_4, %c0_5] : memref<1x128xf32, #tpu.memory_space<vmem>>, vector<1x128xf32>
    %cst = arith.constant dense<0.000000e+00> : vector<4x16xf32>
    %3 = vector.multi_reduction <add>, %0, %cst [2] : vector<4x16x128xf32> to vector<4x16xf32>
    %4 = vector.shape_cast %3 : vector<4x16xf32> to vector<4x16x1xf32>
    %cst_6 = arith.constant 1.280000e+02 : f32
    %5 = vector.broadcast %cst_6 : f32 to vector<4x16x1xf32>
    %6 = arith.divf %4, %5 : vector<4x16x1xf32>
    %7 = vector.broadcast %6 : vector<4x16x1xf32> to vector<4x16x128xf32>
    %8 = arith.subf %0, %7 : vector<4x16x128xf32>
    %9 = arith.mulf %8, %8 : vector<4x16x128xf32>
    %cst_7 = arith.constant dense<0.000000e+00> : vector<4x16xf32>
    %10 = vector.multi_reduction <add>, %9, %cst_7 [2] : vector<4x16x128xf32> to vector<4x16xf32>
    %11 = vector.shape_cast %10 : vector<4x16xf32> to vector<4x16x1xf32>
    %cst_8 = arith.constant 1.280000e+02 : f32
    %12 = vector.broadcast %cst_8 : f32 to vector<4x16x1xf32>
    %13 = arith.divf %11, %12 : vector<4x16x1xf32>
    %14 = vector.broadcast %6 : vector<4x16x1xf32> to vector<4x16x128xf32>
    %15 = arith.subf %0, %14 : vector<4x16x128xf32>
    %cst_9 = arith.constant 9.99999974E-6 : f32
    %16 = vector.broadcast %cst_9 : f32 to vector<4x16x1xf32>
    %17 = arith.addf %13, %16 : vector<4x16x1xf32>
    %18 = math.rsqrt %17 : vector<4x16x1xf32>
    %19 = vector.broadcast %18 : vector<4x16x1xf32> to vector<4x16x128xf32>
    %20 = arith.mulf %15, %19 : vector<4x16x128xf32>
    %21 = vector.shape_cast %1 : vector<1x128xf32> to vector<1x1x128xf32>
    %22 = vector.broadcast %21 : vector<1x1x128xf32> to vector<4x16x128xf32>
    %23 = arith.mulf %20, %22 : vector<4x16x128xf32>
    %24 = vector.shape_cast %2 : vector<1x128xf32> to vector<1x1x128xf32>
    %25 = vector.broadcast %24 : vector<1x1x128xf32> to vector<4x16x128xf32>
    %26 = arith.addf %23, %25 : vector<4x16x128xf32>
    %27 = vector.shape_cast %26 : vector<4x16x128xf32> to vector<64x128xf32>
    %28 = arith.truncf %27 : vector<64x128xf32> to vector<64x128xbf16>
    %c0_10 = arith.constant 0 : index
    %c0_11 = arith.constant 0 : index
    %29 = vector.load %arg4[%c0_10, %c0_11] : memref<128x384xbf16, #tpu.memory_space<vmem>>, vector<128x384xbf16>
    %cst_12 = arith.constant dense<0.000000e+00> : vector<64x384xf32>
    %30 = tpu.matmul %28, %29, %cst_12 {dimension_numbers = #tpu.dot_dimension_numbers<[1], [0], [0], [1], [0, 0, 1, 1], [], []>} : vector<64x128xbf16>, vector<128x384xbf16>, vector<64x384xf32> -> vector<64x384xf32>
    %31 = vector.extract_strided_slice %30 {offsets = [0, 0], sizes = [64, 128], strides = [1, 1]} : vector<64x384xf32> to vector<64x128xf32>
    %32 = vector.extract_strided_slice %30 {offsets = [0, 128], sizes = [64, 128], strides = [1, 1]} : vector<64x384xf32> to vector<64x128xf32>
    %33 = vector.extract_strided_slice %30 {offsets = [0, 256], sizes = [64, 128], strides = [1, 1]} : vector<64x384xf32> to vector<64x128xf32>
    %34 = vector.extract_strided_slice %31 {offsets = [0, 0], sizes = [64, 32], strides = [1, 1]} : vector<64x128xf32> to vector<64x32xf32>
    %35 = vector.shape_cast %34 : vector<64x32xf32> to vector<4x16x32xf32>
    %36 = vector.extract_strided_slice %31 {offsets = [0, 32], sizes = [64, 32], strides = [1, 1]} : vector<64x128xf32> to vector<64x32xf32>
    %37 = vector.shape_cast %36 : vector<64x32xf32> to vector<4x16x32xf32>
    %38 = vector.extract_strided_slice %31 {offsets = [0, 64], sizes = [64, 32], strides = [1, 1]} : vector<64x128xf32> to vector<64x32xf32>
    %39 = vector.shape_cast %38 : vector<64x32xf32> to vector<4x16x32xf32>
    %40 = vector.extract_strided_slice %31 {offsets = [0, 96], sizes = [64, 32], strides = [1, 1]} : vector<64x128xf32> to vector<64x32xf32>
    %41 = vector.shape_cast %40 : vector<64x32xf32> to vector<4x16x32xf32>
    %42 = tpu.concatenate %35, %37, %39, %41 in 0 : vector<4x16x32xf32>, vector<4x16x32xf32>, vector<4x16x32xf32>, vector<4x16x32xf32> -> vector<16x16x32xf32>
    %43 = arith.truncf %42 : vector<16x16x32xf32> to vector<16x16x32xbf16>
    %44 = vector.extract_strided_slice %32 {offsets = [0, 0], sizes = [64, 32], strides = [1, 1]} : vector<64x128xf32> to vector<64x32xf32>
    %45 = vector.shape_cast %44 : vector<64x32xf32> to vector<4x16x32xf32>
    %46 = vector.extract_strided_slice %32 {offsets = [0, 32], sizes = [64, 32], strides = [1, 1]} : vector<64x128xf32> to vector<64x32xf32>
    %47 = vector.shape_cast %46 : vector<64x32xf32> to vector<4x16x32xf32>
    %48 = vector.extract_strided_slice %32 {offsets = [0, 64], sizes = [64, 32], strides = [1, 1]} : vector<64x128xf32> to vector<64x32xf32>
    %49 = vector.shape_cast %48 : vector<64x32xf32> to vector<4x16x32xf32>
    %50 = vector.extract_strided_slice %32 {offsets = [0, 96], sizes = [64, 32], strides = [1, 1]} : vector<64x128xf32> to vector<64x32xf32>
    %51 = vector.shape_cast %50 : vector<64x32xf32> to vector<4x16x32xf32>
    %52 = tpu.concatenate %45, %47, %49, %51 in 0 : vector<4x16x32xf32>, vector<4x16x32xf32>, vector<4x16x32xf32>, vector<4x16x32xf32> -> vector<16x16x32xf32>
    %53 = arith.truncf %52 : vector<16x16x32xf32> to vector<16x16x32xbf16>
    %54 = vector.extract_strided_slice %33 {offsets = [0, 0], sizes = [64, 32], strides = [1, 1]} : vector<64x128xf32> to vector<64x32xf32>
    %55 = vector.shape_cast %54 : vector<64x32xf32> to vector<4x16x32xf32>
    %56 = vector.extract_strided_slice %33 {offsets = [0, 32], sizes = [64, 32], strides = [1, 1]} : vector<64x128xf32> to vector<64x32xf32>
    %57 = vector.shape_cast %56 : vector<64x32xf32> to vector<4x16x32xf32>
    %58 = vector.extract_strided_slice %33 {offsets = [0, 64], sizes = [64, 32], strides = [1, 1]} : vector<64x128xf32> to vector<64x32xf32>
    %59 = vector.shape_cast %58 : vector<64x32xf32> to vector<4x16x32xf32>
    %60 = vector.extract_strided_slice %33 {offsets = [0, 96], sizes = [64, 32], strides = [1, 1]} : vector<64x128xf32> to vector<64x32xf32>
    %61 = vector.shape_cast %60 : vector<64x32xf32> to vector<4x16x32xf32>
    %62 = tpu.concatenate %55, %57, %59, %61 in 0 : vector<4x16x32xf32>, vector<4x16x32xf32>, vector<4x16x32xf32>, vector<4x16x32xf32> -> vector<16x16x32xf32>
    %63 = arith.truncf %62 : vector<16x16x32xf32> to vector<16x16x32xbf16>
    %64 = tpu.iota {dimensions = array<i32: 0>} : vector<16x16xi32>
    %65 = tpu.iota {dimensions = array<i32: 1>} : vector<16x16xi32>
    %66 = arith.cmpi sle, %65, %64 : vector<16x16xi32>
    %cst_13 = arith.constant 0.000000e+00 : f32
    %cst_14 = arith.constant -1.000000e+30 : f32
    %67 = vector.broadcast %cst_13 : f32 to vector<16x16xf32>
    %68 = vector.broadcast %cst_14 : f32 to vector<16x16xf32>
    %69 = arith.select %66, %67, %68 : vector<16x16xi1>, vector<16x16xf32>
    "tpu.trace_start"() <{level = 10 : i32, message = "bqd,bkd->bqk"}> : () -> ()
    %cst_15 = arith.constant dense<0.000000e+00> : vector<16x16x16xf32>
    %70 = tpu.matmul %43, %53, %cst_15 {dimension_numbers = #tpu.dot_dimension_numbers<[2], [2], [1], [1], [0, 0, 0, 1, 1, 1], [0], [0]>} : vector<16x16x32xbf16>, vector<16x16x32xbf16>, vector<16x16x16xf32> -> vector<16x16x16xf32>
    "tpu.trace_stop"() : () -> ()
    %71 = vector.shape_cast %69 : vector<16x16xf32> to vector<1x16x16xf32>
    %72 = vector.broadcast %71 : vector<1x16x16xf32> to vector<16x16x16xf32>
    %73 = arith.addf %70, %72 : vector<16x16x16xf32>
    %cst_16 = arith.constant dense<0xFF800000> : vector<16x16xf32>
    %74 = vector.multi_reduction <maximumf>, %73, %cst_16 [2] : vector<16x16x16xf32> to vector<16x16xf32>
    %75 = vector.shape_cast %74 : vector<16x16xf32> to vector<16x16x1xf32>
    %76 = vector.broadcast %75 : vector<16x16x1xf32> to vector<16x16x16xf32>
    %77 = arith.subf %73, %76 : vector<16x16x16xf32>
    %78 = math.exp %77 : vector<16x16x16xf32>
    %cst_17 = arith.constant dense<0.000000e+00> : vector<16x16xf32>
    %79 = vector.multi_reduction <add>, %78, %cst_17 [2] : vector<16x16x16xf32> to vector<16x16xf32>
    %80 = vector.shape_cast %79 : vector<16x16xf32> to vector<16x16x1xf32>
    %81 = tpu.reciprocal %80 {approx = true} : vector<16x16x1xf32> -> vector<16x16x1xf32>
    %82 = vector.broadcast %81 : vector<16x16x1xf32> to vector<16x16x16xf32>
    %83 = arith.mulf %78, %82 : vector<16x16x16xf32>
    %84 = arith.truncf %83 : vector<16x16x16xf32> to vector<16x16x16xbf16>
    "tpu.trace_start"() <{level = 10 : i32, message = "bqk,bkd->bqd"}> : () -> ()
    %cst_18 = arith.constant dense<0.000000e+00> : vector<16x16x32xf32>
    %85 = tpu.matmul %84, %63, %cst_18 {dimension_numbers = #tpu.dot_dimension_numbers<[2], [1], [1], [2], [0, 0, 0, 1, 1, 2], [0], [0]>} : vector<16x16x16xbf16>, vector<16x16x32xbf16>, vector<16x16x32xf32> -> vector<16x16x32xf32>
    "tpu.trace_stop"() : () -> ()
    %86 = vector.extract_strided_slice %85 {offsets = [0, 0, 0], sizes = [4, 16, 32], strides = [1, 1, 1]} : vector<16x16x32xf32> to vector<4x16x32xf32>
    %87 = vector.extract_strided_slice %85 {offsets = [4, 0, 0], sizes = [4, 16, 32], strides = [1, 1, 1]} : vector<16x16x32xf32> to vector<4x16x32xf32>
    %88 = vector.extract_strided_slice %85 {offsets = [8, 0, 0], sizes = [4, 16, 32], strides = [1, 1, 1]} : vector<16x16x32xf32> to vector<4x16x32xf32>
    %89 = vector.extract_strided_slice %85 {offsets = [12, 0, 0], sizes = [4, 16, 32], strides = [1, 1, 1]} : vector<16x16x32xf32> to vector<4x16x32xf32>
    %90 = tpu.concatenate %86, %87, %88, %89 in 2 : vector<4x16x32xf32>, vector<4x16x32xf32>, vector<4x16x32xf32>, vector<4x16x32xf32> -> vector<4x16x128xf32>
    %91 = vector.shape_cast %90 : vector<4x16x128xf32> to vector<64x128xf32>
    %92 = arith.truncf %91 : vector<64x128xf32> to vector<64x128xbf16>
    %c0_19 = arith.constant 0 : index
    %c0_20 = arith.constant 0 : index
    %93 = vector.load %arg5[%c0_19, %c0_20] : memref<128x128xbf16, #tpu.memory_space<vmem>>, vector<128x128xbf16>
    %cst_21 = arith.constant dense<0.000000e+00> : vector<64x128xf32>
    %94 = tpu.matmul %92, %93, %cst_21 {dimension_numbers = #tpu.dot_dimension_numbers<[1], [0], [0], [1], [0, 0, 1, 1], [], []>} : vector<64x128xbf16>, vector<128x128xbf16>, vector<64x128xf32> -> vector<64x128xf32>
    %c0_22 = arith.constant 0 : index
    %c0_23 = arith.constant 0 : index
    %95 = vector.load %arg6[%c0_22, %c0_23] : memref<1x128xf32, #tpu.memory_space<vmem>>, vector<1x128xf32>
    %96 = vector.broadcast %95 : vector<1x128xf32> to vector<64x128xf32>
    %97 = arith.addf %94, %96 : vector<64x128xf32>
    %98 = vector.shape_cast %97 : vector<64x128xf32> to vector<4x16x128xf32>
    %99 = arith.addf %0, %98 : vector<4x16x128xf32>
    %c0_24 = arith.constant 0 : index
    %c0_25 = arith.constant 0 : index
    %100 = vector.load %arg7[%c0_24, %c0_25] : memref<1x128xf32, #tpu.memory_space<vmem>>, vector<1x128xf32>
    %c0_26 = arith.constant 0 : index
    %c0_27 = arith.constant 0 : index
    %101 = vector.load %arg8[%c0_26, %c0_27] : memref<1x128xf32, #tpu.memory_space<vmem>>, vector<1x128xf32>
    %cst_28 = arith.constant dense<0.000000e+00> : vector<4x16xf32>
    %102 = vector.multi_reduction <add>, %99, %cst_28 [2] : vector<4x16x128xf32> to vector<4x16xf32>
    %103 = vector.shape_cast %102 : vector<4x16xf32> to vector<4x16x1xf32>
    %cst_29 = arith.constant 1.280000e+02 : f32
    %104 = vector.broadcast %cst_29 : f32 to vector<4x16x1xf32>
    %105 = arith.divf %103, %104 : vector<4x16x1xf32>
    %106 = vector.broadcast %105 : vector<4x16x1xf32> to vector<4x16x128xf32>
    %107 = arith.subf %99, %106 : vector<4x16x128xf32>
    %108 = arith.mulf %107, %107 : vector<4x16x128xf32>
    %cst_30 = arith.constant dense<0.000000e+00> : vector<4x16xf32>
    %109 = vector.multi_reduction <add>, %108, %cst_30 [2] : vector<4x16x128xf32> to vector<4x16xf32>
    %110 = vector.shape_cast %109 : vector<4x16xf32> to vector<4x16x1xf32>
    %cst_31 = arith.constant 1.280000e+02 : f32
    %111 = vector.broadcast %cst_31 : f32 to vector<4x16x1xf32>
    %112 = arith.divf %110, %111 : vector<4x16x1xf32>
    %113 = vector.broadcast %105 : vector<4x16x1xf32> to vector<4x16x128xf32>
    %114 = arith.subf %99, %113 : vector<4x16x128xf32>
    %cst_32 = arith.constant 9.99999974E-6 : f32
    %115 = vector.broadcast %cst_32 : f32 to vector<4x16x1xf32>
    %116 = arith.addf %112, %115 : vector<4x16x1xf32>
    %117 = math.rsqrt %116 : vector<4x16x1xf32>
    %118 = vector.broadcast %117 : vector<4x16x1xf32> to vector<4x16x128xf32>
    %119 = arith.mulf %114, %118 : vector<4x16x128xf32>
    %120 = vector.shape_cast %100 : vector<1x128xf32> to vector<1x1x128xf32>
    %121 = vector.broadcast %120 : vector<1x1x128xf32> to vector<4x16x128xf32>
    %122 = arith.mulf %119, %121 : vector<4x16x128xf32>
    %123 = vector.shape_cast %101 : vector<1x128xf32> to vector<1x1x128xf32>
    %124 = vector.broadcast %123 : vector<1x1x128xf32> to vector<4x16x128xf32>
    %125 = arith.addf %122, %124 : vector<4x16x128xf32>
    %126 = vector.shape_cast %125 : vector<4x16x128xf32> to vector<64x128xf32>
    %127 = arith.truncf %126 : vector<64x128xf32> to vector<64x128xbf16>
    %c0_33 = arith.constant 0 : index
    %c0_34 = arith.constant 0 : index
    %128 = vector.load %arg9[%c0_33, %c0_34] : memref<128x512xbf16, #tpu.memory_space<vmem>>, vector<128x512xbf16>
    %cst_35 = arith.constant dense<0.000000e+00> : vector<64x512xf32>
    %129 = tpu.matmul %127, %128, %cst_35 {dimension_numbers = #tpu.dot_dimension_numbers<[1], [0], [0], [1], [0, 0, 1, 1], [], []>} : vector<64x128xbf16>, vector<128x512xbf16>, vector<64x512xf32> -> vector<64x512xf32>
    %c0_36 = arith.constant 0 : index
    %c0_37 = arith.constant 0 : index
    %130 = vector.load %arg10[%c0_36, %c0_37] : memref<1x512xf32, #tpu.memory_space<vmem>>, vector<1x512xf32>
    %131 = vector.broadcast %130 : vector<1x512xf32> to vector<64x512xf32>
    %132 = arith.addf %129, %131 : vector<64x512xf32>
    %cst_38 = arith.constant 0.000000e+00 : f32
    %133 = vector.broadcast %cst_38 : f32 to vector<64x512xf32>
    %134 = arith.maximumf %132, %133 : vector<64x512xf32>
    %135 = arith.truncf %134 : vector<64x512xf32> to vector<64x512xbf16>
    %c0_39 = arith.constant 0 : index
    %c0_40 = arith.constant 0 : index
    %136 = vector.load %arg11[%c0_39, %c0_40] : memref<512x128xbf16, #tpu.memory_space<vmem>>, vector<512x128xbf16>
    %cst_41 = arith.constant dense<0.000000e+00> : vector<64x128xf32>
    %137 = tpu.matmul %135, %136, %cst_41 {dimension_numbers = #tpu.dot_dimension_numbers<[1], [0], [0], [1], [0, 0, 1, 1], [], []>} : vector<64x512xbf16>, vector<512x128xbf16>, vector<64x128xf32> -> vector<64x128xf32>
    %c0_42 = arith.constant 0 : index
    %c0_43 = arith.constant 0 : index
    %138 = vector.load %arg12[%c0_42, %c0_43] : memref<1x128xf32, #tpu.memory_space<vmem>>, vector<1x128xf32>
    %139 = vector.broadcast %138 : vector<1x128xf32> to vector<64x128xf32>
    %140 = arith.addf %137, %139 : vector<64x128xf32>
    %141 = vector.shape_cast %140 : vector<64x128xf32> to vector<4x16x128xf32>
    %142 = arith.addf %99, %141 : vector<4x16x128xf32>
    %c0_44 = arith.constant 0 : index
    %c0_45 = arith.constant 0 : index
    %c0_46 = arith.constant 0 : index
    %143 = vector.load %arg13[%c0_44, %c0_45, %c0_46] : memref<4x16x128xf32, #tpu.memory_space<vmem>>, vector<4x16x128xf32>
    tpu.vector_store %arg13[%c0_44, %c0_45, %c0_46], %142 {strides = array<i32>} : memref<4x16x128xf32, #tpu.memory_space<vmem>>, vector<4x16x128xf32>,
    return
  }
  func.func @transform_0(%arg0: i32) -> (i32, i32, i32) {
    %c0_i32 = arith.constant 0 : i32
    %c0_i32_0 = arith.constant 0 : i32
    %c0_i32_1 = arith.constant 0 : i32
    return %arg0, %c0_i32, %c0_i32_0 : i32, i32, i32
  }
  func.func @transform_1(%arg0: i32) -> (i32, i32) {
    %c0_i32 = arith.constant 0 : i32
    %c0_i32_0 = arith.constant 0 : i32
    %c0_i32_1 = arith.constant 0 : i32
    return %c0_i32, %c0_i32_0 : i32, i32
  }
  func.func @transform_2(%arg0: i32) -> (i32, i32) {
    %c0_i32 = arith.constant 0 : i32
    %c0_i32_0 = arith.constant 0 : i32
    %c0_i32_1 = arith.constant 0 : i32
    return %c0_i32, %c0_i32_0 : i32, i32
  }
  func.func @transform_3(%arg0: i32) -> (i32, i32) {
    %c0_i32 = arith.constant 0 : i32
    %c0_i32_0 = arith.constant 0 : i32
    %c0_i32_1 = arith.constant 0 : i32
    return %c0_i32, %c0_i32_0 : i32, i32
  }
  func.func @transform_4(%arg0: i32) -> (i32, i32) {
    %c0_i32 = arith.constant 0 : i32
    %c0_i32_0 = arith.constant 0 : i32
    %c0_i32_1 = arith.constant 0 : i32
    return %c0_i32, %c0_i32_0 : i32, i32
  }
  func.func @transform_5(%arg0: i32) -> (i32, i32) {
    %c0_i32 = arith.constant 0 : i32
    %c0_i32_0 = arith.constant 0 : i32
    %c0_i32_1 = arith.constant 0 : i32
    return %c0_i32, %c0_i32_0 : i32, i32
  }
  func.func @transform_6(%arg0: i32) -> (i32, i32) {
    %c0_i32 = arith.constant 0 : i32
    %c0_i32_0 = arith.constant 0 : i32
    %c0_i32_1 = arith.constant 0 : i32
    return %c0_i32, %c0_i32_0 : i32, i32
  }
  func.func @transform_7(%arg0: i32) -> (i32, i32) {
    %c0_i32 = arith.constant 0 : i32
    %c0_i32_0 = arith.constant 0 : i32
    %c0_i32_1 = arith.constant 0 : i32
    return %c0_i32, %c0_i32_0 : i32, i32
  }
  func.func @transform_8(%arg0: i32) -> (i32, i32) {
    %c0_i32 = arith.constant 0 : i32
    %c0_i32_0 = arith.constant 0 : i32
    %c0_i32_1 = arith.constant 0 : i32
    return %c0_i32, %c0_i32_0 : i32, i32
  }
  func.func @transform_9(%arg0: i32) -> (i32, i32) {
    %c0_i32 = arith.constant 0 : i32
    %c0_i32_0 = arith.constant 0 : i32
    %c0_i32_1 = arith.constant 0 : i32
    return %c0_i32, %c0_i32_0 : i32, i32
  }
  func.func @transform_10(%arg0: i32) -> (i32, i32) {
    %c0_i32 = arith.constant 0 : i32
    %c0_i32_0 = arith.constant 0 : i32
    %c0_i32_1 = arith.constant 0 : i32
    return %c0_i32, %c0_i32_0 : i32, i32
  }
  func.func @transform_11(%arg0: i32) -> (i32, i32) {
    %c0_i32 = arith.constant 0 : i32
    %c0_i32_0 = arith.constant 0 : i32
    %c0_i32_1 = arith.constant 0 : i32
    return %c0_i32, %c0_i32_0 : i32, i32
  }
  func.func @transform_12(%arg0: i32) -> (i32, i32, i32) {
    %c0_i32 = arith.constant 0 : i32
    %c0_i32_0 = arith.constant 0 : i32
    %c0_i32_1 = arith.constant 0 : i32
    return %arg0, %c0_i32, %c0_i32_0 : i32, i32, i32
  }
}

</mosaic_0001>

<llo_original>
// kernel: tpu_custom_call.1
$region0: #{tpu_custom_call.1}
  #allocation0 [shape = 'u32[]', space=smem, size = 0x4, offset = 0x4, fixed_abs, tag = 'smem constant byte address 0x4 - core index']
  #allocation1 [shape = 'u32[144,128]{1,0:T(1,128)}', space=vmem, size = 0x12000, scoped, tag = 'internal scratch']
  %s0 = inlined_call_operand.hbm [shape: f32[8,16,128], index: 0, kind: input, shape index: {}]
  %s1 = inlined_call_operand.vmem [shape: f32[1,128], index: 1, kind: input, shape index: {}]
  %s2 = inlined_call_operand.vmem [shape: f32[1,128], index: 2, kind: input, shape index: {}]
  %s3 = inlined_call_operand.hbm [shape: bf16[128,384], index: 3, kind: input, shape index: {}]
  %s4 = inlined_call_operand.hbm [shape: bf16[128,128], index: 4, kind: input, shape index: {}]
  %s5 = inlined_call_operand.vmem [shape: f32[1,128], index: 5, kind: input, shape index: {}]
  %s6 = inlined_call_operand.vmem [shape: f32[1,128], index: 6, kind: input, shape index: {}]
  %s7 = inlined_call_operand.vmem [shape: f32[1,128], index: 7, kind: input, shape index: {}]
  %s8 = inlined_call_operand.hbm [shape: bf16[128,512], index: 8, kind: input, shape index: {}]
  %s9 = inlined_call_operand.vmem [shape: f32[1,512], index: 9, kind: input, shape index: {}]
  %s10 = inlined_call_operand.hbm [shape: bf16[512,128], index: 10, kind: input, shape index: {}]
  %s11 = inlined_call_operand.vmem [shape: f32[1,128], index: 11, kind: input, shape index: {}]
  %s12 = inlined_call_operand.hbm [shape: f32[8,16,128], index: 12, kind: output, shape index: {}]
  %s13 = sld [smem:[#allocation0]]
  $region101: #{tpu_custom_call.1} parent=0
    _
  %s15 = ssub.s32 1, %s13
  %s16 = scalar_select 0, %s15, %s13
  $region1: #{tpu_custom_call.1} parent=0
    #allocation2 [shape = 'u8[65536]{0}', space=vmem, size = 0x10000, scoped, tag = 'input window, operand 0']
    #allocation3 [shape = 's32[2]{0}', space=sflag, size = 0x8, scoped, tag = 'scoped memory for tpu_custom_call.1']
    #allocation4 [shape = 's32[2]{0}', space=sflag, size = 0x8, scoped, tag = 'scoped memory for tpu_custom_call.1']
    #allocation5 [shape = 'u8[98304]{0}', space=vmem, size = 0x18000, scoped, tag = 'input window, operand 3, single buffered']
    #allocation6 [shape = 's32[1]{0}', space=sflag, size = 0x4, scoped, tag = 'scoped memory for tpu_custom_call.1']
    #allocation7 [shape = 'u8[32768]{0}', space=vmem, size = 0x8000, scoped, tag = 'input window, operand 4, single buffered']
    #allocation8 [shape = 'u8[131072]{0}', space=vmem, size = 0x20000, scoped, tag = 'input window, operand 8, single buffered']
    #allocation9 [shape = 's32[1]{0}', space=sflag, size = 0x4, scoped, tag = 'scoped memory for tpu_custom_call.1']
    #allocation10 [shape = 'u8[131072]{0}', space=vmem, size = 0x20000, scoped, tag = 'input window, operand 10, single buffered']
    #allocation11 [shape = 'u8[65536]{0}', space=vmem, size = 0x10000, scoped, tag = 'output window, operand 0']
    %17 = vsyncpa [#allocation3], 0
    %s18 = scalar_lea.sflag [#allocation3], 1
    %19 = vsyncpa %s18, 0
    %20 = vsyncpa [#allocation6], 0
    %21 = vsyncpa [#allocation9], 0
    %22 = vsyncpa [#allocation4], 0
    %s23 = scalar_lea.sflag [#allocation4], 1
    %24 = vsyncpa %s23, 0
    loop: start=0, step=1, limit=4
    $region2: #{tpu_custom_call.1} parent=1 // loop_pre_header
      _
    $region3: #{tpu_custom_call.1} parent=1 // loop_header
      %s26 = sphi 0, %s30
      %p27 = scmp.ge.s32.totalorder %s26, 4
      %s36 = sphi 0, %s38
      %s39 = sphi 0, %s36
      %s40 = sphi 0, %s39
      %s56 = sphi 0, %s40
      %s60 = sphi 0, %s60
      %s62 = sphi 0, %s60
      %s63 = sphi 0, %s62
      %s77 = sphi 0, %s63
      %s81 = sphi 0, %s81
      %s83 = sphi 0, %s81
      %s84 = sphi 0, %s83
      %s98 = sphi 0, %s84
      %s102 = sphi 0, %s102
      %s104 = sphi 0, %s102
      %s105 = sphi 0, %s104
      %s119 = sphi 0, %s105
      %s123 = sphi 0, %s123
      %s125 = sphi 0, %s123
      %s126 = sphi 0, %s125
      %s140 = sphi 0, %s126
      %s144 = sphi 0, %s144
      %s146 = sphi 0, %s144
      %s147 = sphi 0, %s146
      %s161 = sphi 0, %s147
      %s165 = sphi 0, %s165
      %s167 = sphi 0, %s165
      %s168 = sphi 0, %s167
      %s182 = sphi 0, %s168
      %s186 = sphi 0, %s186
      %s188 = sphi 0, %s186
      %s189 = sphi 0, %s188
      %s203 = sphi 0, %s189
      %s207 = sphi 0, %s207
      %s209 = sphi 0, %s207
      %s210 = sphi 0, %s209
      %s224 = sphi 0, %s210
      %s228 = sphi 0, %s228
      %s230 = sphi 0, %s228
      %s231 = sphi 0, %s230
      %s245 = sphi 0, %s231
      %s249 = sphi 0, %s249
      %s251 = sphi 0, %s249
      %s252 = sphi 0, %s251
      %s266 = sphi 0, %s252
      %s270 = sphi 0, %s270
      %s272 = sphi 0, %s270
      %s273 = sphi 0, %s272
      %s287 = sphi 0, %s273
      %s293 = sphi 0, %s295
      %s296 = sphi 0, %s293
      %s297 = sphi 0, %s296
      %s313 = sphi 0, %s297
    $region4: #{tpu_custom_call.1} parent=1 // loop_header_branch
      %29 = sbr.rel (%p27) target = $region8
    $region5: #{tpu_custom_call.1} parent=1 // loop_body
      %s31 = ssub.s32 %s26, 1
      %s32 = ssub.s32 %s26, 2
      %s33 = sadd.s32 %s26, 1
      %s34 = ssub.s32 %s26, %s33
      %p35 = scmp.eq.s32.totalorder %s34, 0
      %s37 = sadd.s32 %s36, 1
      %s38 = scalar_select %p35, %s36, %s37
      %p41 = pneg %p35
      %p42 = scmp.eq.s32.totalorder %s26, 1
      %p43 = por %p41, %p42
      %p44 = scmp.ne.s32.totalorder %s36, %s39
      %p45 = scmp.eq.s32.totalorder %s26, 0
      %p46 = por %p44, %p45
      %p47 = scmp.ne.s32.totalorder %s36, %s39
      %p48 = scmp.eq.s32.totalorder %s31, 1
      %p49 = por %p47, %p48
      %p50 = scmp.ne.s32.totalorder %s39, %s40
      %p51 = scmp.eq.s32.totalorder %s31, 0
      %p52 = por %p50, %p51
      %p53 = scmp.ne.s32.totalorder %s39, %s40
      %p54 = scmp.eq.s32.totalorder %s32, 1
      %p55 = por %p53, %p54
      %p57 = scmp.ne.s32.totalorder %s40, %s56
      %p58 = scmp.eq.s32.totalorder %s32, 0
      %p59 = por %p57, %p58
      %s61 = sadd.s32 %s60, 1
      %p64 = scmp.eq.s32.totalorder %s26, 1
      %p65 = scmp.ne.s32.totalorder %s60, %s62
      %p66 = scmp.eq.s32.totalorder %s26, 0
      %p67 = por %p65, %p66
      %p68 = scmp.ne.s32.totalorder %s60, %s62
      %p69 = scmp.eq.s32.totalorder %s31, 1
      %p70 = por %p68, %p69
      %p71 = scmp.ne.s32.totalorder %s62, %s63
      %p72 = scmp.eq.s32.totalorder %s31, 0
      %p73 = por %p71, %p72
      %p74 = scmp.ne.s32.totalorder %s62, %s63
      %p75 = scmp.eq.s32.totalorder %s32, 1
      %p76 = por %p74, %p75
      %p78 = scmp.ne.s32.totalorder %s63, %s77
      %p79 = scmp.eq.s32.totalorder %s32, 0
      %p80 = por %p78, %p79
      %s82 = sadd.s32 %s81, 1
      %p85 = scmp.eq.s32.totalorder %s26, 1
      %p86 = scmp.ne.s32.totalorder %s81, %s83
      %p87 = scmp.eq.s32.totalorder %s26, 0
      %p88 = por %p86, %p87
      %p89 = scmp.ne.s32.totalorder %s81, %s83
      %p90 = scmp.eq.s32.totalorder %s31, 1
      %p91 = por %p89, %p90
      %p92 = scmp.ne.s32.totalorder %s83, %s84
      %p93 = scmp.eq.s32.totalorder %s31, 0
      %p94 = por %p92, %p93
      %p95 = scmp.ne.s32.totalorder %s83, %s84
      %p96 = scmp.eq.s32.totalorder %s32, 1
      %p97 = por %p95, %p96
      %p99 = scmp.ne.s32.totalorder %s84, %s98
      %p100 = scmp.eq.s32.totalorder %s32, 0
      %p101 = por %p99, %p100
      %s103 = sadd.s32 %s102, 1
      %p106 = scmp.eq.s32.totalorder %s26, 1
      %p107 = scmp.ne.s32.totalorder %s102, %s104
      %p108 = scmp.eq.s32.totalorder %s26, 0
      %p109 = por %p107, %p108
      %p110 = scmp.ne.s32.totalorder %s102, %s104
      %p111 = scmp.eq.s32.totalorder %s31, 1
      %p112 = por %p110, %p111
      %p113 = scmp.ne.s32.totalorder %s104, %s105
      %p114 = scmp.eq.s32.totalorder %s31, 0
      %p115 = por %p113, %p114
      %p116 = scmp.ne.s32.totalorder %s104, %s105
      %p117 = scmp.eq.s32.totalorder %s32, 1
      %p118 = por %p116, %p117
      %p120 = scmp.ne.s32.totalorder %s105, %s119
      %p121 = scmp.eq.s32.totalorder %s32, 0
      %p122 = por %p120, %p121
      %s124 = sadd.s32 %s123, 1
      %p127 = scmp.eq.s32.totalorder %s26, 1
      %p128 = scmp.ne.s32.totalorder %s123, %s125
      %p129 = scmp.eq.s32.totalorder %s26, 0
      %p130 = por %p128, %p129
      %p131 = scmp.ne.s32.totalorder %s123, %s125
      %p132 = scmp.eq.s32.totalorder %s31, 1
      %p133 = por %p131, %p132
      %p134 = scmp.ne.s32.totalorder %s125, %s126
      %p135 = scmp.eq.s32.totalorder %s31, 0
      %p136 = por %p134, %p135
      %p137 = scmp.ne.s32.totalorder %s125, %s126
      %p138 = scmp.eq.s32.totalorder %s32, 1
      %p139 = por %p137, %p138
      %p141 = scmp.ne.s32.totalorder %s126, %s140
      %p142 = scmp.eq.s32.totalorder %s32, 0
      %p143 = por %p141, %p142
      %s145 = sadd.s32 %s144, 1
      %p148 = scmp.eq.s32.totalorder %s26, 1
      %p149 = scmp.ne.s32.totalorder %s144, %s146
      %p150 = scmp.eq.s32.totalorder %s26, 0
      %p151 = por %p149, %p150
      %p152 = scmp.ne.s32.totalorder %s144, %s146
      %p153 = scmp.eq.s32.totalorder %s31, 1
      %p154 = por %p152, %p153
      %p155 = scmp.ne.s32.totalorder %s146, %s147
      %p156 = scmp.eq.s32.totalorder %s31, 0
      %p157 = por %p155, %p156
      %p158 = scmp.ne.s32.totalorder %s146, %s147
      %p159 = scmp.eq.s32.totalorder %s32, 1
      %p160 = por %p158, %p159
      %p162 = scmp.ne.s32.totalorder %s147, %s161
      %p163 = scmp.eq.s32.totalorder %s32, 0
      %p164 = por %p162, %p163
      %s166 = sadd.s32 %s165, 1
      %p169 = scmp.eq.s32.totalorder %s26, 1
      %p170 = scmp.ne.s32.totalorder %s165, %s167
      %p171 = scmp.eq.s32.totalorder %s26, 0
      %p172 = por %p170, %p171
      %p173 = scmp.ne.s32.totalorder %s165, %s167
      %p174 = scmp.eq.s32.totalorder %s31, 1
      %p175 = por %p173, %p174
      %p176 = scmp.ne.s32.totalorder %s167, %s168
      %p177 = scmp.eq.s32.totalorder %s31, 0
      %p178 = por %p176, %p177
      %p179 = scmp.ne.s32.totalorder %s167, %s168
      %p180 = scmp.eq.s32.totalorder %s32, 1
      %p181 = por %p179, %p180
      %p183 = scmp.ne.s32.totalorder %s168, %s182
      %p184 = scmp.eq.s32.totalorder %s32, 0
      %p185 = por %p183, %p184
      %s187 = sadd.s32 %s186, 1
      %p190 = scmp.eq.s32.totalorder %s26, 1
      %p191 = scmp.ne.s32.totalorder %s186, %s188
      %p192 = scmp.eq.s32.totalorder %s26, 0
      %p193 = por %p191, %p192
      %p194 = scmp.ne.s32.totalorder %s186, %s188
      %p195 = scmp.eq.s32.totalorder %s31, 1
      %p196 = por %p194, %p195
      %p197 = scmp.ne.s32.totalorder %s188, %s189
      %p198 = scmp.eq.s32.totalorder %s31, 0
      %p199 = por %p197, %p198
      %p200 = scmp.ne.s32.totalorder %s188, %s189
      %p201 = scmp.eq.s32.totalorder %s32, 1
      %p202 = por %p200, %p201
      %p204 = scmp.ne.s32.totalorder %s189, %s203
      %p205 = scmp.eq.s32.totalorder %s32, 0
      %p206 = por %p204, %p205
      %s208 = sadd.s32 %s207, 1
      %p211 = scmp.eq.s32.totalorder %s26, 1
      %p212 = scmp.ne.s32.totalorder %s207, %s209
      %p213 = scmp.eq.s32.totalorder %s26, 0
      %p214 = por %p212, %p213
      %p215 = scmp.ne.s32.totalorder %s207, %s209
      %p216 = scmp.eq.s32.totalorder %s31, 1
      %p217 = por %p215, %p216
      %p218 = scmp.ne.s32.totalorder %s209, %s210
      %p219 = scmp.eq.s32.totalorder %s31, 0
      %p220 = por %p218, %p219
      %p221 = scmp.ne.s32.totalorder %s209, %s210
      %p222 = scmp.eq.s32.totalorder %s32, 1
      %p223 = por %p221, %p222
      %p225 = scmp.ne.s32.totalorder %s210, %s224
      %p226 = scmp.eq.s32.totalorder %s32, 0
      %p227 = por %p225, %p226
      %s229 = sadd.s32 %s228, 1
      %p232 = scmp.eq.s32.totalorder %s26, 1
      %p233 = scmp.ne.s32.totalorder %s228, %s230
      %p234 = scmp.eq.s32.totalorder %s26, 0
      %p235 = por %p233, %p234
      %p236 = scmp.ne.s32.totalorder %s228, %s230
      %p237 = scmp.eq.s32.totalorder %s31, 1
      %p238 = por %p236, %p237
      %p239 = scmp.ne.s32.totalorder %s230, %s231
      %p240 = scmp.eq.s32.totalorder %s31, 0
      %p241 = por %p239, %p240
      %p242 = scmp.ne.s32.totalorder %s230, %s231
      %p243 = scmp.eq.s32.totalorder %s32, 1
      %p244 = por %p242, %p243
      %p246 = scmp.ne.s32.totalorder %s231, %s245
      %p247 = scmp.eq.s32.totalorder %s32, 0
      %p248 = por %p246, %p247
      %s250 = sadd.s32 %s249, 1
      %p253 = scmp.eq.s32.totalorder %s26, 1
      %p254 = scmp.ne.s32.totalorder %s249, %s251
      %p255 = scmp.eq.s32.totalorder %s26, 0
      %p256 = por %p254, %p255
      %p257 = scmp.ne.s32.totalorder %s249, %s251
      %p258 = scmp.eq.s32.totalorder %s31, 1
      %p259 = por %p257, %p258
      %p260 = scmp.ne.s32.totalorder %s251, %s252
      %p261 = scmp.eq.s32.totalorder %s31, 0
      %p262 = por %p260, %p261
      %p263 = scmp.ne.s32.totalorder %s251, %s252
      %p264 = scmp.eq.s32.totalorder %s32, 1
      %p265 = por %p263, %p264
      %p267 = scmp.ne.s32.totalorder %s252, %s266
      %p268 = scmp.eq.s32.totalorder %s32, 0
      %p269 = por %p267, %p268
      %s271 = sadd.s32 %s270, 1
      %p274 = scmp.eq.s32.totalorder %s26, 1
      %p275 = scmp.ne.s32.totalorder %s270, %s272
      %p276 = scmp.eq.s32.totalorder %s26, 0
      %p277 = por %p275, %p276
      %p278 = scmp.ne.s32.totalorder %s270, %s272
      %p279 = scmp.eq.s32.totalorder %s31, 1
      %p280 = por %p278, %p279
      %p281 = scmp.ne.s32.totalorder %s272, %s273
      %p282 = scmp.eq.s32.totalorder %s31, 0
      %p283 = por %p281, %p282
      %p284 = scmp.ne.s32.totalorder %s272, %s273
      %p285 = scmp.eq.s32.totalorder %s32, 1
      %p286 = por %p284, %p285
      %p288 = scmp.ne.s32.totalorder %s273, %s287
      %p289 = scmp.eq.s32.totalorder %s32, 0
      %p290 = por %p288, %p289
      %s291 = ssub.s32 %s26, %s33
      %p292 = scmp.eq.s32.totalorder %s291, 0
      %s294 = sadd.s32 %s293, 1
      %s295 = scalar_select %p292, %s293, %s294
      %p298 = pneg %p292
      %p299 = scmp.eq.s32.totalorder %s26, 1
      %p300 = por %p298, %p299
      %p301 = scmp.ne.s32.totalorder %s293, %s296
      %p302 = scmp.eq.s32.totalorder %s26, 0
      %p303 = por %p301, %p302
      %p304 = scmp.ne.s32.totalorder %s293, %s296
      %p305 = scmp.eq.s32.totalorder %s31, 1
      %p306 = por %p304, %p305
      %p307 = scmp.ne.s32.totalorder %s296, %s297
      %p308 = scmp.eq.s32.totalorder %s31, 0
      %p309 = por %p307, %p308
      %p310 = scmp.ne.s32.totalorder %s296, %s297
      %p311 = scmp.eq.s32.totalorder %s32, 1
      %p312 = por %p310, %p311
      %p314 = scmp.ne.s32.totalorder %s297, %s313
      %p315 = scmp.eq.s32.totalorder %s32, 0
      %p316 = por %p314, %p315
      %p317 = scmp.le.s32.totalorder 1, %s26
      %p318 = scmp.lt.s32.totalorder %s26, 3
      %p319 = pnand %p317, %p318
      %p320 = pneg %p319
      // Predicated region
      $region9: #{tpu_custom_call.1} parent=5 // pred_check
        _
      $region10: #{tpu_custom_call.1} parent=5 // pred_check_branch
        %322 = sbr.rel (%p319) target = $region12
      $region11: #{tpu_custom_call.1} parent=5 // pred_region
        %s323 = ssub.s32 %s26, 1
        // Predicated region
        $region13: #{tpu_custom_call.1} parent=11 // pred_check
          %p324 = pneg %p73
        $region14: #{tpu_custom_call.1} parent=11 // pred_check_branch
          %326 = sbr.rel (%p324) target = $region16
        $region15: #{tpu_custom_call.1} parent=11 // pred_region
          _
        $region16: #{tpu_custom_call.1} parent=11 // pred_fallthru
          _
        // Predicated region
        $region17: #{tpu_custom_call.1} parent=11 // pred_check
          %p327 = pneg %p94
        $region18: #{tpu_custom_call.1} parent=11 // pred_check_branch
          %329 = sbr.rel (%p327) target = $region20
        $region19: #{tpu_custom_call.1} parent=11 // pred_region
          _
        $region20: #{tpu_custom_call.1} parent=11 // pred_fallthru
          _
        // Predicated region
        $region21: #{tpu_custom_call.1} parent=11 // pred_check
          %p330 = pneg %p115
        $region22: #{tpu_custom_call.1} parent=11 // pred_check_branch
          %332 = sbr.rel (%p330) target = $region24
        $region23: #{tpu_custom_call.1} parent=11 // pred_region
          %s334 = ssub.s32 3072, 3072
          %335 = vsyncadd [#allocation6], %s334
          %s336 = sshll.u32 [#allocation5], 4
          %s337 = int_to_ptr.vmem [resolvable:$true] %s336
          %342 = dma.hbm_to_vmem [thread:$0]  %s3, 3072, %s337, [#allocation6], 192, 192, 12
        $region24: #{tpu_custom_call.1} parent=11 // pred_fallthru
          _
        // Predicated region
        $region25: #{tpu_custom_call.1} parent=11 // pred_check
          %p343 = pneg %p136
        $region26: #{tpu_custom_call.1} parent=11 // pred_check_branch
          %345 = sbr.rel (%p343) target = $region28
        $region27: #{tpu_custom_call.1} parent=11 // pred_region
          %s347 = ssub.s32 1024, 1024
          %348 = vsyncadd [#allocation6], %s347
          %s349 = sshll.u32 [#allocation7], 4
          %s350 = int_to_ptr.vmem [resolvable:$true] %s349
          %355 = dma.hbm_to_vmem [thread:$0]  %s4, 1024, %s350, [#allocation6], 64, 64, 4
        $region28: #{tpu_custom_call.1} parent=11 // pred_fallthru
          _
        // Predicated region
        $region29: #{tpu_custom_call.1} parent=11 // pred_check
          %p356 = pneg %p157
        $region30: #{tpu_custom_call.1} parent=11 // pred_check_branch
          %358 = sbr.rel (%p356) target = $region32
        $region31: #{tpu_custom_call.1} parent=11 // pred_region
          _
        $region32: #{tpu_custom_call.1} parent=11 // pred_fallthru
          _
        // Predicated region
        $region33: #{tpu_custom_call.1} parent=11 // pred_check
          %p359 = pneg %p178
        $region34: #{tpu_custom_call.1} parent=11 // pred_check_branch
          %361 = sbr.rel (%p359) target = $region36
        $region35: #{tpu_custom_call.1} parent=11 // pred_region
          _
        $region36: #{tpu_custom_call.1} parent=11 // pred_fallthru
          _
        // Predicated region
        $region37: #{tpu_custom_call.1} parent=11 // pred_check
          %p362 = pneg %p199
        $region38: #{tpu_custom_call.1} parent=11 // pred_check_branch
          %364 = sbr.rel (%p362) target = $region40
        $region39: #{tpu_custom_call.1} parent=11 // pred_region
          _
        $region40: #{tpu_custom_call.1} parent=11 // pred_fallthru
          _
        // Predicated region
        $region41: #{tpu_custom_call.1} parent=11 // pred_check
          %p365 = pneg %p220
        $region42: #{tpu_custom_call.1} parent=11 // pred_check_branch
          %367 = sbr.rel (%p365) target = $region44
        $region43: #{tpu_custom_call.1} parent=11 // pred_region
          %s369 = ssub.s32 4096, 4096
          %370 = vsyncadd [#allocation9], %s369
          %s371 = sshll.u32 [#allocation8], 4
          %s372 = int_to_ptr.vmem [resolvable:$true] %s371
          %377 = dma.hbm_to_vmem [thread:$0]  %s8, 4096, %s372, [#allocation9], 256, 256, 16
        $region44: #{tpu_custom_call.1} parent=11 // pred_fallthru
          _
        // Predicated region
        $region45: #{tpu_custom_call.1} parent=11 // pred_check
          %p378 = pneg %p241
        $region46: #{tpu_custom_call.1} parent=11 // pred_check_branch
          %380 = sbr.rel (%p378) target = $region48
        $region47: #{tpu_custom_call.1} parent=11 // pred_region
          _
        $region48: #{tpu_custom_call.1} parent=11 // pred_fallthru
          _
        // Predicated region
        $region49: #{tpu_custom_call.1} parent=11 // pred_check
          %p381 = pneg %p262
        $region50: #{tpu_custom_call.1} parent=11 // pred_check_branch
          %383 = sbr.rel (%p381) target = $region52
        $region51: #{tpu_custom_call.1} parent=11 // pred_region
          %s385 = ssub.s32 4096, 4096
          %386 = vsyncadd [#allocation9], %s385
          %s387 = sshll.u32 [#allocation10], 4
          %s388 = int_to_ptr.vmem [resolvable:$true] %s387
          %393 = dma.hbm_to_vmem [thread:$0]  %s10, 4096, %s388, [#allocation9], 64, 64, 4
        $region52: #{tpu_custom_call.1} parent=11 // pred_fallthru
          _
        // Predicated region
        $region53: #{tpu_custom_call.1} parent=11 // pred_check
          %p394 = pneg %p283
        $region54: #{tpu_custom_call.1} parent=11 // pred_check_branch
          %396 = sbr.rel (%p394) target = $region56
        $region55: #{tpu_custom_call.1} parent=11 // pred_region
          _
        $region56: #{tpu_custom_call.1} parent=11 // pred_fallthru
          _
      $region12: #{tpu_custom_call.1} parent=5 // pred_fallthru
        _
      %p397 = scmp.lt.s32.totalorder %s26, 2
      // Predicated region
      $region57: #{tpu_custom_call.1} parent=5 // pred_check
        %p398 = pneg %p397
      $region58: #{tpu_custom_call.1} parent=5 // pred_check_branch
        %400 = sbr.rel (%p398) target = $region60
      $region59: #{tpu_custom_call.1} parent=5 // pred_region
        // Predicated region
        $region61: #{tpu_custom_call.1} parent=59 // pred_check
          %p401 = pneg %p46
        $region62: #{tpu_custom_call.1} parent=59 // pred_check_branch
          %403 = sbr.rel (%p401) target = $region64
        $region63: #{tpu_custom_call.1} parent=59 // pred_region
          %s404 = sand.u32 %s36, 1
          %s405 = scalar_lea.sflag [#allocation3], %s404
          %s406 = sand.u32 %s36, 1
          %s407 = smul.addr %s406, 64
          %s408 = scalar_lea.vmem [#allocation2], %s407
          %s409 = smul.u32 4, %s26
          %s411 = ssub.s32 1024, 1024
          %412 = vsyncadd %s405, %s411
          %s413 = smul.addr %s409, 2
          %s414 = smul.addr %s413, 128
          %s415 = scalar_lea.hbm %s0, %s414
          %s416 = sshll.u32 %s408, 4
          %s417 = int_to_ptr.vmem [resolvable:$true] %s416
          %422 = dma.hbm_to_vmem [thread:$0]  %s415, 1024, %s417, %s405, 128, 128, 8
        $region64: #{tpu_custom_call.1} parent=59 // pred_fallthru
          _
      $region60: #{tpu_custom_call.1} parent=5 // pred_fallthru
        _
      %p423 = scmp.le.s32.totalorder 1, %s26
      %p424 = scmp.lt.s32.totalorder %s26, 3
      %p425 = pnand %p423, %p424
      %p426 = pneg %p425
      // Predicated region
      $region65: #{tpu_custom_call.1} parent=5 // pred_check
        _
      $region66: #{tpu_custom_call.1} parent=5 // pred_check_branch
        %428 = sbr.rel (%p425) target = $region68
      $region67: #{tpu_custom_call.1} parent=5 // pred_region
        %s429 = ssub.s32 %s26, 1
        %s430 = sand.u32 %s39, 1
        %s431 = scalar_lea.sflag [#allocation3], %s430
        %s432 = sand.u32 %s39, 1
        %s433 = smul.addr %s432, 64
        %s434 = scalar_lea.vmem [#allocation2], %s433
        // Predicated region
        $region69: #{tpu_custom_call.1} parent=67 // pred_check
          %p435 = pneg %p52
        $region70: #{tpu_custom_call.1} parent=67 // pred_check_branch
          %437 = sbr.rel (%p435) target = $region72
        $region71: #{tpu_custom_call.1} parent=67 // pred_region
          %438 = dma.done %s431, 1024
        $region72: #{tpu_custom_call.1} parent=67 // pred_fallthru
          _
        // Predicated region
        $region73: #{tpu_custom_call.1} parent=67 // pred_check
          %p439 = pneg %p115
        $region74: #{tpu_custom_call.1} parent=67 // pred_check_branch
          %441 = sbr.rel (%p439) target = $region76
        $region75: #{tpu_custom_call.1} parent=67 // pred_region
          %442 = dma.done [#allocation6], 3072
        $region76: #{tpu_custom_call.1} parent=67 // pred_fallthru
          _
        // Predicated region
        $region77: #{tpu_custom_call.1} parent=67 // pred_check
          %p443 = pneg %p136
        $region78: #{tpu_custom_call.1} parent=67 // pred_check_branch
          %445 = sbr.rel (%p443) target = $region80
        $region79: #{tpu_custom_call.1} parent=67 // pred_region
          %446 = dma.done [#allocation6], 1024
        $region80: #{tpu_custom_call.1} parent=67 // pred_fallthru
          _
        // Predicated region
        $region81: #{tpu_custom_call.1} parent=67 // pred_check
          %p447 = pneg %p220
        $region82: #{tpu_custom_call.1} parent=67 // pred_check_branch
          %449 = sbr.rel (%p447) target = $region84
        $region83: #{tpu_custom_call.1} parent=67 // pred_region
          %450 = dma.done [#allocation9], 4096
        $region84: #{tpu_custom_call.1} parent=67 // pred_fallthru
          _
        // Predicated region
        $region85: #{tpu_custom_call.1} parent=67 // pred_check
          %p451 = pneg %p262
        $region86: #{tpu_custom_call.1} parent=67 // pred_check_branch
          %453 = sbr.rel (%p451) target = $region88
        $region87: #{tpu_custom_call.1} parent=67 // pred_region
          %454 = dma.done [#allocation9], 4096
        $region88: #{tpu_custom_call.1} parent=67 // pred_fallthru
          _
        %s455 = sand.u32 %s39, 1
        %s456 = scalar_lea.sflag [#allocation3], %s455
        %s457 = sand.u32 %s39, 1
        %s458 = smul.addr %s457, 64
        %s459 = scalar_lea.vmem [#allocation2], %s458
        %p460 = pneg %p52
        %p461 = pneg %p49
        %p462 = pneg %p73
        %p463 = pneg %p70
        %p464 = pneg %p94
        %p465 = pneg %p91
        %p466 = pneg %p115
        %p467 = pneg %p112
        %p468 = pneg %p136
        %p469 = pneg %p133
        %p470 = pneg %p157
        %p471 = pneg %p154
        %p472 = pneg %p178
        %p473 = pneg %p175
        %p474 = pneg %p199
        %p475 = pneg %p196
        %p476 = pneg %p220
        %p477 = pneg %p217
        %p478 = pneg %p241
        %p479 = pneg %p238
        %p480 = pneg %p262
        %p481 = pneg %p259
        %p482 = pneg %p283
        %p483 = pneg %p280
        %p484 = pneg %p309
        %p485 = pneg %p306
        %s486 = sand.u32 %s296, 1
        %s487 = scalar_lea.sflag [#allocation4], %s486
        %s488 = sand.u32 %s296, 1
        %s489 = smul.addr %s488, 64
        %s490 = scalar_lea.vmem [#allocation11], %s489
        %s491 = smul.u32 4, %s31
        %s492 = smul.u32 4, %s31
        %v494 = vld [vmem:[%s434] sm:$0xff]
        %v495 = vld [vmem:[%s434 + $0x8] sm:$0xff]
        %v496 = vld [vmem:[%s434 + $0x10] sm:$0xff]
        %v497 = vld [vmem:[%s434 + $0x18] sm:$0xff]
        %v498 = vld [vmem:[%s434 + $0x20] sm:$0xff]
        %v499 = vld [vmem:[%s434 + $0x28] sm:$0xff]
        %v500 = vld [vmem:[%s434 + $0x30] sm:$0xff]
        %v501 = vld [vmem:[%s434 + $0x38] sm:$0xff]
        %v502 = vld [vmem:[%s1] sm:$0x1]
        %v503 = vld [vmem:[%s2] sm:$0x1]
        %504 = vadd.xlane.f32.xlu0 %v494
        %v505 = vpop.xlane.xlu0 %504
        %506 = vadd.xlane.f32.xlu0 %v495
        %v507 = vpop.xlane.xlu0 %506
        %508 = vadd.xlane.f32.xlu0 %v496
        %v509 = vpop.xlane.xlu0 %508
        %510 = vadd.xlane.f32.xlu0 %v497
        %v511 = vpop.xlane.xlu0 %510
        %512 = vadd.xlane.f32.xlu0 %v498
        %v513 = vpop.xlane.xlu0 %512
        %514 = vadd.xlane.f32.xlu0 %v499
        %v515 = vpop.xlane.xlu0 %514
        %516 = vadd.xlane.f32.xlu0 %v500
        %v517 = vpop.xlane.xlu0 %516
        %518 = vadd.xlane.f32.xlu0 %v501
        %v519 = vpop.xlane.xlu0 %518
        %v520 = vrcp.pop 128.0
        %v521 = vmul.f32 %v505, %v520
        %v522 = vmul.f32 %v507, %v520
        %v523 = vmul.f32 %v509, %v520
        %v524 = vmul.f32 %v511, %v520
        %v525 = vmul.f32 %v513, %v520
        %v526 = vmul.f32 %v515, %v520
        %v527 = vmul.f32 %v517, %v520
        %v528 = vmul.f32 %v519, %v520
        %v529 = vsub.f32 %v494, %v521
        %v530 = vsub.f32 %v495, %v522
        %v531 = vsub.f32 %v496, %v523
        %v532 = vsub.f32 %v497, %v524
        %v533 = vsub.f32 %v498, %v525
        %v534 = vsub.f32 %v499, %v526
        %v535 = vsub.f32 %v500, %v527
        %v536 = vsub.f32 %v501, %v528
        %v537 = vmul.f32 %v529, %v529
        %v538 = vmul.f32 %v530, %v530
        %v539 = vmul.f32 %v531, %v531
        %v540 = vmul.f32 %v532, %v532
        %v541 = vmul.f32 %v533, %v533
        %v542 = vmul.f32 %v534, %v534
        %v543 = vmul.f32 %v535, %v535
        %v544 = vmul.f32 %v536, %v536
        %545 = vadd.xlane.f32.xlu0 %v537
        %v546 = vpop.xlane.xlu0 %545
        %547 = vadd.xlane.f32.xlu0 %v538
        %v548 = vpop.xlane.xlu0 %547
        %549 = vadd.xlane.f32.xlu0 %v539
        %v550 = vpop.xlane.xlu0 %549
        %551 = vadd.xlane.f32.xlu0 %v540
        %v552 = vpop.xlane.xlu0 %551
        %553 = vadd.xlane.f32.xlu0 %v541
        %v554 = vpop.xlane.xlu0 %553
        %555 = vadd.xlane.f32.xlu0 %v542
        %v556 = vpop.xlane.xlu0 %555
        %557 = vadd.xlane.f32.xlu0 %v543
        %v558 = vpop.xlane.xlu0 %557
        %559 = vadd.xlane.f32.xlu0 %v544
        %v560 = vpop.xlane.xlu0 %559
        %v561 = vmul.f32 %v546, %v520
        %v562 = vmul.f32 %v548, %v520
        %v563 = vmul.f32 %v550, %v520
        %v564 = vmul.f32 %v552, %v520
        %v565 = vmul.f32 %v554, %v520
        %v566 = vmul.f32 %v556, %v520
        %v567 = vmul.f32 %v558, %v520
        %v568 = vmul.f32 %v560, %v520
        %v569 = vadd.f32 %v561, 1e-05
        %v570 = vadd.f32 %v562, 1e-05
        %v571 = vadd.f32 %v563, 1e-05
        %v572 = vadd.f32 %v564, 1e-05
        %v573 = vadd.f32 %v565, 1e-05
        %v574 = vadd.f32 %v566, 1e-05
        %v575 = vadd.f32 %v567, 1e-05
        %v576 = vadd.f32 %v568, 1e-05
        %v577 = vrsqrt.pop %v569
        %v578 = vrsqrt.pop %v570
        %v579 = vrsqrt.pop %v571
        %v580 = vrsqrt.pop %v572
        %v581 = vrsqrt.pop %v573
        %v582 = vrsqrt.pop %v574
        %v583 = vrsqrt.pop %v575
        %v584 = vrsqrt.pop %v576
        %v585 = vmul.f32 %v529, %v577
        %v586 = vmul.f32 %v530, %v578
        %v587 = vmul.f32 %v531, %v579
        %v588 = vmul.f32 %v532, %v580
        %v589 = vmul.f32 %v533, %v581
        %v590 = vmul.f32 %v534, %v582
        %v591 = vmul.f32 %v535, %v583
        %v592 = vmul.f32 %v536, %v584
        %v594 = vlaneseq
        %v595 = vshrl.u32 %v594, 7
        %v596 = vsub.s32 0, %v595
        %v597 = vrot.slane %v502, %v596
        %v599 = vmul.f32 %v585, %v597
        %v600 = vmul.f32 %v586, %v597
        %v601 = vmul.f32 %v587, %v597
        %v602 = vmul.f32 %v588, %v597
        %v603 = vmul.f32 %v589, %v597
        %v604 = vmul.f32 %v590, %v597
        %v605 = vmul.f32 %v591, %v597
        %v606 = vmul.f32 %v592, %v597
        %v608 = vlaneseq
        %v609 = vshrl.u32 %v608, 7
        %v610 = vsub.s32 0, %v609
        %v611 = vrot.slane %v503, %v610
        %v613 = vadd.f32 %v599, %v611
        %v614 = vadd.f32 %v600, %v611
        %v615 = vadd.f32 %v601, %v611
        %v616 = vadd.f32 %v602, %v611
        %v617 = vadd.f32 %v603, %v611
        %v618 = vadd.f32 %v604, %v611
        %v619 = vadd.f32 %v605, %v611
        %v620 = vadd.f32 %v606, %v611
        %v621 = vpack.c.bf16 %v614, %v613
        %v622 = vpack.c.bf16 %v616, %v615
        %v623 = vpack.c.bf16 %v618, %v617
        %v624 = vpack.c.bf16 %v620, %v619
        %v625 = vld [vmem:[#allocation5] sm:$0xff]
        %v626 = vld [vmem:[#allocation5 + $0x8] sm:$0xf]
        %v627 = vld [vmem:[#allocation5 + $0xc] sm:$0xff]
        %v628 = vld [vmem:[#allocation5 + $0x14] sm:$0xf]
        %v629 = vld [vmem:[#allocation5 + $0x18] sm:$0xff]
        %v630 = vld [vmem:[#allocation5 + $0x20] sm:$0xf]
        %v631 = vld [vmem:[#allocation5 + $0x24] sm:$0xff]
        %v632 = vld [vmem:[#allocation5 + $0x2c] sm:$0xf]
        %v633 = vld [vmem:[#allocation5 + $0x30] sm:$0xff]
        %v634 = vld [vmem:[#allocation5 + $0x38] sm:$0xf]
        %v635 = vld [vmem:[#allocation5 + $0x3c] sm:$0xff]
        %v636 = vld [vmem:[#allocation5 + $0x44] sm:$0xf]
        %v637 = vld [vmem:[#allocation5 + $0x48] sm:$0xff]
        %v638 = vld [vmem:[#allocation5 + $0x50] sm:$0xf]
        %v639 = vld [vmem:[#allocation5 + $0x54] sm:$0xff]
        %v640 = vld [vmem:[#allocation5 + $0x5c] sm:$0xf]
        %v641 = vld [vmem:[#allocation5 + $0x60] sm:$0xff]
        %v642 = vld [vmem:[#allocation5 + $0x68] sm:$0xf]
        %v643 = vld [vmem:[#allocation5 + $0x6c] sm:$0xff]
        %v644 = vld [vmem:[#allocation5 + $0x74] sm:$0xf]
        %v645 = vld [vmem:[#allocation5 + $0x78] sm:$0xff]
        %v646 = vld [vmem:[#allocation5 + $0x80] sm:$0xf]
        %v647 = vld [vmem:[#allocation5 + $0x84] sm:$0xff]
        %v648 = vld [vmem:[#allocation5 + $0x8c] sm:$0xf]
        %v649 = vld [vmem:[#allocation5 + $0x90] sm:$0xff]
        %v650 = vld [vmem:[#allocation5 + $0x98] sm:$0xf]
        %v651 = vld [vmem:[#allocation5 + $0x9c] sm:$0xff]
        %v652 = vld [vmem:[#allocation5 + $0xa4] sm:$0xf]
        %v653 = vld [vmem:[#allocation5 + $0xa8] sm:$0xff]
        %v654 = vld [vmem:[#allocation5 + $0xb0] sm:$0xf]
        %v655 = vld [vmem:[#allocation5 + $0xb4] sm:$0xff]
        %v656 = vld [vmem:[#allocation5 + $0xbc] sm:$0xf]
        %v689 = vunpack.c.l.b16 %v625
        %v690 = vunpack.c.h.b16 %v625
        %v691 = vunpack.c.l.b16 %v626
        %v692 = vunpack.c.l.b16 %v627
        %v693 = vunpack.c.h.b16 %v627
        %v694 = vunpack.c.l.b16 %v628
        %v695 = vunpack.c.l.b16 %v629
        %v696 = vunpack.c.h.b16 %v629
        %v697 = vunpack.c.l.b16 %v630
        %v698 = vunpack.c.l.b16 %v631
        %v699 = vunpack.c.h.b16 %v631
        %v700 = vunpack.c.l.b16 %v632
        %v701 = vunpack.c.l.b16 %v633
        %v702 = vunpack.c.h.b16 %v633
        %v703 = vunpack.c.l.b16 %v634
        %v704 = vunpack.c.l.b16 %v635
        %v705 = vunpack.c.h.b16 %v635
        %v706 = vunpack.c.l.b16 %v636
        %v707 = vunpack.c.l.b16 %v637
        %v708 = vunpack.c.h.b16 %v637
        %v709 = vunpack.c.l.b16 %v638
        %v710 = vunpack.c.l.b16 %v639
        %v711 = vunpack.c.h.b16 %v639
        %v712 = vunpack.c.l.b16 %v640
        %v713 = vunpack.c.l.b16 %v641
        %v714 = vunpack.c.h.b16 %v641
        %v715 = vunpack.c.l.b16 %v642
        %v716 = vunpack.c.l.b16 %v643
        %v717 = vunpack.c.h.b16 %v643
        %v718 = vunpack.c.l.b16 %v644
        %v719 = vunpack.c.l.b16 %v645
        %v720 = vunpack.c.h.b16 %v645
        %v721 = vunpack.c.l.b16 %v646
        %v722 = vunpack.c.l.b16 %v647
        %v723 = vunpack.c.h.b16 %v647
        %v724 = vunpack.c.l.b16 %v648
        %v725 = vunpack.c.l.b16 %v649
        %v726 = vunpack.c.h.b16 %v649
        %v727 = vunpack.c.l.b16 %v650
        %v728 = vunpack.c.l.b16 %v651
        %v729 = vunpack.c.h.b16 %v651
        %v730 = vunpack.c.l.b16 %v652
        %v731 = vunpack.c.l.b16 %v653
        %v732 = vunpack.c.h.b16 %v653
        %v733 = vunpack.c.l.b16 %v654
        %v734 = vunpack.c.l.b16 %v655
        %v735 = vunpack.c.h.b16 %v655
        %v736 = vunpack.c.l.b16 %v656
        %v737 = vpack.c.b16 %v692, %v689
        %v738 = vpack.c.b16 %v693, %v690
        %v739 = vpack.c.b16 %v694, %v691
        %v740 = vpack.c.b16 %v698, %v695
        %v741 = vpack.c.b16 %v699, %v696
        %v742 = vpack.c.b16 %v700, %v697
        %v743 = vpack.c.b16 %v704, %v701
        %v744 = vpack.c.b16 %v705, %v702
        %v745 = vpack.c.b16 %v706, %v703
        %v746 = vpack.c.b16 %v710, %v707
        %v747 = vpack.c.b16 %v711, %v708
        %v748 = vpack.c.b16 %v712, %v709
        %v749 = vpack.c.b16 %v716, %v713
        %v750 = vpack.c.b16 %v717, %v714
        %v751 = vpack.c.b16 %v718, %v715
        %v752 = vpack.c.b16 %v722, %v719
        %v753 = vpack.c.b16 %v723, %v720
        %v754 = vpack.c.b16 %v724, %v721
        %v755 = vpack.c.b16 %v728, %v725
        %v756 = vpack.c.b16 %v729, %v726
        %v757 = vpack.c.b16 %v730, %v727
        %v758 = vpack.c.b16 %v734, %v731
        %v759 = vpack.c.b16 %v735, %v732
        %v760 = vpack.c.b16 %v736, %v733
        %785 = vmatprep.subr.bf16.mxu0 %v738
        %786 = vmatpush1.bf16.msra.mxu0 %v737
        %787 = vmatprep.subr.bf16.mxu0 %v741
        %788 = vmatpush1.bf16.msra.mxu0 %v740
        %789 = vmatprep.subr.bf16.mxu0 %v744
        %790 = vmatpush1.bf16.msra.mxu0 %v743
        %791 = vmatprep.subr.bf16.mxu0 %v747
        %792 = vmatpush1.bf16.msra.mxu0 %v746
        %793 = vmatprep.subr.bf16.mxu0 %v750
        %794 = vmatpush1.bf16.msra.mxu0 %v749
        %795 = vmatprep.subr.bf16.mxu0 %v753
        %796 = vmatpush1.bf16.msra.mxu0 %v752
        %797 = vmatprep.subr.bf16.mxu0 %v756
        %798 = vmatpush1.bf16.msra.mxu0 %v755
        %799 = vmatprep.subr.bf16.mxu0 %v759
        %800 = vmatpush1.bf16.msra.mxu0 %v758
        %801 = vmatprep.subr.bf16.mxu0 0
        %802 = vmatpush1.bf16.msra.mxu0 0
        %803 = vmatprep.subr.bf16.mxu0 0
        %804 = vmatpush1.bf16.msra.mxu0 0
        %805 = vmatprep.subr.bf16.mxu0 0
        %806 = vmatpush1.bf16.msra.mxu0 0
        %807 = vmatprep.subr.bf16.mxu0 0
        %808 = vmatpush1.bf16.msra.mxu0 0
        %809 = vmatprep.subr.bf16.mxu0 0
        %810 = vmatpush1.bf16.msra.mxu0 0
        %811 = vmatprep.subr.bf16.mxu0 0
        %812 = vmatpush1.bf16.msra.mxu0 0
        %813 = vmatprep.subr.bf16.mxu0 0
        %814 = vmatpush1.bf16.msra.mxu0 0
        %815 = vmatprep.subr.bf16.mxu0 0
        %816 = vmatpush1.bf16.msra.mxu0 0
        %817 = vmatprep.mubr.bf16.mxu0 0
        %818 = vmatmul.mubr.bf16.gmra.mrb[0].mxu0 %v621
        %v819 = vpop.f32.mrb[0].mxu0
        %v820 = vadd.f32 0.0, %v819
        %v821 = vpop.f32.mrb[0].mxu0
        %v822 = vadd.f32 0.0, %v821
        %v823 = vpop.f32.mrb[0].mxu0
        %v824 = vadd.f32 0.0, %v823
        %v825 = vpop.f32.mrb[0].mxu0
        %v826 = vadd.f32 0.0, %v825
        %827 = vmatprep.mubr.bf16.mxu0 0
        %828 = vmatmul.mubr.bf16.gmra.mrb[0].mxu0 %v622
        %v829 = vpop.f32.mrb[0].mxu0
        %v830 = vadd.f32 0.0, %v829
        %v831 = vpop.f32.mrb[0].mxu0
        %v832 = vadd.f32 0.0, %v831
        %v833 = vpop.f32.mrb[0].mxu0
        %v834 = vadd.f32 0.0, %v833
        %v835 = vpop.f32.mrb[0].mxu0
        %v836 = vadd.f32 0.0, %v835
        %837 = vmatprep.mubr.bf16.mxu0 0
        %838 = vmatmul.mubr.bf16.gmra.mrb[0].mxu0 %v623
        %v839 = vpop.f32.mrb[0].mxu0
        %v840 = vadd.f32 0.0, %v839
        %v841 = vpop.f32.mrb[0].mxu0
        %v842 = vadd.f32 0.0, %v841
        %v843 = vpop.f32.mrb[0].mxu0
        %v844 = vadd.f32 0.0, %v843
        %v845 = vpop.f32.mrb[0].mxu0
        %v846 = vadd.f32 0.0, %v845
        %847 = vmatprep.mubr.bf16.mxu0 0
        %848 = vmatmul.mubr.bf16.gmra.mrb[0].mxu0 %v624
        %v849 = vpop.f32.mrb[0].mxu0
        %v850 = vadd.f32 0.0, %v849
        %v851 = vpop.f32.mrb[0].mxu0
        %v852 = vadd.f32 0.0, %v851
        %v853 = vpop.f32.mrb[0].mxu0
        %v854 = vadd.f32 0.0, %v853
        %v855 = vpop.f32.mrb[0].mxu0
        %v856 = vadd.f32 0.0, %v855
        %857 = vdwg.mxu0
        %858 = vmatprep.subr.bf16.mxu0 0
        %859 = vmatpush1.bf16.msra.mxu0 %v739
        %860 = vmatprep.subr.bf16.mxu0 0
        %861 = vmatpush1.bf16.msra.mxu0 %v742
        %862 = vmatprep.subr.bf16.mxu0 0
        %863 = vmatpush1.bf16.msra.mxu0 %v745
        %864 = vmatprep.subr.bf16.mxu0 0
        %865 = vmatpush1.bf16.msra.mxu0 %v748
        %866 = vmatprep.subr.bf16.mxu0 0
        %867 = vmatpush1.bf16.msra.mxu0 %v751
        %868 = vmatprep.subr.bf16.mxu0 0
        %869 = vmatpush1.bf16.msra.mxu0 %v754
        %870 = vmatprep.subr.bf16.mxu0 0
        %871 = vmatpush1.bf16.msra.mxu0 %v757
        %872 = vmatprep.subr.bf16.mxu0 0
        %873 = vmatpush1.bf16.msra.mxu0 %v760
        %874 = vmatprep.subr.bf16.mxu0 0
        %875 = vmatpush1.bf16.msra.mxu0 0
        %876 = vmatprep.subr.bf16.mxu0 0
        %877 = vmatpush1.bf16.msra.mxu0 0
        %878 = vmatprep.subr.bf16.mxu0 0
        %879 = vmatpush1.bf16.msra.mxu0 0
        %880 = vmatprep.subr.bf16.mxu0 0
        %881 = vmatpush1.bf16.msra.mxu0 0
        %882 = vmatprep.subr.bf16.mxu0 0
        %883 = vmatpush1.bf16.msra.mxu0 0
        %884 = vmatprep.subr.bf16.mxu0 0
        %885 = vmatpush1.bf16.msra.mxu0 0
        %886 = vmatprep.subr.bf16.mxu0 0
        %887 = vmatpush1.bf16.msra.mxu0 0
        %888 = vmatprep.subr.bf16.mxu0 0
        %889 = vmatpush1.bf16.msra.mxu0 0
        %890 = vmatprep.mubr.bf16.mxu0 0
        %891 = vmatmul.mubr.bf16.gmra.mrb[0].mxu0 %v621
        %v892 = vpop.f32.mrb[0].mxu0
        %v893 = vadd.f32 0.0, %v892
        %v894 = vpop.f32.mrb[0].mxu0
        %v895 = vpop.f32.mrb[0].mxu0
        %v896 = vadd.f32 0.0, %v895
        %v897 = vpop.f32.mrb[0].mxu0
        %898 = vmatprep.mubr.bf16.mxu0 0
        %899 = vmatmul.mubr.bf16.gmra.mrb[0].mxu0 %v622
        %v900 = vpop.f32.mrb[0].mxu0
        %v901 = vadd.f32 0.0, %v900
        %v902 = vpop.f32.mrb[0].mxu0
        %v903 = vpop.f32.mrb[0].mxu0
        %v904 = vadd.f32 0.0, %v903
        %v905 = vpop.f32.mrb[0].mxu0
        %906 = vmatprep.mubr.bf16.mxu0 0
        %907 = vmatmul.mubr.bf16.gmra.mrb[0].mxu0 %v623
        %v908 = vpop.f32.mrb[0].mxu0
        %v909 = vadd.f32 0.0, %v908
        %v910 = vpop.f32.mrb[0].mxu0
        %v911 = vpop.f32.mrb[0].mxu0
        %v912 = vadd.f32 0.0, %v911
        %v913 = vpop.f32.mrb[0].mxu0
        %914 = vmatprep.mubr.bf16.mxu0 0
        %915 = vmatmul.mubr.bf16.gmra.mrb[0].mxu0 %v624
        %v916 = vpop.f32.mrb[0].mxu0
        %v917 = vadd.f32 0.0, %v916
        %v918 = vpop.f32.mrb[0].mxu0
        %v919 = vpop.f32.mrb[0].mxu0
        %v920 = vadd.f32 0.0, %v919
        %v921 = vpop.f32.mrb[0].mxu0
        %922 = vdwg.mxu0
        %931 = vrot.lane.b32.xlu0 %v820, 96
        %v932 = vpop.permute.xlu0 %931
        %933 = vrot.lane.b32.xlu0 %v824, 96
        %v934 = vpop.permute.xlu0 %933
        %935 = vrot.lane.b32.xlu0 %v830, 96
        %v936 = vpop.permute.xlu0 %935
        %937 = vrot.lane.b32.xlu0 %v834, 96
        %v938 = vpop.permute.xlu0 %937
        %939 = vrot.lane.b32.xlu0 %v840, 96
        %v940 = vpop.permute.xlu0 %939
        %941 = vrot.lane.b32.xlu0 %v844, 96
        %v942 = vpop.permute.xlu0 %941
        %943 = vrot.lane.b32.xlu0 %v850, 96
        %v944 = vpop.permute.xlu0 %943
        %945 = vrot.lane.b32.xlu0 %v854, 96
        %v946 = vpop.permute.xlu0 %945
        %955 = vrot.lane.b32.xlu0 %v820, 64
        %v956 = vpop.permute.xlu0 %955
        %957 = vrot.lane.b32.xlu0 %v824, 64
        %v958 = vpop.permute.xlu0 %957
        %959 = vrot.lane.b32.xlu0 %v830, 64
        %v960 = vpop.permute.xlu0 %959
        %961 = vrot.lane.b32.xlu0 %v834, 64
        %v962 = vpop.permute.xlu0 %961
        %963 = vrot.lane.b32.xlu0 %v840, 64
        %v964 = vpop.permute.xlu0 %963
        %965 = vrot.lane.b32.xlu0 %v844, 64
        %v966 = vpop.permute.xlu0 %965
        %967 = vrot.lane.b32.xlu0 %v850, 64
        %v968 = vpop.permute.xlu0 %967
        %969 = vrot.lane.b32.xlu0 %v854, 64
        %v970 = vpop.permute.xlu0 %969
        %979 = vrot.lane.b32.xlu0 %v820, 32
        %v980 = vpop.permute.xlu0 %979
        %981 = vrot.lane.b32.xlu0 %v824, 32
        %v982 = vpop.permute.xlu0 %981
        %983 = vrot.lane.b32.xlu0 %v830, 32
        %v984 = vpop.permute.xlu0 %983
        %985 = vrot.lane.b32.xlu0 %v834, 32
        %v986 = vpop.permute.xlu0 %985
        %987 = vrot.lane.b32.xlu0 %v840, 32
        %v988 = vpop.permute.xlu0 %987
        %989 = vrot.lane.b32.xlu0 %v844, 32
        %v990 = vpop.permute.xlu0 %989
        %991 = vrot.lane.b32.xlu0 %v850, 32
        %v992 = vpop.permute.xlu0 %991
        %993 = vrot.lane.b32.xlu0 %v854, 32
        %v994 = vpop.permute.xlu0 %993
        %v1003 = vpack.c.bf16 %v824, %v820
        %v1004 = vpack.c.bf16 %v834, %v830
        %v1005 = vpack.c.bf16 %v844, %v840
        %v1006 = vpack.c.bf16 %v854, %v850
        %v1007 = vpack.c.bf16 %v934, %v932
        %v1008 = vpack.c.bf16 %v938, %v936
        %v1009 = vpack.c.bf16 %v942, %v940
        %v1010 = vpack.c.bf16 %v946, %v944
        %v1011 = vpack.c.bf16 %v958, %v956
        %v1012 = vpack.c.bf16 %v962, %v960
        %v1013 = vpack.c.bf16 %v966, %v964
        %v1014 = vpack.c.bf16 %v970, %v968
        %v1015 = vpack.c.bf16 %v982, %v980
        %v1016 = vpack.c.bf16 %v986, %v984
        %v1017 = vpack.c.bf16 %v990, %v988
        %v1018 = vpack.c.bf16 %v994, %v992
        %1027 = vrot.lane.b32.xlu0 %v822, 96
        %v1028 = vpop.permute.xlu0 %1027
        %1029 = vrot.lane.b32.xlu0 %v826, 96
        %v1030 = vpop.permute.xlu0 %1029
        %1031 = vrot.lane.b32.xlu0 %v832, 96
        %v1032 = vpop.permute.xlu0 %1031
        %1033 = vrot.lane.b32.xlu0 %v836, 96
        %v1034 = vpop.permute.xlu0 %1033
        %1035 = vrot.lane.b32.xlu0 %v842, 96
        %v1036 = vpop.permute.xlu0 %1035
        %1037 = vrot.lane.b32.xlu0 %v846, 96
        %v1038 = vpop.permute.xlu0 %1037
        %1039 = vrot.lane.b32.xlu0 %v852, 96
        %v1040 = vpop.permute.xlu0 %1039
        %1041 = vrot.lane.b32.xlu0 %v856, 96
        %v1042 = vpop.permute.xlu0 %1041
        %1051 = vrot.lane.b32.xlu0 %v822, 64
        %v1052 = vpop.permute.xlu0 %1051
        %1053 = vrot.lane.b32.xlu0 %v826, 64
        %v1054 = vpop.permute.xlu0 %1053
        %1055 = vrot.lane.b32.xlu0 %v832, 64
        %v1056 = vpop.permute.xlu0 %1055
        %1057 = vrot.lane.b32.xlu0 %v836, 64
        %v1058 = vpop.permute.xlu0 %1057
        %1059 = vrot.lane.b32.xlu0 %v842, 64
        %v1060 = vpop.permute.xlu0 %1059
        %1061 = vrot.lane.b32.xlu0 %v846, 64
        %v1062 = vpop.permute.xlu0 %1061
        %1063 = vrot.lane.b32.xlu0 %v852, 64
        %v1064 = vpop.permute.xlu0 %1063
        %1065 = vrot.lane.b32.xlu0 %v856, 64
        %v1066 = vpop.permute.xlu0 %1065
        %1075 = vrot.lane.b32.xlu0 %v822, 32
        %v1076 = vpop.permute.xlu0 %1075
        %1077 = vrot.lane.b32.xlu0 %v826, 32
        %v1078 = vpop.permute.xlu0 %1077
        %1079 = vrot.lane.b32.xlu0 %v832, 32
        %v1080 = vpop.permute.xlu0 %1079
        %1081 = vrot.lane.b32.xlu0 %v836, 32
        %v1082 = vpop.permute.xlu0 %1081
        %1083 = vrot.lane.b32.xlu0 %v842, 32
        %v1084 = vpop.permute.xlu0 %1083
        %1085 = vrot.lane.b32.xlu0 %v846, 32
        %v1086 = vpop.permute.xlu0 %1085
        %1087 = vrot.lane.b32.xlu0 %v852, 32
        %v1088 = vpop.permute.xlu0 %1087
        %1089 = vrot.lane.b32.xlu0 %v856, 32
        %v1090 = vpop.permute.xlu0 %1089
        %v1099 = vpack.c.bf16 %v826, %v822
        %v1100 = vpack.c.bf16 %v836, %v832
        %v1101 = vpack.c.bf16 %v846, %v842
        %v1102 = vpack.c.bf16 %v856, %v852
        %v1103 = vpack.c.bf16 %v1030, %v1028
        %v1104 = vpack.c.bf16 %v1034, %v1032
        %v1105 = vpack.c.bf16 %v1038, %v1036
        %v1106 = vpack.c.bf16 %v1042, %v1040
        %v1107 = vpack.c.bf16 %v1054, %v1052
        %v1108 = vpack.c.bf16 %v1058, %v1056
        %v1109 = vpack.c.bf16 %v1062, %v1060
        %v1110 = vpack.c.bf16 %v1066, %v1064
        %v1111 = vpack.c.bf16 %v1078, %v1076
        %v1112 = vpack.c.bf16 %v1082, %v1080
        %v1113 = vpack.c.bf16 %v1086, %v1084
        %v1114 = vpack.c.bf16 %v1090, %v1088
        %1123 = vrot.lane.b32.xlu0 %v893, 96
        %v1124 = vpop.permute.xlu0 %1123
        %1125 = vrot.lane.b32.xlu0 %v896, 96
        %v1126 = vpop.permute.xlu0 %1125
        %1127 = vrot.lane.b32.xlu0 %v901, 96
        %v1128 = vpop.permute.xlu0 %1127
        %1129 = vrot.lane.b32.xlu0 %v904, 96
        %v1130 = vpop.permute.xlu0 %1129
        %1131 = vrot.lane.b32.xlu0 %v909, 96
        %v1132 = vpop.permute.xlu0 %1131
        %1133 = vrot.lane.b32.xlu0 %v912, 96
        %v1134 = vpop.permute.xlu0 %1133
        %1135 = vrot.lane.b32.xlu0 %v917, 96
        %v1136 = vpop.permute.xlu0 %1135
        %1137 = vrot.lane.b32.xlu0 %v920, 96
        %v1138 = vpop.permute.xlu0 %1137
        %1147 = vrot.lane.b32.xlu0 %v893, 64
        %v1148 = vpop.permute.xlu0 %1147
        %1149 = vrot.lane.b32.xlu0 %v896, 64
        %v1150 = vpop.permute.xlu0 %1149
        %1151 = vrot.lane.b32.xlu0 %v901, 64
        %v1152 = vpop.permute.xlu0 %1151
        %1153 = vrot.lane.b32.xlu0 %v904, 64
        %v1154 = vpop.permute.xlu0 %1153
        %1155 = vrot.lane.b32.xlu0 %v909, 64
        %v1156 = vpop.permute.xlu0 %1155
        %1157 = vrot.lane.b32.xlu0 %v912, 64
        %v1158 = vpop.permute.xlu0 %1157
        %1159 = vrot.lane.b32.xlu0 %v917, 64
        %v1160 = vpop.permute.xlu0 %1159
        %1161 = vrot.lane.b32.xlu0 %v920, 64
        %v1162 = vpop.permute.xlu0 %1161
        %1171 = vrot.lane.b32.xlu0 %v893, 32
        %v1172 = vpop.permute.xlu0 %1171
        %1173 = vrot.lane.b32.xlu0 %v896, 32
        %v1174 = vpop.permute.xlu0 %1173
        %1175 = vrot.lane.b32.xlu0 %v901, 32
        %v1176 = vpop.permute.xlu0 %1175
        %1177 = vrot.lane.b32.xlu0 %v904, 32
        %v1178 = vpop.permute.xlu0 %1177
        %1179 = vrot.lane.b32.xlu0 %v909, 32
        %v1180 = vpop.permute.xlu0 %1179
        %1181 = vrot.lane.b32.xlu0 %v912, 32
        %v1182 = vpop.permute.xlu0 %1181
        %1183 = vrot.lane.b32.xlu0 %v917, 32
        %v1184 = vpop.permute.xlu0 %1183
        %1185 = vrot.lane.b32.xlu0 %v920, 32
        %v1186 = vpop.permute.xlu0 %1185
        %v1195 = vpack.c.bf16 %v896, %v893
        %v1196 = vpack.c.bf16 %v904, %v901
        %v1197 = vpack.c.bf16 %v912, %v909
        %v1198 = vpack.c.bf16 %v920, %v917
        %v1199 = vpack.c.bf16 %v1126, %v1124
        %v1200 = vpack.c.bf16 %v1130, %v1128
        %v1201 = vpack.c.bf16 %v1134, %v1132
        %v1202 = vpack.c.bf16 %v1138, %v1136
        %v1203 = vpack.c.bf16 %v1150, %v1148
        %v1204 = vpack.c.bf16 %v1154, %v1152
        %v1205 = vpack.c.bf16 %v1158, %v1156
        %v1206 = vpack.c.bf16 %v1162, %v1160
        %v1207 = vpack.c.bf16 %v1174, %v1172
        %v1208 = vpack.c.bf16 %v1178, %v1176
        %v1209 = vpack.c.bf16 %v1182, %v1180
        %v1210 = vpack.c.bf16 %v1186, %v1184
        %v1211 = vlaneseq
        %v1212 = vshrl.u32 %v1211, 7
        %v1213 = vadd.s32 %v1212, 8
        %v1214 = vlaneseq
        %v1215 = vand.u32 %v1214, 127
        %vm1216 = vcmp.le.s32.totalorder %v1215, %v1212
        %vm1217 = vcmp.le.s32.totalorder %v1215, %v1213
        %v1218 = vsel %vm1216, 0.0, -1e+30
        %v1219 = vsel %vm1217, 0.0, -1e+30
        %vm1220 = vcmask 261120
        %v1222 = vsel %vm1220, %v1003, 0
        %v1225 = vsel %vm1220, %v1099, 0
        %1227 = vmatprep.subr.bf16.mxu0 0
        %1228 = vmatpush1.bf16.xpose.msra.mxu0 %v1225
        %1229 = vmatprep.subr.bf16.mxu0 0
        %1230 = vmatpush1.bf16.xpose.msra.mxu0 0
        %1231 = vmatprep.subr.bf16.mxu0 0
        %1232 = vmatpush1.bf16.xpose.msra.mxu0 0
        %1233 = vmatprep.subr.bf16.mxu0 0
        %1234 = vmatpush1.bf16.xpose.msra.mxu0 0
        %1235 = vmatprep.subr.bf16.mxu0 0
        %1236 = vmatpush1.bf16.xpose.msra.mxu0 0
        %1237 = vmatprep.subr.bf16.mxu0 0
        %1238 = vmatpush1.bf16.xpose.msra.mxu0 0
        %1239 = vmatprep.subr.bf16.mxu0 0
        %1240 = vmatpush1.bf16.xpose.msra.mxu0 0
        %1241 = vmatprep.subr.bf16.mxu0 0
        %1242 = vmatpush1.bf16.xpose.msra.mxu0 0
        %1243 = vmatprep.subr.bf16.mxu0 0
        %1244 = vmatpush1.bf16.xpose.msra.mxu0 0
        %1245 = vmatprep.subr.bf16.mxu0 0
        %1246 = vmatpush1.bf16.xpose.msra.mxu0 0
        %1247 = vmatprep.subr.bf16.mxu0 0
        %1248 = vmatpush1.bf16.xpose.msra.mxu0 0
        %1249 = vmatprep.subr.bf16.mxu0 0
        %1250 = vmatpush1.bf16.xpose.msra.mxu0 0
        %1251 = vmatprep.subr.bf16.mxu0 0
        %1252 = vmatpush1.bf16.xpose.msra.mxu0 0
        %1253 = vmatprep.subr.bf16.mxu0 0
        %1254 = vmatpush1.bf16.xpose.msra.mxu0 0
        %1255 = vmatprep.subr.bf16.mxu0 0
        %1256 = vmatpush1.bf16.xpose.msra.mxu0 0
        %1257 = vmatprep.subr.bf16.mxu0 0
        %1258 = vmatpush1.bf16.xpose.msra.mxu0 0
        %1259 = vmatprep.mubr.bf16.mxu0 0
        %1260 = vmatmul.mubr.bf16.gmra.mrb[0].mxu0 %v1222
        %v1261 = vpop.f32.mrb[0].mxu0
        %v1262 = vadd.f32 %v1218, %v1261
        %v1263 = vpop.f32.mrb[0].mxu0
        %v1264 = vpop.f32.mrb[0].mxu0
        %v1265 = vadd.f32 %v1219, %v1264
        %v1266 = vpop.f32.mrb[0].mxu0
        %1267 = vdwg.mxu0
        %v1269 = vsel %vm1220, %v1004, 0
        %v1272 = vsel %vm1220, %v1100, 0
        %1274 = vmatprep.subr.bf16.mxu0 0
        %1275 = vmatpush1.bf16.xpose.msra.mxu0 %v1272
        %1276 = vmatprep.subr.bf16.mxu0 0
        %1277 = vmatpush1.bf16.xpose.msra.mxu0 0
        %1278 = vmatprep.subr.bf16.mxu0 0
        %1279 = vmatpush1.bf16.xpose.msra.mxu0 0
        %1280 = vmatprep.subr.bf16.mxu0 0
        %1281 = vmatpush1.bf16.xpose.msra.mxu0 0
        %1282 = vmatprep.subr.bf16.mxu0 0
        %1283 = vmatpush1.bf16.xpose.msra.mxu0 0
        %1284 = vmatprep.subr.bf16.mxu0 0
        %1285 = vmatpush1.bf16.xpose.msra.mxu0 0
        %1286 = vmatprep.subr.bf16.mxu0 0
        %1287 = vmatpush1.bf16.xpose.msra.mxu0 0
        %1288 = vmatprep.subr.bf16.mxu0 0
        %1289 = vmatpush1.bf16.xpose.msra.mxu0 0
        %1290 = vmatprep.subr.bf16.mxu0 0
        %1291 = vmatpush1.bf16.xpose.msra.mxu0 0
        %1292 = vmatprep.subr.bf16.mxu0 0
        %1293 = vmatpush1.bf16.xpose.msra.mxu0 0
        %1294 = vmatprep.subr.bf16.mxu0 0
        %1295 = vmatpush1.bf16.xpose.msra.mxu0 0
        %1296 = vmatprep.subr.bf16.mxu0 0
        %1297 = vmatpush1.bf16.xpose.msra.mxu0 0
        %1298 = vmatprep.subr.bf16.mxu0 0
        %1299 = vmatpush1.bf16.xpose.msra.mxu0 0
        %1300 = vmatprep.subr.bf16.mxu0 0
        %1301 = vmatpush1.bf16.xpose.msra.mxu0 0
        %1302 = vmatprep.subr.bf16.mxu0 0
        %1303 = vmatpush1.bf16.xpose.msra.mxu0 0
        %1304 = vmatprep.subr.bf16.mxu0 0
        %1305 = vmatpush1.bf16.xpose.msra.mxu0 0
        %1306 = vmatprep.mubr.bf16.mxu0 0
        %1307 = vmatmul.mubr.bf16.gmra.mrb[0].mxu0 %v1269
        %v1308 = vpop.f32.mrb[0].mxu0
        %v1309 = vadd.f32 %v1218, %v1308
        %v1310 = vpop.f32.mrb[0].mxu0
        %v1311 = vpop.f32.mrb[0].mxu0
        %v1312 = vadd.f32 %v1219, %v1311
        %v1313 = vpop.f32.mrb[0].mxu0
        %1314 = vdwg.mxu0
        %v1316 = vsel %vm1220, %v1005, 0
        %v1319 = vsel %vm1220, %v1101, 0
        %1321 = vmatprep.subr.bf16.mxu0 0
        %1322 = vmatpush1.bf16.xpose.msra.mxu0 %v1319
        %1323 = vmatprep.subr.bf16.mxu0 0
        %1324 = vmatpush1.bf16.xpose.msra.mxu0 0
        %1325 = vmatprep.subr.bf16.mxu0 0
        %1326 = vmatpush1.bf16.xpose.msra.mxu0 0
        %1327 = vmatprep.subr.bf16.mxu0 0
        %1328 = vmatpush1.bf16.xpose.msra.mxu0 0
        %1329 = vmatprep.subr.bf16.mxu0 0
        %1330 = vmatpush1.bf16.xpose.msra.mxu0 0
        %1331 = vmatprep.subr.bf16.mxu0 0
        %1332 = vmatpush1.bf16.xpose.msra.mxu0 0
        %1333 = vmatprep.subr.bf16.mxu0 0
        %1334 = vmatpush1.bf16.xpose.msra.mxu0 0
        %1335 = vmatprep.subr.bf16.mxu0 0
        %1336 = vmatpush1.bf16.xpose.msra.mxu0 0
        %1337 = vmatprep.subr.bf16.mxu0 0
        %1338 = vmatpush1.bf16.xpose.msra.mxu0 0
        %1339 = vmatprep.subr.bf16.mxu0 0
        %1340 = vmatpush1.bf16.xpose.msra.mxu0 0
        %1341 = vmatprep.subr.bf16.mxu0 0
        %1342 = vmatpush1.bf16.xpose.msra.mxu0 0
        %1343 = vmatprep.subr.bf16.mxu0 0
        %1344 = vmatpush1.bf16.xpose.msra.mxu0 0
        %1345 = vmatprep.subr.bf16.mxu0 0
        %1346 = vmatpush1.bf16.xpose.msra.mxu0 0
        %1347 = vmatprep.subr.bf16.mxu0 0
        %1348 = vmatpush1.bf16.xpose.msra.mxu0 0
        %1349 = vmatprep.subr.bf16.mxu0 0
        %1350 = vmatpush1.bf16.xpose.msra.mxu0 0
        %1351 = vmatprep.subr.bf16.mxu0 0
        %1352 = vmatpush1.bf16.xpose.msra.mxu0 0
        %1353 = vmatprep.mubr.bf16.mxu0 0
        %1354 = vmatmul.mubr.bf16.gmra.mrb[0].mxu0 %v1316
        %v1355 = vpop.f32.mrb[0].mxu0
        %v1356 = vadd.f32 %v1218, %v1355
        %v1357 = vpop.f32.mrb[0].mxu0
        %v1358 = vpop.f32.mrb[0].mxu0
        %v1359 = vadd.f32 %v1219, %v1358
        %v1360 = vpop.f32.mrb[0].mxu0
        %1361 = vdwg.mxu0
        %v1363 = vsel %vm1220, %v1006, 0
        %v1366 = vsel %vm1220, %v1102, 0
        %1368 = vmatprep.subr.bf16.mxu0 0
        %1369 = vmatpush1.bf16.xpose.msra.mxu0 %v1366
        %1370 = vmatprep.subr.bf16.mxu0 0
        %1371 = vmatpush1.bf16.xpose.msra.mxu0 0
        %1372 = vmatprep.subr.bf16.mxu0 0
        %1373 = vmatpush1.bf16.xpose.msra.mxu0 0
        %1374 = vmatprep.subr.bf16.mxu0 0
        %1375 = vmatpush1.bf16.xpose.msra.mxu0 0
        %1376 = vmatprep.subr.bf16.mxu0 0
        %1377 = vmatpush1.bf16.xpose.msra.mxu0 0
        %1378 = vmatprep.subr.bf16.mxu0 0
        %1379 = vmatpush1.bf16.xpose.msra.mxu0 0
        %1380 = vmatprep.subr.bf16.mxu0 0
        %1381 = vmatpush1.bf16.xpose.msra.mxu0 0
        %1382 = vmatprep.subr.bf16.mxu0 0
        %1383 = vmatpush1.bf16.xpose.msra.mxu0 0
        %1384 = vmatprep.subr.bf16.mxu0 0
        %1385 = vmatpush1.bf16.xpose.msra.mxu0 0
        %1386 = vmatprep.subr.bf16.mxu0 0
        %1387 = vmatpush1.bf16.xpose.msra.mxu0 0
        %1388 = vmatprep.subr.bf16.mxu0 0
        %1389 = vmatpush1.bf16.xpose.msra.mxu0 0
        %1390 = vmatprep.subr.bf16.mxu0 0
        %1391 = vmatpush1.bf16.xpose.msra.mxu0 0
        %1392 = vmatprep.subr.bf16.mxu0 0
        %1393 = vmatpush1.bf16.xpose.msra.mxu0 0
        %1394 = vmatprep.subr.bf16.mxu0 0
        %1395 = vmatpush1.bf16.xpose.msra.mxu0 0
        %1396 = vmatprep.subr.bf16.mxu0 0
        %1397 = vmatpush1.bf16.xpose.msra.mxu0 0
        %1398 = vmatprep.subr.bf16.mxu0 0
        %1399 = vmatpush1.bf16.xpose.msra.mxu0 0
        %1400 = vmatprep.mubr.bf16.mxu0 0
        %1401 = vmatmul.mubr.bf16.gmra.mrb[0].mxu0 %v1363
        %v1402 = vpop.f32.mrb[0].mxu0
        %v1403 = vadd.f32 %v1218, %v1402
        %v1404 = vpop.f32.mrb[0].mxu0
        %v1405 = vpop.f32.mrb[0].mxu0
        %v1406 = vadd.f32 %v1219, %v1405
        %v1407 = vpop.f32.mrb[0].mxu0
        %1408 = vdwg.mxu0
        %v1410 = vsel %vm1220, %v1007, 0
        %v1413 = vsel %vm1220, %v1103, 0
        %1415 = vmatprep.subr.bf16.mxu0 0
        %1416 = vmatpush1.bf16.xpose.msra.mxu0 %v1413
        %1417 = vmatprep.subr.bf16.mxu0 0
        %1418 = vmatpush1.bf16.xpose.msra.mxu0 0
        %1419 = vmatprep.subr.bf16.mxu0 0
        %1420 = vmatpush1.bf16.xpose.msra.mxu0 0
        %1421 = vmatprep.subr.bf16.mxu0 0
        %1422 = vmatpush1.bf16.xpose.msra.mxu0 0
        %1423 = vmatprep.subr.bf16.mxu0 0
        %1424 = vmatpush1.bf16.xpose.msra.mxu0 0
        %1425 = vmatprep.subr.bf16.mxu0 0
        %1426 = vmatpush1.bf16.xpose.msra.mxu0 0
        %1427 = vmatprep.subr.bf16.mxu0 0
        %1428 = vmatpush1.bf16.xpose.msra.mxu0 0
        %1429 = vmatprep.subr.bf16.mxu0 0
        %1430 = vmatpush1.bf16.xpose.msra.mxu0 0
        %1431 = vmatprep.subr.bf16.mxu0 0
        %1432 = vmatpush1.bf16.xpose.msra.mxu0 0
        %1433 = vmatprep.subr.bf16.mxu0 0
        %1434 = vmatpush1.bf16.xpose.msra.mxu0 0
        %1435 = vmatprep.subr.bf16.mxu0 0
        %1436 = vmatpush1.bf16.xpose.msra.mxu0 0
        %1437 = vmatprep.subr.bf16.mxu0 0
        %1438 = vmatpush1.bf16.xpose.msra.mxu0 0
        %1439 = vmatprep.subr.bf16.mxu0 0
        %1440 = vmatpush1.bf16.xpose.msra.mxu0 0
        %1441 = vmatprep.subr.bf16.mxu0 0
        %1442 = vmatpush1.bf16.xpose.msra.mxu0 0
        %1443 = vmatprep.subr.bf16.mxu0 0
        %1444 = vmatpush1.bf16.xpose.msra.mxu0 0
        %1445 = vmatprep.subr.bf16.mxu0 0
        %1446 = vmatpush1.bf16.xpose.msra.mxu0 0
        %1447 = vmatprep.mubr.bf16.mxu0 0
        %1448 = vmatmul.mubr.bf16.gmra.mrb[0].mxu0 %v1410
        %v1449 = vpop.f32.mrb[0].mxu0
        %v1450 = vadd.f32 %v1218, %v1449
        %v1451 = vpop.f32.mrb[0].mxu0
        %v1452 = vpop.f32.mrb[0].mxu0
        %v1453 = vadd.f32 %v1219, %v1452
        %v1454 = vpop.f32.mrb[0].mxu0
        %1455 = vdwg.mxu0
        %v1457 = vsel %vm1220, %v1008, 0
        %v1460 = vsel %vm1220, %v1104, 0
        %1462 = vmatprep.subr.bf16.mxu0 0
        %1463 = vmatpush1.bf16.xpose.msra.mxu0 %v1460
        %1464 = vmatprep.subr.bf16.mxu0 0
        %1465 = vmatpush1.bf16.xpose.msra.mxu0 0
        %1466 = vmatprep.subr.bf16.mxu0 0
        %1467 = vmatpush1.bf16.xpose.msra.mxu0 0
        %1468 = vmatprep.subr.bf16.mxu0 0
        %1469 = vmatpush1.bf16.xpose.msra.mxu0 0
        %1470 = vmatprep.subr.bf16.mxu0 0
        %1471 = vmatpush1.bf16.xpose.msra.mxu0 0
        %1472 = vmatprep.subr.bf16.mxu0 0
        %1473 = vmatpush1.bf16.xpose.msra.mxu0 0
        %1474 = vmatprep.subr.bf16.mxu0 0
        %1475 = vmatpush1.bf16.xpose.msra.mxu0 0
        %1476 = vmatprep.subr.bf16.mxu0 0
        %1477 = vmatpush1.bf16.xpose.msra.mxu0 0
        %1478 = vmatprep.subr.bf16.mxu0 0
        %1479 = vmatpush1.bf16.xpose.msra.mxu0 0
        %1480 = vmatprep.subr.bf16.mxu0 0
        %1481 = vmatpush1.bf16.xpose.msra.mxu0 0
        %1482 = vmatprep.subr.bf16.mxu0 0
        %1483 = vmatpush1.bf16.xpose.msra.mxu0 0
        %1484 = vmatprep.subr.bf16.mxu0 0
        %1485 = vmatpush1.bf16.xpose.msra.mxu0 0
        %1486 = vmatprep.subr.bf16.mxu0 0
        %1487 = vmatpush1.bf16.xpose.msra.mxu0 0
        %1488 = vmatprep.subr.bf16.mxu0 0
        %1489 = vmatpush1.bf16.xpose.msra.mxu0 0
        %1490 = vmatprep.subr.bf16.mxu0 0
        %1491 = vmatpush1.bf16.xpose.msra.mxu0 0
        %1492 = vmatprep.subr.bf16.mxu0 0
        %1493 = vmatpush1.bf16.xpose.msra.mxu0 0
        %1494 = vmatprep.mubr.bf16.mxu0 0
        %1495 = vmatmul.mubr.bf16.gmra.mrb[0].mxu0 %v1457
        %v1496 = vpop.f32.mrb[0].mxu0
        %v1497 = vadd.f32 %v1218, %v1496
        %v1498 = vpop.f32.mrb[0].mxu0
        %v1499 = vpop.f32.mrb[0].mxu0
        %v1500 = vadd.f32 %v1219, %v1499
        %v1501 = vpop.f32.mrb[0].mxu0
        %1502 = vdwg.mxu0
        %v1504 = vsel %vm1220, %v1009, 0
        %v1507 = vsel %vm1220, %v1105, 0
        %1509 = vmatprep.subr.bf16.mxu0 0
        %1510 = vmatpush1.bf16.xpose.msra.mxu0 %v1507
        %1511 = vmatprep.subr.bf16.mxu0 0
        %1512 = vmatpush1.bf16.xpose.msra.mxu0 0
        %1513 = vmatprep.subr.bf16.mxu0 0
        %1514 = vmatpush1.bf16.xpose.msra.mxu0 0
        %1515 = vmatprep.subr.bf16.mxu0 0
        %1516 = vmatpush1.bf16.xpose.msra.mxu0 0
        %1517 = vmatprep.subr.bf16.mxu0 0
        %1518 = vmatpush1.bf16.xpose.msra.mxu0 0
        %1519 = vmatprep.subr.bf16.mxu0 0
        %1520 = vmatpush1.bf16.xpose.msra.mxu0 0
        %1521 = vmatprep.subr.bf16.mxu0 0
        %1522 = vmatpush1.bf16.xpose.msra.mxu0 0
        %1523 = vmatprep.subr.bf16.mxu0 0
        %1524 = vmatpush1.bf16.xpose.msra.mxu0 0
        %1525 = vmatprep.subr.bf16.mxu0 0
        %1526 = vmatpush1.bf16.xpose.msra.mxu0 0
        %1527 = vmatprep.subr.bf16.mxu0 0
        %1528 = vmatpush1.bf16.xpose.msra.mxu0 0
        %1529 = vmatprep.subr.bf16.mxu0 0
        %1530 = vmatpush1.bf16.xpose.msra.mxu0 0
        %1531 = vmatprep.subr.bf16.mxu0 0
        %1532 = vmatpush1.bf16.xpose.msra.mxu0 0
        %1533 = vmatprep.subr.bf16.mxu0 0
        %1534 = vmatpush1.bf16.xpose.msra.mxu0 0
        %1535 = vmatprep.subr.bf16.mxu0 0
        %1536 = vmatpush1.bf16.xpose.msra.mxu0 0
        %1537 = vmatprep.subr.bf16.mxu0 0
        %1538 = vmatpush1.bf16.xpose.msra.mxu0 0
        %1539 = vmatprep.subr.bf16.mxu0 0
        %1540 = vmatpush1.bf16.xpose.msra.mxu0 0
        %1541 = vmatprep.mubr.bf16.mxu0 0
        %1542 = vmatmul.mubr.bf16.gmra.mrb[0].mxu0 %v1504
        %v1543 = vpop.f32.mrb[0].mxu0
        %v1544 = vadd.f32 %v1218, %v1543
        %v1545 = vpop.f32.mrb[0].mxu0
        %v1546 = vpop.f32.mrb[0].mxu0
        %v1547 = vadd.f32 %v1219, %v1546
        %v1548 = vpop.f32.mrb[0].mxu0
        %1549 = vdwg.mxu0
        %v1551 = vsel %vm1220, %v1010, 0
        %v1554 = vsel %vm1220, %v1106, 0
        %1556 = vmatprep.subr.bf16.mxu0 0
        %1557 = vmatpush1.bf16.xpose.msra.mxu0 %v1554
        %1558 = vmatprep.subr.bf16.mxu0 0
        %1559 = vmatpush1.bf16.xpose.msra.mxu0 0
        %1560 = vmatprep.subr.bf16.mxu0 0
        %1561 = vmatpush1.bf16.xpose.msra.mxu0 0
        %1562 = vmatprep.subr.bf16.mxu0 0
        %1563 = vmatpush1.bf16.xpose.msra.mxu0 0
        %1564 = vmatprep.subr.bf16.mxu0 0
        %1565 = vmatpush1.bf16.xpose.msra.mxu0 0
        %1566 = vmatprep.subr.bf16.mxu0 0
        %1567 = vmatpush1.bf16.xpose.msra.mxu0 0
        %1568 = vmatprep.subr.bf16.mxu0 0
        %1569 = vmatpush1.bf16.xpose.msra.mxu0 0
        %1570 = vmatprep.subr.bf16.mxu0 0
        %1571 = vmatpush1.bf16.xpose.msra.mxu0 0
        %1572 = vmatprep.subr.bf16.mxu0 0
        %1573 = vmatpush1.bf16.xpose.msra.mxu0 0
        %1574 = vmatprep.subr.bf16.mxu0 0
        %1575 = vmatpush1.bf16.xpose.msra.mxu0 0
        %1576 = vmatprep.subr.bf16.mxu0 0
        %1577 = vmatpush1.bf16.xpose.msra.mxu0 0
        %1578 = vmatprep.subr.bf16.mxu0 0
        %1579 = vmatpush1.bf16.xpose.msra.mxu0 0
        %1580 = vmatprep.subr.bf16.mxu0 0
        %1581 = vmatpush1.bf16.xpose.msra.mxu0 0
        %1582 = vmatprep.subr.bf16.mxu0 0
        %1583 = vmatpush1.bf16.xpose.msra.mxu0 0
        %1584 = vmatprep.subr.bf16.mxu0 0
        %1585 = vmatpush1.bf16.xpose.msra.mxu0 0
        %1586 = vmatprep.subr.bf16.mxu0 0
        %1587 = vmatpush1.bf16.xpose.msra.mxu0 0
        %1588 = vmatprep.mubr.bf16.mxu0 0
        %1589 = vmatmul.mubr.bf16.gmra.mrb[0].mxu0 %v1551
        %v1590 = vpop.f32.mrb[0].mxu0
        %v1591 = vadd.f32 %v1218, %v1590
        %v1592 = vpop.f32.mrb[0].mxu0
        %v1593 = vpop.f32.mrb[0].mxu0
        %v1594 = vadd.f32 %v1219, %v1593
        %v1595 = vpop.f32.mrb[0].mxu0
        %1596 = vdwg.mxu0
        %v1598 = vsel %vm1220, %v1011, 0
        %v1601 = vsel %vm1220, %v1107, 0
        %1603 = vmatprep.subr.bf16.mxu0 0
        %1604 = vmatpush1.bf16.xpose.msra.mxu0 %v1601
        %1605 = vmatprep.subr.bf16.mxu0 0
        %1606 = vmatpush1.bf16.xpose.msra.mxu0 0
        %1607 = vmatprep.subr.bf16.mxu0 0
        %1608 = vmatpush1.bf16.xpose.msra.mxu0 0
        %1609 = vmatprep.subr.bf16.mxu0 0
        %1610 = vmatpush1.bf16.xpose.msra.mxu0 0
        %1611 = vmatprep.subr.bf16.mxu0 0
        %1612 = vmatpush1.bf16.xpose.msra.mxu0 0
        %1613 = vmatprep.subr.bf16.mxu0 0
        %1614 = vmatpush1.bf16.xpose.msra.mxu0 0
        %1615 = vmatprep.subr.bf16.mxu0 0
        %1616 = vmatpush1.bf16.xpose.msra.mxu0 0
        %1617 = vmatprep.subr.bf16.mxu0 0
        %1618 = vmatpush1.bf16.xpose.msra.mxu0 0
        %1619 = vmatprep.subr.bf16.mxu0 0
        %1620 = vmatpush1.bf16.xpose.msra.mxu0 0
        %1621 = vmatprep.subr.bf16.mxu0 0
        %1622 = vmatpush1.bf16.xpose.msra.mxu0 0
        %1623 = vmatprep.subr.bf16.mxu0 0
        %1624 = vmatpush1.bf16.xpose.msra.mxu0 0
        %1625 = vmatprep.subr.bf16.mxu0 0
        %1626 = vmatpush1.bf16.xpose.msra.mxu0 0
        %1627 = vmatprep.subr.bf16.mxu0 0
        %1628 = vmatpush1.bf16.xpose.msra.mxu0 0
        %1629 = vmatprep.subr.bf16.mxu0 0
        %1630 = vmatpush1.bf16.xpose.msra.mxu0 0
        %1631 = vmatprep.subr.bf16.mxu0 0
        %1632 = vmatpush1.bf16.xpose.msra.mxu0 0
        %1633 = vmatprep.subr.bf16.mxu0 0
        %1634 = vmatpush1.bf16.xpose.msra.mxu0 0
        %1635 = vmatprep.mubr.bf16.mxu0 0
        %1636 = vmatmul.mubr.bf16.gmra.mrb[0].mxu0 %v1598
        %v1637 = vpop.f32.mrb[0].mxu0
        %v1638 = vadd.f32 %v1218, %v1637
        %v1639 = vpop.f32.mrb[0].mxu0
        %v1640 = vpop.f32.mrb[0].mxu0
        %v1641 = vadd.f32 %v1219, %v1640
        %v1642 = vpop.f32.mrb[0].mxu0
        %1643 = vdwg.mxu0
        %v1645 = vsel %vm1220, %v1012, 0
        %v1648 = vsel %vm1220, %v1108, 0
        %1650 = vmatprep.subr.bf16.mxu0 0
        %1651 = vmatpush1.bf16.xpose.msra.mxu0 %v1648
        %1652 = vmatprep.subr.bf16.mxu0 0
        %1653 = vmatpush1.bf16.xpose.msra.mxu0 0
        %1654 = vmatprep.subr.bf16.mxu0 0
        %1655 = vmatpush1.bf16.xpose.msra.mxu0 0
        %1656 = vmatprep.subr.bf16.mxu0 0
        %1657 = vmatpush1.bf16.xpose.msra.mxu0 0
        %1658 = vmatprep.subr.bf16.mxu0 0
        %1659 = vmatpush1.bf16.xpose.msra.mxu0 0
        %1660 = vmatprep.subr.bf16.mxu0 0
        %1661 = vmatpush1.bf16.xpose.msra.mxu0 0
        %1662 = vmatprep.subr.bf16.mxu0 0
        %1663 = vmatpush1.bf16.xpose.msra.mxu0 0
        %1664 = vmatprep.subr.bf16.mxu0 0
        %1665 = vmatpush1.bf16.xpose.msra.mxu0 0
        %1666 = vmatprep.subr.bf16.mxu0 0
        %1667 = vmatpush1.bf16.xpose.msra.mxu0 0
        %1668 = vmatprep.subr.bf16.mxu0 0
        %1669 = vmatpush1.bf16.xpose.msra.mxu0 0
        %1670 = vmatprep.subr.bf16.mxu0 0
        %1671 = vmatpush1.bf16.xpose.msra.mxu0 0
        %1672 = vmatprep.subr.bf16.mxu0 0
        %1673 = vmatpush1.bf16.xpose.msra.mxu0 0
        %1674 = vmatprep.subr.bf16.mxu0 0
        %1675 = vmatpush1.bf16.xpose.msra.mxu0 0
        %1676 = vmatprep.subr.bf16.mxu0 0
        %1677 = vmatpush1.bf16.xpose.msra.mxu0 0
        %1678 = vmatprep.subr.bf16.mxu0 0
        %1679 = vmatpush1.bf16.xpose.msra.mxu0 0
        %1680 = vmatprep.subr.bf16.mxu0 0
        %1681 = vmatpush1.bf16.xpose.msra.mxu0 0
        %1682 = vmatprep.mubr.bf16.mxu0 0
        %1683 = vmatmul.mubr.bf16.gmra.mrb[0].mxu0 %v1645
        %v1684 = vpop.f32.mrb[0].mxu0
        %v1685 = vadd.f32 %v1218, %v1684
        %v1686 = vpop.f32.mrb[0].mxu0
        %v1687 = vpop.f32.mrb[0].mxu0
        %v1688 = vadd.f32 %v1219, %v1687
        %v1689 = vpop.f32.mrb[0].mxu0
        %1690 = vdwg.mxu0
        %v1692 = vsel %vm1220, %v1013, 0
        %v1695 = vsel %vm1220, %v1109, 0
        %1697 = vmatprep.subr.bf16.mxu0 0
        %1698 = vmatpush1.bf16.xpose.msra.mxu0 %v1695
        %1699 = vmatprep.subr.bf16.mxu0 0
        %1700 = vmatpush1.bf16.xpose.msra.mxu0 0
        %1701 = vmatprep.subr.bf16.mxu0 0
        %1702 = vmatpush1.bf16.xpose.msra.mxu0 0
        %1703 = vmatprep.subr.bf16.mxu0 0
        %1704 = vmatpush1.bf16.xpose.msra.mxu0 0
        %1705 = vmatprep.subr.bf16.mxu0 0
        %1706 = vmatpush1.bf16.xpose.msra.mxu0 0
        %1707 = vmatprep.subr.bf16.mxu0 0
        %1708 = vmatpush1.bf16.xpose.msra.mxu0 0
        %1709 = vmatprep.subr.bf16.mxu0 0
        %1710 = vmatpush1.bf16.xpose.msra.mxu0 0
        %1711 = vmatprep.subr.bf16.mxu0 0
        %1712 = vmatpush1.bf16.xpose.msra.mxu0 0
        %1713 = vmatprep.subr.bf16.mxu0 0
        %1714 = vmatpush1.bf16.xpose.msra.mxu0 0
        %1715 = vmatprep.subr.bf16.mxu0 0
        %1716 = vmatpush1.bf16.xpose.msra.mxu0 0
        %1717 = vmatprep.subr.bf16.mxu0 0
        %1718 = vmatpush1.bf16.xpose.msra.mxu0 0
        %1719 = vmatprep.subr.bf16.mxu0 0
        %1720 = vmatpush1.bf16.xpose.msra.mxu0 0
        %1721 = vmatprep.subr.bf16.mxu0 0
        %1722 = vmatpush1.bf16.xpose.msra.mxu0 0
        %1723 = vmatprep.subr.bf16.mxu0 0
        %1724 = vmatpush1.bf16.xpose.msra.mxu0 0
        %1725 = vmatprep.subr.bf16.mxu0 0
        %1726 = vmatpush1.bf16.xpose.msra.mxu0 0
        %1727 = vmatprep.subr.bf16.mxu0 0
        %1728 = vmatpush1.bf16.xpose.msra.mxu0 0
        %1729 = vmatprep.mubr.bf16.mxu0 0
        %1730 = vmatmul.mubr.bf16.gmra.mrb[0].mxu0 %v1692
        %v1731 = vpop.f32.mrb[0].mxu0
        %v1732 = vadd.f32 %v1218, %v1731
        %v1733 = vpop.f32.mrb[0].mxu0
        %v1734 = vpop.f32.mrb[0].mxu0
        %v1735 = vadd.f32 %v1219, %v1734
        %v1736 = vpop.f32.mrb[0].mxu0
        %1737 = vdwg.mxu0
        %v1739 = vsel %vm1220, %v1014, 0
        %v1742 = vsel %vm1220, %v1110, 0
        %1744 = vmatprep.subr.bf16.mxu0 0
        %1745 = vmatpush1.bf16.xpose.msra.mxu0 %v1742
        %1746 = vmatprep.subr.bf16.mxu0 0
        %1747 = vmatpush1.bf16.xpose.msra.mxu0 0
        %1748 = vmatprep.subr.bf16.mxu0 0
        %1749 = vmatpush1.bf16.xpose.msra.mxu0 0
        %1750 = vmatprep.subr.bf16.mxu0 0
        %1751 = vmatpush1.bf16.xpose.msra.mxu0 0
        %1752 = vmatprep.subr.bf16.mxu0 0
        %1753 = vmatpush1.bf16.xpose.msra.mxu0 0
        %1754 = vmatprep.subr.bf16.mxu0 0
        %1755 = vmatpush1.bf16.xpose.msra.mxu0 0
        %1756 = vmatprep.subr.bf16.mxu0 0
        %1757 = vmatpush1.bf16.xpose.msra.mxu0 0
        %1758 = vmatprep.subr.bf16.mxu0 0
        %1759 = vmatpush1.bf16.xpose.msra.mxu0 0
        %1760 = vmatprep.subr.bf16.mxu0 0
        %1761 = vmatpush1.bf16.xpose.msra.mxu0 0
        %1762 = vmatprep.subr.bf16.mxu0 0
        %1763 = vmatpush1.bf16.xpose.msra.mxu0 0
        %1764 = vmatprep.subr.bf16.mxu0 0
        %1765 = vmatpush1.bf16.xpose.msra.mxu0 0
        %1766 = vmatprep.subr.bf16.mxu0 0
        %1767 = vmatpush1.bf16.xpose.msra.mxu0 0
        %1768 = vmatprep.subr.bf16.mxu0 0
        %1769 = vmatpush1.bf16.xpose.msra.mxu0 0
        %1770 = vmatprep.subr.bf16.mxu0 0
        %1771 = vmatpush1.bf16.xpose.msra.mxu0 0
        %1772 = vmatprep.subr.bf16.mxu0 0
        %1773 = vmatpush1.bf16.xpose.msra.mxu0 0
        %1774 = vmatprep.subr.bf16.mxu0 0
        %1775 = vmatpush1.bf16.xpose.msra.mxu0 0
        %1776 = vmatprep.mubr.bf16.mxu0 0
        %1777 = vmatmul.mubr.bf16.gmra.mrb[0].mxu0 %v1739
        %v1778 = vpop.f32.mrb[0].mxu0
        %v1779 = vadd.f32 %v1218, %v1778
        %v1780 = vpop.f32.mrb[0].mxu0
        %v1781 = vpop.f32.mrb[0].mxu0
        %v1782 = vadd.f32 %v1219, %v1781
        %v1783 = vpop.f32.mrb[0].mxu0
        %1784 = vdwg.mxu0
        %v1786 = vsel %vm1220, %v1015, 0
        %v1789 = vsel %vm1220, %v1111, 0
        %1791 = vmatprep.subr.bf16.mxu0 0
        %1792 = vmatpush1.bf16.xpose.msra.mxu0 %v1789
        %1793 = vmatprep.subr.bf16.mxu0 0
        %1794 = vmatpush1.bf16.xpose.msra.mxu0 0
        %1795 = vmatprep.subr.bf16.mxu0 0
        %1796 = vmatpush1.bf16.xpose.msra.mxu0 0
        %1797 = vmatprep.subr.bf16.mxu0 0
        %1798 = vmatpush1.bf16.xpose.msra.mxu0 0
        %1799 = vmatprep.subr.bf16.mxu0 0
        %1800 = vmatpush1.bf16.xpose.msra.mxu0 0
        %1801 = vmatprep.subr.bf16.mxu0 0
        %1802 = vmatpush1.bf16.xpose.msra.mxu0 0
        %1803 = vmatprep.subr.bf16.mxu0 0
        %1804 = vmatpush1.bf16.xpose.msra.mxu0 0
        %1805 = vmatprep.subr.bf16.mxu0 0
        %1806 = vmatpush1.bf16.xpose.msra.mxu0 0
        %1807 = vmatprep.subr.bf16.mxu0 0
        %1808 = vmatpush1.bf16.xpose.msra.mxu0 0
        %1809 = vmatprep.subr.bf16.mxu0 0
        %1810 = vmatpush1.bf16.xpose.msra.mxu0 0
        %1811 = vmatprep.subr.bf16.mxu0 0
        %1812 = vmatpush1.bf16.xpose.msra.mxu0 0
        %1813 = vmatprep.subr.bf16.mxu0 0
        %1814 = vmatpush1.bf16.xpose.msra.mxu0 0
        %1815 = vmatprep.subr.bf16.mxu0 0
        %1816 = vmatpush1.bf16.xpose.msra.mxu0 0
        %1817 = vmatprep.subr.bf16.mxu0 0
        %1818 = vmatpush1.bf16.xpose.msra.mxu0 0
        %1819 = vmatprep.subr.bf16.mxu0 0
        %1820 = vmatpush1.bf16.xpose.msra.mxu0 0
        %1821 = vmatprep.subr.bf16.mxu0 0
        %1822 = vmatpush1.bf16.xpose.msra.mxu0 0
        %1823 = vmatprep.mubr.bf16.mxu0 0
        %1824 = vmatmul.mubr.bf16.gmra.mrb[0].mxu0 %v1786
        %v1825 = vpop.f32.mrb[0].mxu0
        %v1826 = vadd.f32 %v1218, %v1825
        %v1827 = vpop.f32.mrb[0].mxu0
        %v1828 = vpop.f32.mrb[0].mxu0
        %v1829 = vadd.f32 %v1219, %v1828
        %v1830 = vpop.f32.mrb[0].mxu0
        %1831 = vdwg.mxu0
        %v1833 = vsel %vm1220, %v1016, 0
        %v1836 = vsel %vm1220, %v1112, 0
        %1838 = vmatprep.subr.bf16.mxu0 0
        %1839 = vmatpush1.bf16.xpose.msra.mxu0 %v1836
        %1840 = vmatprep.subr.bf16.mxu0 0
        %1841 = vmatpush1.bf16.xpose.msra.mxu0 0
        %1842 = vmatprep.subr.bf16.mxu0 0
        %1843 = vmatpush1.bf16.xpose.msra.mxu0 0
        %1844 = vmatprep.subr.bf16.mxu0 0
        %1845 = vmatpush1.bf16.xpose.msra.mxu0 0
        %1846 = vmatprep.subr.bf16.mxu0 0
        %1847 = vmatpush1.bf16.xpose.msra.mxu0 0
        %1848 = vmatprep.subr.bf16.mxu0 0
        %1849 = vmatpush1.bf16.xpose.msra.mxu0 0
        %1850 = vmatprep.subr.bf16.mxu0 0
        %1851 = vmatpush1.bf16.xpose.msra.mxu0 0
        %1852 = vmatprep.subr.bf16.mxu0 0
        %1853 = vmatpush1.bf16.xpose.msra.mxu0 0
        %1854 = vmatprep.subr.bf16.mxu0 0
        %1855 = vmatpush1.bf16.xpose.msra.mxu0 0
        %1856 = vmatprep.subr.bf16.mxu0 0
        %1857 = vmatpush1.bf16.xpose.msra.mxu0 0
        %1858 = vmatprep.subr.bf16.mxu0 0
        %1859 = vmatpush1.bf16.xpose.msra.mxu0 0
        %1860 = vmatprep.subr.bf16.mxu0 0
        %1861 = vmatpush1.bf16.xpose.msra.mxu0 0
        %1862 = vmatprep.subr.bf16.mxu0 0
        %1863 = vmatpush1.bf16.xpose.msra.mxu0 0
        %1864 = vmatprep.subr.bf16.mxu0 0
        %1865 = vmatpush1.bf16.xpose.msra.mxu0 0
        %1866 = vmatprep.subr.bf16.mxu0 0
        %1867 = vmatpush1.bf16.xpose.msra.mxu0 0
        %1868 = vmatprep.subr.bf16.mxu0 0
        %1869 = vmatpush1.bf16.xpose.msra.mxu0 0
        %1870 = vmatprep.mubr.bf16.mxu0 0
        %1871 = vmatmul.mubr.bf16.gmra.mrb[0].mxu0 %v1833
        %v1872 = vpop.f32.mrb[0].mxu0
        %v1873 = vadd.f32 %v1218, %v1872
        %v1874 = vpop.f32.mrb[0].mxu0
        %v1875 = vpop.f32.mrb[0].mxu0
        %v1876 = vadd.f32 %v1219, %v1875
        %v1877 = vpop.f32.mrb[0].mxu0
        %1878 = vdwg.mxu0
        %v1880 = vsel %vm1220, %v1017, 0
        %v1883 = vsel %vm1220, %v1113, 0
        %1885 = vmatprep.subr.bf16.mxu0 0
        %1886 = vmatpush1.bf16.xpose.msra.mxu0 %v1883
        %1887 = vmatprep.subr.bf16.mxu0 0
        %1888 = vmatpush1.bf16.xpose.msra.mxu0 0
        %1889 = vmatprep.subr.bf16.mxu0 0
        %1890 = vmatpush1.bf16.xpose.msra.mxu0 0
        %1891 = vmatprep.subr.bf16.mxu0 0
        %1892 = vmatpush1.bf16.xpose.msra.mxu0 0
        %1893 = vmatprep.subr.bf16.mxu0 0
        %1894 = vmatpush1.bf16.xpose.msra.mxu0 0
        %1895 = vmatprep.subr.bf16.mxu0 0
        %1896 = vmatpush1.bf16.xpose.msra.mxu0 0
        %1897 = vmatprep.subr.bf16.mxu0 0
        %1898 = vmatpush1.bf16.xpose.msra.mxu0 0
        %1899 = vmatprep.subr.bf16.mxu0 0
        %1900 = vmatpush1.bf16.xpose.msra.mxu0 0
        %1901 = vmatprep.subr.bf16.mxu0 0
        %1902 = vmatpush1.bf16.xpose.msra.mxu0 0
        %1903 = vmatprep.subr.bf16.mxu0 0
        %1904 = vmatpush1.bf16.xpose.msra.mxu0 0
        %1905 = vmatprep.subr.bf16.mxu0 0
        %1906 = vmatpush1.bf16.xpose.msra.mxu0 0
        %1907 = vmatprep.subr.bf16.mxu0 0
        %1908 = vmatpush1.bf16.xpose.msra.mxu0 0
        %1909 = vmatprep.subr.bf16.mxu0 0
        %1910 = vmatpush1.bf16.xpose.msra.mxu0 0
        %1911 = vmatprep.subr.bf16.mxu0 0
        %1912 = vmatpush1.bf16.xpose.msra.mxu0 0
        %1913 = vmatprep.subr.bf16.mxu0 0
        %1914 = vmatpush1.bf16.xpose.msra.mxu0 0
        %1915 = vmatprep.subr.bf16.mxu0 0
        %1916 = vmatpush1.bf16.xpose.msra.mxu0 0
        %1917 = vmatprep.mubr.bf16.mxu0 0
        %1918 = vmatmul.mubr.bf16.gmra.mrb[0].mxu0 %v1880
        %v1919 = vpop.f32.mrb[0].mxu0
        %v1920 = vadd.f32 %v1218, %v1919
        %v1921 = vpop.f32.mrb[0].mxu0
        %v1922 = vpop.f32.mrb[0].mxu0
        %v1923 = vadd.f32 %v1219, %v1922
        %v1924 = vpop.f32.mrb[0].mxu0
        %1925 = vdwg.mxu0
        %v1927 = vsel %vm1220, %v1018, 0
        %v1930 = vsel %vm1220, %v1114, 0
        %1932 = vmatprep.subr.bf16.mxu0 0
        %1933 = vmatpush1.bf16.xpose.msra.mxu0 %v1930
        %1934 = vmatprep.subr.bf16.mxu0 0
        %1935 = vmatpush1.bf16.xpose.msra.mxu0 0
        %1936 = vmatprep.subr.bf16.mxu0 0
        %1937 = vmatpush1.bf16.xpose.msra.mxu0 0
        %1938 = vmatprep.subr.bf16.mxu0 0
        %1939 = vmatpush1.bf16.xpose.msra.mxu0 0
        %1940 = vmatprep.subr.bf16.mxu0 0
        %1941 = vmatpush1.bf16.xpose.msra.mxu0 0
        %1942 = vmatprep.subr.bf16.mxu0 0
        %1943 = vmatpush1.bf16.xpose.msra.mxu0 0
        %1944 = vmatprep.subr.bf16.mxu0 0
        %1945 = vmatpush1.bf16.xpose.msra.mxu0 0
        %1946 = vmatprep.subr.bf16.mxu0 0
        %1947 = vmatpush1.bf16.xpose.msra.mxu0 0
        %1948 = vmatprep.subr.bf16.mxu0 0
        %1949 = vmatpush1.bf16.xpose.msra.mxu0 0
        %1950 = vmatprep.subr.bf16.mxu0 0
        %1951 = vmatpush1.bf16.xpose.msra.mxu0 0
        %1952 = vmatprep.subr.bf16.mxu0 0
        %1953 = vmatpush1.bf16.xpose.msra.mxu0 0
        %1954 = vmatprep.subr.bf16.mxu0 0
        %1955 = vmatpush1.bf16.xpose.msra.mxu0 0
        %1956 = vmatprep.subr.bf16.mxu0 0
        %1957 = vmatpush1.bf16.xpose.msra.mxu0 0
        %1958 = vmatprep.subr.bf16.mxu0 0
        %1959 = vmatpush1.bf16.xpose.msra.mxu0 0
        %1960 = vmatprep.subr.bf16.mxu0 0
        %1961 = vmatpush1.bf16.xpose.msra.mxu0 0
        %1962 = vmatprep.subr.bf16.mxu0 0
        %1963 = vmatpush1.bf16.xpose.msra.mxu0 0
        %1964 = vmatprep.mubr.bf16.mxu0 0
        %1965 = vmatmul.mubr.bf16.gmra.mrb[0].mxu0 %v1927
        %v1966 = vpop.f32.mrb[0].mxu0
        %v1967 = vadd.f32 %v1218, %v1966
        %v1968 = vpop.f32.mrb[0].mxu0
        %v1969 = vpop.f32.mrb[0].mxu0
        %v1970 = vadd.f32 %v1219, %v1969
        %v1971 = vpop.f32.mrb[0].mxu0
        %1972 = vdwg.mxu0
        %vm1973 = vcmask 130048
        %v1974 = vsel %vm1973, %v1262, -inf
        %1975 = vmax.xlane.f32.xlu0 %v1974
        %v1976 = vpop.xlane.xlu0 %1975
        %v1977 = vsel %vm1973, %v1265, -inf
        %1978 = vmax.xlane.f32.xlu0 %v1977
        %v1979 = vpop.xlane.xlu0 %1978
        %v1980 = vsel %vm1973, %v1309, -inf
        %1981 = vmax.xlane.f32.xlu0 %v1980
        %v1982 = vpop.xlane.xlu0 %1981
        %v1983 = vsel %vm1973, %v1312, -inf
        %1984 = vmax.xlane.f32.xlu0 %v1983
        %v1985 = vpop.xlane.xlu0 %1984
        %v1986 = vsel %vm1973, %v1356, -inf
        %1987 = vmax.xlane.f32.xlu0 %v1986
        %v1988 = vpop.xlane.xlu0 %1987
        %v1989 = vsel %vm1973, %v1359, -inf
        %1990 = vmax.xlane.f32.xlu0 %v1989
        %v1991 = vpop.xlane.xlu0 %1990
        %v1992 = vsel %vm1973, %v1403, -inf
        %1993 = vmax.xlane.f32.xlu0 %v1992
        %v1994 = vpop.xlane.xlu0 %1993
        %v1995 = vsel %vm1973, %v1406, -inf
        %1996 = vmax.xlane.f32.xlu0 %v1995
        %v1997 = vpop.xlane.xlu0 %1996
        %v1998 = vsel %vm1973, %v1450, -inf
        %1999 = vmax.xlane.f32.xlu0 %v1998
        %v2000 = vpop.xlane.xlu0 %1999
        %v2001 = vsel %vm1973, %v1453, -inf
        %2002 = vmax.xlane.f32.xlu0 %v2001
        %v2003 = vpop.xlane.xlu0 %2002
        %v2004 = vsel %vm1973, %v1497, -inf
        %2005 = vmax.xlane.f32.xlu0 %v2004
        %v2006 = vpop.xlane.xlu0 %2005
        %v2007 = vsel %vm1973, %v1500, -inf
        %2008 = vmax.xlane.f32.xlu0 %v2007
        %v2009 = vpop.xlane.xlu0 %2008
        %v2010 = vsel %vm1973, %v1544, -inf
        %2011 = vmax.xlane.f32.xlu0 %v2010
        %v2012 = vpop.xlane.xlu0 %2011
        %v2013 = vsel %vm1973, %v1547, -inf
        %2014 = vmax.xlane.f32.xlu0 %v2013
        %v2015 = vpop.xlane.xlu0 %2014
        %v2016 = vsel %vm1973, %v1591, -inf
        %2017 = vmax.xlane.f32.xlu0 %v2016
        %v2018 = vpop.xlane.xlu0 %2017
        %v2019 = vsel %vm1973, %v1594, -inf
        %2020 = vmax.xlane.f32.xlu0 %v2019
        %v2021 = vpop.xlane.xlu0 %2020
        %v2022 = vsel %vm1973, %v1638, -inf
        %2023 = vmax.xlane.f32.xlu0 %v2022
        %v2024 = vpop.xlane.xlu0 %2023
        %v2025 = vsel %vm1973, %v1641, -inf
        %2026 = vmax.xlane.f32.xlu0 %v2025
        %v2027 = vpop.xlane.xlu0 %2026
        %v2028 = vsel %vm1973, %v1685, -inf
        %2029 = vmax.xlane.f32.xlu0 %v2028
        %v2030 = vpop.xlane.xlu0 %2029
        %v2031 = vsel %vm1973, %v1688, -inf
        %2032 = vmax.xlane.f32.xlu0 %v2031
        %v2033 = vpop.xlane.xlu0 %2032
        %v2034 = vsel %vm1973, %v1732, -inf
        %2035 = vmax.xlane.f32.xlu0 %v2034
        %v2036 = vpop.xlane.xlu0 %2035
        %v2037 = vsel %vm1973, %v1735, -inf
        %2038 = vmax.xlane.f32.xlu0 %v2037
        %v2039 = vpop.xlane.xlu0 %2038
        %v2040 = vsel %vm1973, %v1779, -inf
        %2041 = vmax.xlane.f32.xlu0 %v2040
        %v2042 = vpop.xlane.xlu0 %2041
        %v2043 = vsel %vm1973, %v1782, -inf
        %2044 = vmax.xlane.f32.xlu0 %v2043
        %v2045 = vpop.xlane.xlu0 %2044
        %v2046 = vsel %vm1973, %v1826, -inf
        %2047 = vmax.xlane.f32.xlu0 %v2046
        %v2048 = vpop.xlane.xlu0 %2047
        %v2049 = vsel %vm1973, %v1829, -inf
        %2050 = vmax.xlane.f32.xlu0 %v2049
        %v2051 = vpop.xlane.xlu0 %2050
        %v2052 = vsel %vm1973, %v1873, -inf
        %2053 = vmax.xlane.f32.xlu0 %v2052
        %v2054 = vpop.xlane.xlu0 %2053
        %v2055 = vsel %vm1973, %v1876, -inf
        %2056 = vmax.xlane.f32.xlu0 %v2055
        %v2057 = vpop.xlane.xlu0 %2056
        %v2058 = vsel %vm1973, %v1920, -inf
        %2059 = vmax.xlane.f32.xlu0 %v2058
        %v2060 = vpop.xlane.xlu0 %2059
        %v2061 = vsel %vm1973, %v1923, -inf
        %2062 = vmax.xlane.f32.xlu0 %v2061
        %v2063 = vpop.xlane.xlu0 %2062
        %v2064 = vsel %vm1973, %v1967, -inf
        %2065 = vmax.xlane.f32.xlu0 %v2064
        %v2066 = vpop.xlane.xlu0 %2065
        %v2067 = vsel %vm1973, %v1970, -inf
        %2068 = vmax.xlane.f32.xlu0 %v2067
        %v2069 = vpop.xlane.xlu0 %2068
        %v2070 = vsub.f32 %v1262, %v1976
        %v2071 = vsub.f32 %v1265, %v1979
        %v2072 = vsub.f32 %v1309, %v1982
        %v2073 = vsub.f32 %v1312, %v1985
        %v2074 = vsub.f32 %v1356, %v1988
        %v2075 = vsub.f32 %v1359, %v1991
        %v2076 = vsub.f32 %v1403, %v1994
        %v2077 = vsub.f32 %v1406, %v1997
        %v2078 = vsub.f32 %v1450, %v2000
        %v2079 = vsub.f32 %v1453, %v2003
        %v2080 = vsub.f32 %v1497, %v2006
        %v2081 = vsub.f32 %v1500, %v2009
        %v2082 = vsub.f32 %v1544, %v2012
        %v2083 = vsub.f32 %v1547, %v2015
        %v2084 = vsub.f32 %v1591, %v2018
        %v2085 = vsub.f32 %v1594, %v2021
        %v2086 = vsub.f32 %v1638, %v2024
        %v2087 = vsub.f32 %v1641, %v2027
        %v2088 = vsub.f32 %v1685, %v2030
        %v2089 = vsub.f32 %v1688, %v2033
        %v2090 = vsub.f32 %v1732, %v2036
        %v2091 = vsub.f32 %v1735, %v2039
        %v2092 = vsub.f32 %v1779, %v2042
        %v2093 = vsub.f32 %v1782, %v2045
        %v2094 = vsub.f32 %v1826, %v2048
        %v2095 = vsub.f32 %v1829, %v2051
        %v2096 = vsub.f32 %v1873, %v2054
        %v2097 = vsub.f32 %v1876, %v2057
        %v2098 = vsub.f32 %v1920, %v2060
        %v2099 = vsub.f32 %v1923, %v2063
        %v2100 = vsub.f32 %v1967, %v2066
        %v2101 = vsub.f32 %v1970, %v2069
        %v2102 = vmul.f32 %v2070, 1.442695
        %v2103 = vpow.pop %v2102
        %v2104 = vmul.f32 %v2071, 1.442695
        %v2105 = vpow.pop %v2104
        %v2106 = vmul.f32 %v2072, 1.442695
        %v2107 = vpow.pop %v2106
        %v2108 = vmul.f32 %v2073, 1.442695
        %v2109 = vpow.pop %v2108
        %v2110 = vmul.f32 %v2074, 1.442695
        %v2111 = vpow.pop %v2110
        %v2112 = vmul.f32 %v2075, 1.442695
        %v2113 = vpow.pop %v2112
        %v2114 = vmul.f32 %v2076, 1.442695
        %v2115 = vpow.pop %v2114
        %v2116 = vmul.f32 %v2077, 1.442695
        %v2117 = vpow.pop %v2116
        %v2118 = vmul.f32 %v2078, 1.442695
        %v2119 = vpow.pop %v2118
        %v2120 = vmul.f32 %v2079, 1.442695
        %v2121 = vpow.pop %v2120
        %v2122 = vmul.f32 %v2080, 1.442695
        %v2123 = vpow.pop %v2122
        %v2124 = vmul.f32 %v2081, 1.442695
        %v2125 = vpow.pop %v2124
        %v2126 = vmul.f32 %v2082, 1.442695
        %v2127 = vpow.pop %v2126
        %v2128 = vmul.f32 %v2083, 1.442695
        %v2129 = vpow.pop %v2128
        %v2130 = vmul.f32 %v2084, 1.442695
        %v2131 = vpow.pop %v2130
        %v2132 = vmul.f32 %v2085, 1.442695
        %v2133 = vpow.pop %v2132
        %v2134 = vmul.f32 %v2086, 1.442695
        %v2135 = vpow.pop %v2134
        %v2136 = vmul.f32 %v2087, 1.442695
        %v2137 = vpow.pop %v2136
        %v2138 = vmul.f32 %v2088, 1.442695
        %v2139 = vpow.pop %v2138
        %v2140 = vmul.f32 %v2089, 1.442695
        %v2141 = vpow.pop %v2140
        %v2142 = vmul.f32 %v2090, 1.442695
        %v2143 = vpow.pop %v2142
        %v2144 = vmul.f32 %v2091, 1.442695
        %v2145 = vpow.pop %v2144
        %v2146 = vmul.f32 %v2092, 1.442695
        %v2147 = vpow.pop %v2146
        %v2148 = vmul.f32 %v2093, 1.442695
        %v2149 = vpow.pop %v2148
        %v2150 = vmul.f32 %v2094, 1.442695
        %v2151 = vpow.pop %v2150
        %v2152 = vmul.f32 %v2095, 1.442695
        %v2153 = vpow.pop %v2152
        %v2154 = vmul.f32 %v2096, 1.442695
        %v2155 = vpow.pop %v2154
        %v2156 = vmul.f32 %v2097, 1.442695
        %v2157 = vpow.pop %v2156
        %v2158 = vmul.f32 %v2098, 1.442695
        %v2159 = vpow.pop %v2158
        %v2160 = vmul.f32 %v2099, 1.442695
        %v2161 = vpow.pop %v2160
        %v2162 = vmul.f32 %v2100, 1.442695
        %v2163 = vpow.pop %v2162
        %v2164 = vmul.f32 %v2101, 1.442695
        %v2165 = vpow.pop %v2164
        %v2166 = vsel %vm1973, %v2103, 0.0
        %2167 = vadd.xlane.f32.xlu0 %v2166
        %v2168 = vpop.xlane.xlu0 %2167
        %v2169 = vsel %vm1973, %v2105, 0.0
        %2170 = vadd.xlane.f32.xlu0 %v2169
        %v2171 = vpop.xlane.xlu0 %2170
        %v2172 = vsel %vm1973, %v2107, 0.0
        %2173 = vadd.xlane.f32.xlu0 %v2172
        %v2174 = vpop.xlane.xlu0 %2173
        %v2175 = vsel %vm1973, %v2109, 0.0
        %2176 = vadd.xlane.f32.xlu0 %v2175
        %v2177 = vpop.xlane.xlu0 %2176
        %v2178 = vsel %vm1973, %v2111, 0.0
        %2179 = vadd.xlane.f32.xlu0 %v2178
        %v2180 = vpop.xlane.xlu0 %2179
        %v2181 = vsel %vm1973, %v2113, 0.0
        %2182 = vadd.xlane.f32.xlu0 %v2181
        %v2183 = vpop.xlane.xlu0 %2182
        %v2184 = vsel %vm1973, %v2115, 0.0
        %2185 = vadd.xlane.f32.xlu0 %v2184
        %v2186 = vpop.xlane.xlu0 %2185
        %v2187 = vsel %vm1973, %v2117, 0.0
        %2188 = vadd.xlane.f32.xlu0 %v2187
        %v2189 = vpop.xlane.xlu0 %2188
        %v2190 = vsel %vm1973, %v2119, 0.0
        %2191 = vadd.xlane.f32.xlu0 %v2190
        %v2192 = vpop.xlane.xlu0 %2191
        %v2193 = vsel %vm1973, %v2121, 0.0
        %2194 = vadd.xlane.f32.xlu0 %v2193
        %v2195 = vpop.xlane.xlu0 %2194
        %v2196 = vsel %vm1973, %v2123, 0.0
        %2197 = vadd.xlane.f32.xlu0 %v2196
        %v2198 = vpop.xlane.xlu0 %2197
        %v2199 = vsel %vm1973, %v2125, 0.0
        %2200 = vadd.xlane.f32.xlu0 %v2199
        %v2201 = vpop.xlane.xlu0 %2200
        %v2202 = vsel %vm1973, %v2127, 0.0
        %2203 = vadd.xlane.f32.xlu0 %v2202
        %v2204 = vpop.xlane.xlu0 %2203
        %v2205 = vsel %vm1973, %v2129, 0.0
        %2206 = vadd.xlane.f32.xlu0 %v2205
        %v2207 = vpop.xlane.xlu0 %2206
        %v2208 = vsel %vm1973, %v2131, 0.0
        %2209 = vadd.xlane.f32.xlu0 %v2208
        %v2210 = vpop.xlane.xlu0 %2209
        %v2211 = vsel %vm1973, %v2133, 0.0
        %2212 = vadd.xlane.f32.xlu0 %v2211
        %v2213 = vpop.xlane.xlu0 %2212
        %v2214 = vsel %vm1973, %v2135, 0.0
        %2215 = vadd.xlane.f32.xlu0 %v2214
        %v2216 = vpop.xlane.xlu0 %2215
        %v2217 = vsel %vm1973, %v2137, 0.0
        %2218 = vadd.xlane.f32.xlu0 %v2217
        %v2219 = vpop.xlane.xlu0 %2218
        %v2220 = vsel %vm1973, %v2139, 0.0
        %2221 = vadd.xlane.f32.xlu0 %v2220
        %v2222 = vpop.xlane.xlu0 %2221
        %v2223 = vsel %vm1973, %v2141, 0.0
        %2224 = vadd.xlane.f32.xlu0 %v2223
        %v2225 = vpop.xlane.xlu0 %2224
        %v2226 = vsel %vm1973, %v2143, 0.0
        %2227 = vadd.xlane.f32.xlu0 %v2226
        %v2228 = vpop.xlane.xlu0 %2227
        %v2229 = vsel %vm1973, %v2145, 0.0
        %2230 = vadd.xlane.f32.xlu0 %v2229
        %v2231 = vpop.xlane.xlu0 %2230
        %v2232 = vsel %vm1973, %v2147, 0.0
        %2233 = vadd.xlane.f32.xlu0 %v2232
        %v2234 = vpop.xlane.xlu0 %2233
        %v2235 = vsel %vm1973, %v2149, 0.0
        %2236 = vadd.xlane.f32.xlu0 %v2235
        %v2237 = vpop.xlane.xlu0 %2236
        %v2238 = vsel %vm1973, %v2151, 0.0
        %2239 = vadd.xlane.f32.xlu0 %v2238
        %v2240 = vpop.xlane.xlu0 %2239
        %v2241 = vsel %vm1973, %v2153, 0.0
        %2242 = vadd.xlane.f32.xlu0 %v2241
        %v2243 = vpop.xlane.xlu0 %2242
        %v2244 = vsel %vm1973, %v2155, 0.0
        %2245 = vadd.xlane.f32.xlu0 %v2244
        %v2246 = vpop.xlane.xlu0 %2245
        %v2247 = vsel %vm1973, %v2157, 0.0
        %2248 = vadd.xlane.f32.xlu0 %v2247
        %v2249 = vpop.xlane.xlu0 %2248
        %v2250 = vsel %vm1973, %v2159, 0.0
        %2251 = vadd.xlane.f32.xlu0 %v2250
        %v2252 = vpop.xlane.xlu0 %2251
        %v2253 = vsel %vm1973, %v2161, 0.0
        %2254 = vadd.xlane.f32.xlu0 %v2253
        %v2255 = vpop.xlane.xlu0 %2254
        %v2256 = vsel %vm1973, %v2163, 0.0
        %2257 = vadd.xlane.f32.xlu0 %v2256
        %v2258 = vpop.xlane.xlu0 %2257
        %v2259 = vsel %vm1973, %v2165, 0.0
        %2260 = vadd.xlane.f32.xlu0 %v2259
        %v2261 = vpop.xlane.xlu0 %2260
        %v2262 = vrcp.pop %v2168
        %v2263 = vrcp.pop %v2171
        %v2264 = vrcp.pop %v2174
        %v2265 = vrcp.pop %v2177
        %v2266 = vrcp.pop %v2180
        %v2267 = vrcp.pop %v2183
        %v2268 = vrcp.pop %v2186
        %v2269 = vrcp.pop %v2189
        %v2270 = vrcp.pop %v2192
        %v2271 = vrcp.pop %v2195
        %v2272 = vrcp.pop %v2198
        %v2273 = vrcp.pop %v2201
        %v2274 = vrcp.pop %v2204
        %v2275 = vrcp.pop %v2207
        %v2276 = vrcp.pop %v2210
        %v2277 = vrcp.pop %v2213
        %v2278 = vrcp.pop %v2216
        %v2279 = vrcp.pop %v2219
        %v2280 = vrcp.pop %v2222
        %v2281 = vrcp.pop %v2225
        %v2282 = vrcp.pop %v2228
        %v2283 = vrcp.pop %v2231
        %v2284 = vrcp.pop %v2234
        %v2285 = vrcp.pop %v2237
        %v2286 = vrcp.pop %v2240
        %v2287 = vrcp.pop %v2243
        %v2288 = vrcp.pop %v2246
        %v2289 = vrcp.pop %v2249
        %v2290 = vrcp.pop %v2252
        %v2291 = vrcp.pop %v2255
        %v2292 = vrcp.pop %v2258
        %v2293 = vrcp.pop %v2261
        %v2294 = vmul.f32 %v2103, %v2262
        %v2295 = vmul.f32 %v2105, %v2263
        %v2296 = vmul.f32 %v2107, %v2264
        %v2297 = vmul.f32 %v2109, %v2265
        %v2298 = vmul.f32 %v2111, %v2266
        %v2299 = vmul.f32 %v2113, %v2267
        %v2300 = vmul.f32 %v2115, %v2268
        %v2301 = vmul.f32 %v2117, %v2269
        %v2302 = vmul.f32 %v2119, %v2270
        %v2303 = vmul.f32 %v2121, %v2271
        %v2304 = vmul.f32 %v2123, %v2272
        %v2305 = vmul.f32 %v2125, %v2273
        %v2306 = vmul.f32 %v2127, %v2274
        %v2307 = vmul.f32 %v2129, %v2275
        %v2308 = vmul.f32 %v2131, %v2276
        %v2309 = vmul.f32 %v2133, %v2277
        %v2310 = vmul.f32 %v2135, %v2278
        %v2311 = vmul.f32 %v2137, %v2279
        %v2312 = vmul.f32 %v2139, %v2280
        %v2313 = vmul.f32 %v2141, %v2281
        %v2314 = vmul.f32 %v2143, %v2282
        %v2315 = vmul.f32 %v2145, %v2283
        %v2316 = vmul.f32 %v2147, %v2284
        %v2317 = vmul.f32 %v2149, %v2285
        %v2318 = vmul.f32 %v2151, %v2286
        %v2319 = vmul.f32 %v2153, %v2287
        %v2320 = vmul.f32 %v2155, %v2288
        %v2321 = vmul.f32 %v2157, %v2289
        %v2322 = vmul.f32 %v2159, %v2290
        %v2323 = vmul.f32 %v2161, %v2291
        %v2324 = vmul.f32 %v2163, %v2292
        %v2325 = vmul.f32 %v2165, %v2293
        %v2326 = vpack.c.bf16 %v2295, %v2294
        %v2327 = vpack.c.bf16 %v2297, %v2296
        %v2328 = vpack.c.bf16 %v2299, %v2298
        %v2329 = vpack.c.bf16 %v2301, %v2300
        %v2330 = vpack.c.bf16 %v2303, %v2302
        %v2331 = vpack.c.bf16 %v2305, %v2304
        %v2332 = vpack.c.bf16 %v2307, %v2306
        %v2333 = vpack.c.bf16 %v2309, %v2308
        %v2334 = vpack.c.bf16 %v2311, %v2310
        %v2335 = vpack.c.bf16 %v2313, %v2312
        %v2336 = vpack.c.bf16 %v2315, %v2314
        %v2337 = vpack.c.bf16 %v2317, %v2316
        %v2338 = vpack.c.bf16 %v2319, %v2318
        %v2339 = vpack.c.bf16 %v2321, %v2320
        %v2340 = vpack.c.bf16 %v2323, %v2322
        %v2341 = vpack.c.bf16 %v2325, %v2324
        %v2343 = vsel %vm1973, %v2326, 0
        %2345 = vmatprep.subr.bf16.mxu0 0
        %2346 = vmatpush1.bf16.msra.mxu0 %v1195
        %2347 = vmatprep.subr.bf16.mxu0 0
        %2348 = vmatpush1.bf16.msra.mxu0 0
        %2349 = vmatprep.subr.bf16.mxu0 0
        %2350 = vmatpush1.bf16.msra.mxu0 0
        %2351 = vmatprep.subr.bf16.mxu0 0
        %2352 = vmatpush1.bf16.msra.mxu0 0
        %2353 = vmatprep.subr.bf16.mxu0 0
        %2354 = vmatpush1.bf16.msra.mxu0 0
        %2355 = vmatprep.subr.bf16.mxu0 0
        %2356 = vmatpush1.bf16.msra.mxu0 0
        %2357 = vmatprep.subr.bf16.mxu0 0
        %2358 = vmatpush1.bf16.msra.mxu0 0
        %2359 = vmatprep.subr.bf16.mxu0 0
        %2360 = vmatpush1.bf16.msra.mxu0 0
        %2361 = vmatprep.subr.bf16.mxu0 0
        %2362 = vmatpush1.bf16.msra.mxu0 0
        %2363 = vmatprep.subr.bf16.mxu0 0
        %2364 = vmatpush1.bf16.msra.mxu0 0
        %2365 = vmatprep.subr.bf16.mxu0 0
        %2366 = vmatpush1.bf16.msra.mxu0 0
        %2367 = vmatprep.subr.bf16.mxu0 0
        %2368 = vmatpush1.bf16.msra.mxu0 0
        %2369 = vmatprep.subr.bf16.mxu0 0
        %2370 = vmatpush1.bf16.msra.mxu0 0
        %2371 = vmatprep.subr.bf16.mxu0 0
        %2372 = vmatpush1.bf16.msra.mxu0 0
        %2373 = vmatprep.subr.bf16.mxu0 0
        %2374 = vmatpush1.bf16.msra.mxu0 0
        %2375 = vmatprep.subr.bf16.mxu0 0
        %2376 = vmatpush1.bf16.msra.mxu0 0
        %2377 = vmatprep.mubr.bf16.mxu0 0
        %2378 = vmatmul.mubr.bf16.gmra.mrb[0].mxu0 %v2343
        %v2379 = vpop.f32.mrb[0].mxu0
        %v2380 = vadd.f32 0.0, %v2379
        %v2381 = vpop.f32.mrb[0].mxu0
        %v2382 = vpop.f32.mrb[0].mxu0
        %v2383 = vadd.f32 0.0, %v2382
        %v2384 = vpop.f32.mrb[0].mxu0
        %2385 = vdwg.mxu0
        %v2387 = vsel %vm1973, %v2327, 0
        %2389 = vmatprep.subr.bf16.mxu0 0
        %2390 = vmatpush1.bf16.msra.mxu0 %v1196
        %2391 = vmatprep.subr.bf16.mxu0 0
        %2392 = vmatpush1.bf16.msra.mxu0 0
        %2393 = vmatprep.subr.bf16.mxu0 0
        %2394 = vmatpush1.bf16.msra.mxu0 0
        %2395 = vmatprep.subr.bf16.mxu0 0
        %2396 = vmatpush1.bf16.msra.mxu0 0
        %2397 = vmatprep.subr.bf16.mxu0 0
        %2398 = vmatpush1.bf16.msra.mxu0 0
        %2399 = vmatprep.subr.bf16.mxu0 0
        %2400 = vmatpush1.bf16.msra.mxu0 0
        %2401 = vmatprep.subr.bf16.mxu0 0
        %2402 = vmatpush1.bf16.msra.mxu0 0
        %2403 = vmatprep.subr.bf16.mxu0 0
        %2404 = vmatpush1.bf16.msra.mxu0 0
        %2405 = vmatprep.subr.bf16.mxu0 0
        %2406 = vmatpush1.bf16.msra.mxu0 0
        %2407 = vmatprep.subr.bf16.mxu0 0
        %2408 = vmatpush1.bf16.msra.mxu0 0
        %2409 = vmatprep.subr.bf16.mxu0 0
        %2410 = vmatpush1.bf16.msra.mxu0 0
        %2411 = vmatprep.subr.bf16.mxu0 0
        %2412 = vmatpush1.bf16.msra.mxu0 0
        %2413 = vmatprep.subr.bf16.mxu0 0
        %2414 = vmatpush1.bf16.msra.mxu0 0
        %2415 = vmatprep.subr.bf16.mxu0 0
        %2416 = vmatpush1.bf16.msra.mxu0 0
        %2417 = vmatprep.subr.bf16.mxu0 0
        %2418 = vmatpush1.bf16.msra.mxu0 0
        %2419 = vmatprep.subr.bf16.mxu0 0
        %2420 = vmatpush1.bf16.msra.mxu0 0
        %2421 = vmatprep.mubr.bf16.mxu0 0
        %2422 = vmatmul.mubr.bf16.gmra.mrb[0].mxu0 %v2387
        %v2423 = vpop.f32.mrb[0].mxu0
        %v2424 = vadd.f32 0.0, %v2423
        %v2425 = vpop.f32.mrb[0].mxu0
        %v2426 = vpop.f32.mrb[0].mxu0
        %v2427 = vadd.f32 0.0, %v2426
        %v2428 = vpop.f32.mrb[0].mxu0
        %2429 = vdwg.mxu0
        %v2431 = vsel %vm1973, %v2328, 0
        %2433 = vmatprep.subr.bf16.mxu0 0
        %2434 = vmatpush1.bf16.msra.mxu0 %v1197
        %2435 = vmatprep.subr.bf16.mxu0 0
        %2436 = vmatpush1.bf16.msra.mxu0 0
        %2437 = vmatprep.subr.bf16.mxu0 0
        %2438 = vmatpush1.bf16.msra.mxu0 0
        %2439 = vmatprep.subr.bf16.mxu0 0
        %2440 = vmatpush1.bf16.msra.mxu0 0
        %2441 = vmatprep.subr.bf16.mxu0 0
        %2442 = vmatpush1.bf16.msra.mxu0 0
        %2443 = vmatprep.subr.bf16.mxu0 0
        %2444 = vmatpush1.bf16.msra.mxu0 0
        %2445 = vmatprep.subr.bf16.mxu0 0
        %2446 = vmatpush1.bf16.msra.mxu0 0
        %2447 = vmatprep.subr.bf16.mxu0 0
        %2448 = vmatpush1.bf16.msra.mxu0 0
        %2449 = vmatprep.subr.bf16.mxu0 0
        %2450 = vmatpush1.bf16.msra.mxu0 0
        %2451 = vmatprep.subr.bf16.mxu0 0
        %2452 = vmatpush1.bf16.msra.mxu0 0
        %2453 = vmatprep.subr.bf16.mxu0 0
        %2454 = vmatpush1.bf16.msra.mxu0 0
        %2455 = vmatprep.subr.bf16.mxu0 0
        %2456 = vmatpush1.bf16.msra.mxu0 0
        %2457 = vmatprep.subr.bf16.mxu0 0
        %2458 = vmatpush1.bf16.msra.mxu0 0
        %2459 = vmatprep.subr.bf16.mxu0 0
        %2460 = vmatpush1.bf16.msra.mxu0 0
        %2461 = vmatprep.subr.bf16.mxu0 0
        %2462 = vmatpush1.bf16.msra.mxu0 0
        %2463 = vmatprep.subr.bf16.mxu0 0
        %2464 = vmatpush1.bf16.msra.mxu0 0
        %2465 = vmatprep.mubr.bf16.mxu0 0
        %2466 = vmatmul.mubr.bf16.gmra.mrb[0].mxu0 %v2431
        %v2467 = vpop.f32.mrb[0].mxu0
        %v2468 = vadd.f32 0.0, %v2467
        %v2469 = vpop.f32.mrb[0].mxu0
        %v2470 = vpop.f32.mrb[0].mxu0
        %v2471 = vadd.f32 0.0, %v2470
        %v2472 = vpop.f32.mrb[0].mxu0
        %2473 = vdwg.mxu0
        %v2475 = vsel %vm1973, %v2329, 0
        %2477 = vmatprep.subr.bf16.mxu0 0
        %2478 = vmatpush1.bf16.msra.mxu0 %v1198
        %2479 = vmatprep.subr.bf16.mxu0 0
        %2480 = vmatpush1.bf16.msra.mxu0 0
        %2481 = vmatprep.subr.bf16.mxu0 0
        %2482 = vmatpush1.bf16.msra.mxu0 0
        %2483 = vmatprep.subr.bf16.mxu0 0
        %2484 = vmatpush1.bf16.msra.mxu0 0
        %2485 = vmatprep.subr.bf16.mxu0 0
        %2486 = vmatpush1.bf16.msra.mxu0 0
        %2487 = vmatprep.subr.bf16.mxu0 0
        %2488 = vmatpush1.bf16.msra.mxu0 0
        %2489 = vmatprep.subr.bf16.mxu0 0
        %2490 = vmatpush1.bf16.msra.mxu0 0
        %2491 = vmatprep.subr.bf16.mxu0 0
        %2492 = vmatpush1.bf16.msra.mxu0 0
        %2493 = vmatprep.subr.bf16.mxu0 0
        %2494 = vmatpush1.bf16.msra.mxu0 0
        %2495 = vmatprep.subr.bf16.mxu0 0
        %2496 = vmatpush1.bf16.msra.mxu0 0
        %2497 = vmatprep.subr.bf16.mxu0 0
        %2498 = vmatpush1.bf16.msra.mxu0 0
        %2499 = vmatprep.subr.bf16.mxu0 0
        %2500 = vmatpush1.bf16.msra.mxu0 0
        %2501 = vmatprep.subr.bf16.mxu0 0
        %2502 = vmatpush1.bf16.msra.mxu0 0
        %2503 = vmatprep.subr.bf16.mxu0 0
        %2504 = vmatpush1.bf16.msra.mxu0 0
        %2505 = vmatprep.subr.bf16.mxu0 0
        %2506 = vmatpush1.bf16.msra.mxu0 0
        %2507 = vmatprep.subr.bf16.mxu0 0
        %2508 = vmatpush1.bf16.msra.mxu0 0
        %2509 = vmatprep.mubr.bf16.mxu0 0
        %2510 = vmatmul.mubr.bf16.gmra.mrb[0].mxu0 %v2475
        %v2511 = vpop.f32.mrb[0].mxu0
        %v2512 = vadd.f32 0.0, %v2511
        %v2513 = vpop.f32.mrb[0].mxu0
        %v2514 = vpop.f32.mrb[0].mxu0
        %v2515 = vadd.f32 0.0, %v2514
        %v2516 = vpop.f32.mrb[0].mxu0
        %2517 = vdwg.mxu0
        %v2519 = vsel %vm1973, %v2330, 0
        %2521 = vmatprep.subr.bf16.mxu0 0
        %2522 = vmatpush1.bf16.msra.mxu0 %v1199
        %2523 = vmatprep.subr.bf16.mxu0 0
        %2524 = vmatpush1.bf16.msra.mxu0 0
        %2525 = vmatprep.subr.bf16.mxu0 0
        %2526 = vmatpush1.bf16.msra.mxu0 0
        %2527 = vmatprep.subr.bf16.mxu0 0
        %2528 = vmatpush1.bf16.msra.mxu0 0
        %2529 = vmatprep.subr.bf16.mxu0 0
        %2530 = vmatpush1.bf16.msra.mxu0 0
        %2531 = vmatprep.subr.bf16.mxu0 0
        %2532 = vmatpush1.bf16.msra.mxu0 0
        %2533 = vmatprep.subr.bf16.mxu0 0
        %2534 = vmatpush1.bf16.msra.mxu0 0
        %2535 = vmatprep.subr.bf16.mxu0 0
        %2536 = vmatpush1.bf16.msra.mxu0 0
        %2537 = vmatprep.subr.bf16.mxu0 0
        %2538 = vmatpush1.bf16.msra.mxu0 0
        %2539 = vmatprep.subr.bf16.mxu0 0
        %2540 = vmatpush1.bf16.msra.mxu0 0
        %2541 = vmatprep.subr.bf16.mxu0 0
        %2542 = vmatpush1.bf16.msra.mxu0 0
        %2543 = vmatprep.subr.bf16.mxu0 0
        %2544 = vmatpush1.bf16.msra.mxu0 0
        %2545 = vmatprep.subr.bf16.mxu0 0
        %2546 = vmatpush1.bf16.msra.mxu0 0
        %2547 = vmatprep.subr.bf16.mxu0 0
        %2548 = vmatpush1.bf16.msra.mxu0 0
        %2549 = vmatprep.subr.bf16.mxu0 0
        %2550 = vmatpush1.bf16.msra.mxu0 0
        %2551 = vmatprep.subr.bf16.mxu0 0
        %2552 = vmatpush1.bf16.msra.mxu0 0
        %2553 = vmatprep.mubr.bf16.mxu0 0
        %2554 = vmatmul.mubr.bf16.gmra.mrb[0].mxu0 %v2519
        %v2555 = vpop.f32.mrb[0].mxu0
        %v2556 = vadd.f32 0.0, %v2555
        %v2557 = vpop.f32.mrb[0].mxu0
        %v2558 = vpop.f32.mrb[0].mxu0
        %v2559 = vadd.f32 0.0, %v2558
        %v2560 = vpop.f32.mrb[0].mxu0
        %2561 = vdwg.mxu0
        %v2563 = vsel %vm1973, %v2331, 0
        %2565 = vmatprep.subr.bf16.mxu0 0
        %2566 = vmatpush1.bf16.msra.mxu0 %v1200
        %2567 = vmatprep.subr.bf16.mxu0 0
        %2568 = vmatpush1.bf16.msra.mxu0 0
        %2569 = vmatprep.subr.bf16.mxu0 0
        %2570 = vmatpush1.bf16.msra.mxu0 0
        %2571 = vmatprep.subr.bf16.mxu0 0
        %2572 = vmatpush1.bf16.msra.mxu0 0
        %2573 = vmatprep.subr.bf16.mxu0 0
        %2574 = vmatpush1.bf16.msra.mxu0 0
        %2575 = vmatprep.subr.bf16.mxu0 0
        %2576 = vmatpush1.bf16.msra.mxu0 0
        %2577 = vmatprep.subr.bf16.mxu0 0
        %2578 = vmatpush1.bf16.msra.mxu0 0
        %2579 = vmatprep.subr.bf16.mxu0 0
        %2580 = vmatpush1.bf16.msra.mxu0 0
        %2581 = vmatprep.subr.bf16.mxu0 0
        %2582 = vmatpush1.bf16.msra.mxu0 0
        %2583 = vmatprep.subr.bf16.mxu0 0
        %2584 = vmatpush1.bf16.msra.mxu0 0
        %2585 = vmatprep.subr.bf16.mxu0 0
        %2586 = vmatpush1.bf16.msra.mxu0 0
        %2587 = vmatprep.subr.bf16.mxu0 0
        %2588 = vmatpush1.bf16.msra.mxu0 0
        %2589 = vmatprep.subr.bf16.mxu0 0
        %2590 = vmatpush1.bf16.msra.mxu0 0
        %2591 = vmatprep.subr.bf16.mxu0 0
        %2592 = vmatpush1.bf16.msra.mxu0 0
        %2593 = vmatprep.subr.bf16.mxu0 0
        %2594 = vmatpush1.bf16.msra.mxu0 0
        %2595 = vmatprep.subr.bf16.mxu0 0
        %2596 = vmatpush1.bf16.msra.mxu0 0
        %2597 = vmatprep.mubr.bf16.mxu0 0
        %2598 = vmatmul.mubr.bf16.gmra.mrb[0].mxu0 %v2563
        %v2599 = vpop.f32.mrb[0].mxu0
        %v2600 = vadd.f32 0.0, %v2599
        %v2601 = vpop.f32.mrb[0].mxu0
        %v2602 = vpop.f32.mrb[0].mxu0
        %v2603 = vadd.f32 0.0, %v2602
        %v2604 = vpop.f32.mrb[0].mxu0
        %2605 = vdwg.mxu0
        %v2607 = vsel %vm1973, %v2332, 0
        %2609 = vmatprep.subr.bf16.mxu0 0
        %2610 = vmatpush1.bf16.msra.mxu0 %v1201
        %2611 = vmatprep.subr.bf16.mxu0 0
        %2612 = vmatpush1.bf16.msra.mxu0 0
        %2613 = vmatprep.subr.bf16.mxu0 0
        %2614 = vmatpush1.bf16.msra.mxu0 0
        %2615 = vmatprep.subr.bf16.mxu0 0
        %2616 = vmatpush1.bf16.msra.mxu0 0
        %2617 = vmatprep.subr.bf16.mxu0 0
        %2618 = vmatpush1.bf16.msra.mxu0 0
        %2619 = vmatprep.subr.bf16.mxu0 0
        %2620 = vmatpush1.bf16.msra.mxu0 0
        %2621 = vmatprep.subr.bf16.mxu0 0
        %2622 = vmatpush1.bf16.msra.mxu0 0
        %2623 = vmatprep.subr.bf16.mxu0 0
        %2624 = vmatpush1.bf16.msra.mxu0 0
        %2625 = vmatprep.subr.bf16.mxu0 0
        %2626 = vmatpush1.bf16.msra.mxu0 0
        %2627 = vmatprep.subr.bf16.mxu0 0
        %2628 = vmatpush1.bf16.msra.mxu0 0
        %2629 = vmatprep.subr.bf16.mxu0 0
        %2630 = vmatpush1.bf16.msra.mxu0 0
        %2631 = vmatprep.subr.bf16.mxu0 0
        %2632 = vmatpush1.bf16.msra.mxu0 0
        %2633 = vmatprep.subr.bf16.mxu0 0
        %2634 = vmatpush1.bf16.msra.mxu0 0
        %2635 = vmatprep.subr.bf16.mxu0 0
        %2636 = vmatpush1.bf16.msra.mxu0 0
        %2637 = vmatprep.subr.bf16.mxu0 0
        %2638 = vmatpush1.bf16.msra.mxu0 0
        %2639 = vmatprep.subr.bf16.mxu0 0
        %2640 = vmatpush1.bf16.msra.mxu0 0
        %2641 = vmatprep.mubr.bf16.mxu0 0
        %2642 = vmatmul.mubr.bf16.gmra.mrb[0].mxu0 %v2607
        %v2643 = vpop.f32.mrb[0].mxu0
        %v2644 = vadd.f32 0.0, %v2643
        %v2645 = vpop.f32.mrb[0].mxu0
        %v2646 = vpop.f32.mrb[0].mxu0
        %v2647 = vadd.f32 0.0, %v2646
        %v2648 = vpop.f32.mrb[0].mxu0
        %2649 = vdwg.mxu0
        %v2651 = vsel %vm1973, %v2333, 0
        %2653 = vmatprep.subr.bf16.mxu0 0
        %2654 = vmatpush1.bf16.msra.mxu0 %v1202
        %2655 = vmatprep.subr.bf16.mxu0 0
        %2656 = vmatpush1.bf16.msra.mxu0 0
        %2657 = vmatprep.subr.bf16.mxu0 0
        %2658 = vmatpush1.bf16.msra.mxu0 0
        %2659 = vmatprep.subr.bf16.mxu0 0
        %2660 = vmatpush1.bf16.msra.mxu0 0
        %2661 = vmatprep.subr.bf16.mxu0 0
        %2662 = vmatpush1.bf16.msra.mxu0 0
        %2663 = vmatprep.subr.bf16.mxu0 0
        %2664 = vmatpush1.bf16.msra.mxu0 0
        %2665 = vmatprep.subr.bf16.mxu0 0
        %2666 = vmatpush1.bf16.msra.mxu0 0
        %2667 = vmatprep.subr.bf16.mxu0 0
        %2668 = vmatpush1.bf16.msra.mxu0 0
        %2669 = vmatprep.subr.bf16.mxu0 0
        %2670 = vmatpush1.bf16.msra.mxu0 0
        %2671 = vmatprep.subr.bf16.mxu0 0
        %2672 = vmatpush1.bf16.msra.mxu0 0
        %2673 = vmatprep.subr.bf16.mxu0 0
        %2674 = vmatpush1.bf16.msra.mxu0 0
        %2675 = vmatprep.subr.bf16.mxu0 0
        %2676 = vmatpush1.bf16.msra.mxu0 0
        %2677 = vmatprep.subr.bf16.mxu0 0
        %2678 = vmatpush1.bf16.msra.mxu0 0
        %2679 = vmatprep.subr.bf16.mxu0 0
        %2680 = vmatpush1.bf16.msra.mxu0 0
        %2681 = vmatprep.subr.bf16.mxu0 0
        %2682 = vmatpush1.bf16.msra.mxu0 0
        %2683 = vmatprep.subr.bf16.mxu0 0
        %2684 = vmatpush1.bf16.msra.mxu0 0
        %2685 = vmatprep.mubr.bf16.mxu0 0
        %2686 = vmatmul.mubr.bf16.gmra.mrb[0].mxu0 %v2651
        %v2687 = vpop.f32.mrb[0].mxu0
        %v2688 = vadd.f32 0.0, %v2687
        %v2689 = vpop.f32.mrb[0].mxu0
        %v2690 = vpop.f32.mrb[0].mxu0
        %v2691 = vadd.f32 0.0, %v2690
        %v2692 = vpop.f32.mrb[0].mxu0
        %2693 = vdwg.mxu0
        %v2695 = vsel %vm1973, %v2334, 0
        %2697 = vmatprep.subr.bf16.mxu0 0
        %2698 = vmatpush1.bf16.msra.mxu0 %v1203
        %2699 = vmatprep.subr.bf16.mxu0 0
        %2700 = vmatpush1.bf16.msra.mxu0 0
        %2701 = vmatprep.subr.bf16.mxu0 0
        %2702 = vmatpush1.bf16.msra.mxu0 0
        %2703 = vmatprep.subr.bf16.mxu0 0
        %2704 = vmatpush1.bf16.msra.mxu0 0
        %2705 = vmatprep.subr.bf16.mxu0 0
        %2706 = vmatpush1.bf16.msra.mxu0 0
        %2707 = vmatprep.subr.bf16.mxu0 0
        %2708 = vmatpush1.bf16.msra.mxu0 0
        %2709 = vmatprep.subr.bf16.mxu0 0
        %2710 = vmatpush1.bf16.msra.mxu0 0
        %2711 = vmatprep.subr.bf16.mxu0 0
        %2712 = vmatpush1.bf16.msra.mxu0 0
        %2713 = vmatprep.subr.bf16.mxu0 0
        %2714 = vmatpush1.bf16.msra.mxu0 0
        %2715 = vmatprep.subr.bf16.mxu0 0
        %2716 = vmatpush1.bf16.msra.mxu0 0
        %2717 = vmatprep.subr.bf16.mxu0 0
        %2718 = vmatpush1.bf16.msra.mxu0 0
        %2719 = vmatprep.subr.bf16.mxu0 0
        %2720 = vmatpush1.bf16.msra.mxu0 0
        %2721 = vmatprep.subr.bf16.mxu0 0
        %2722 = vmatpush1.bf16.msra.mxu0 0
        %2723 = vmatprep.subr.bf16.mxu0 0
        %2724 = vmatpush1.bf16.msra.mxu0 0
        %2725 = vmatprep.subr.bf16.mxu0 0
        %2726 = vmatpush1.bf16.msra.mxu0 0
        %2727 = vmatprep.subr.bf16.mxu0 0
        %2728 = vmatpush1.bf16.msra.mxu0 0
        %2729 = vmatprep.mubr.bf16.mxu0 0
        %2730 = vmatmul.mubr.bf16.gmra.mrb[0].mxu0 %v2695
        %v2731 = vpop.f32.mrb[0].mxu0
        %v2732 = vadd.f32 0.0, %v2731
        %v2733 = vpop.f32.mrb[0].mxu0
        %v2734 = vpop.f32.mrb[0].mxu0
        %v2735 = vadd.f32 0.0, %v2734
        %v2736 = vpop.f32.mrb[0].mxu0
        %2737 = vdwg.mxu0
        %v2739 = vsel %vm1973, %v2335, 0
        %2741 = vmatprep.subr.bf16.mxu0 0
        %2742 = vmatpush1.bf16.msra.mxu0 %v1204
        %2743 = vmatprep.subr.bf16.mxu0 0
        %2744 = vmatpush1.bf16.msra.mxu0 0
        %2745 = vmatprep.subr.bf16.mxu0 0
        %2746 = vmatpush1.bf16.msra.mxu0 0
        %2747 = vmatprep.subr.bf16.mxu0 0
        %2748 = vmatpush1.bf16.msra.mxu0 0
        %2749 = vmatprep.subr.bf16.mxu0 0
        %2750 = vmatpush1.bf16.msra.mxu0 0
        %2751 = vmatprep.subr.bf16.mxu0 0
        %2752 = vmatpush1.bf16.msra.mxu0 0
        %2753 = vmatprep.subr.bf16.mxu0 0
        %2754 = vmatpush1.bf16.msra.mxu0 0
        %2755 = vmatprep.subr.bf16.mxu0 0
        %2756 = vmatpush1.bf16.msra.mxu0 0
        %2757 = vmatprep.subr.bf16.mxu0 0
        %2758 = vmatpush1.bf16.msra.mxu0 0
        %2759 = vmatprep.subr.bf16.mxu0 0
        %2760 = vmatpush1.bf16.msra.mxu0 0
        %2761 = vmatprep.subr.bf16.mxu0 0
        %2762 = vmatpush1.bf16.msra.mxu0 0
        %2763 = vmatprep.subr.bf16.mxu0 0
        %2764 = vmatpush1.bf16.msra.mxu0 0
        %2765 = vmatprep.subr.bf16.mxu0 0
        %2766 = vmatpush1.bf16.msra.mxu0 0
        %2767 = vmatprep.subr.bf16.mxu0 0
        %2768 = vmatpush1.bf16.msra.mxu0 0
        %2769 = vmatprep.subr.bf16.mxu0 0
        %2770 = vmatpush1.bf16.msra.mxu0 0
        %2771 = vmatprep.subr.bf16.mxu0 0
        %2772 = vmatpush1.bf16.msra.mxu0 0
        %2773 = vmatprep.mubr.bf16.mxu0 0
        %2774 = vmatmul.mubr.bf16.gmra.mrb[0].mxu0 %v2739
        %v2775 = vpop.f32.mrb[0].mxu0
        %v2776 = vadd.f32 0.0, %v2775
        %v2777 = vpop.f32.mrb[0].mxu0
        %v2778 = vpop.f32.mrb[0].mxu0
        %v2779 = vadd.f32 0.0, %v2778
        %v2780 = vpop.f32.mrb[0].mxu0
        %2781 = vdwg.mxu0
        %v2783 = vsel %vm1973, %v2336, 0
        %2785 = vmatprep.subr.bf16.mxu0 0
        %2786 = vmatpush1.bf16.msra.mxu0 %v1205
        %2787 = vmatprep.subr.bf16.mxu0 0
        %2788 = vmatpush1.bf16.msra.mxu0 0
        %2789 = vmatprep.subr.bf16.mxu0 0
        %2790 = vmatpush1.bf16.msra.mxu0 0
        %2791 = vmatprep.subr.bf16.mxu0 0
        %2792 = vmatpush1.bf16.msra.mxu0 0
        %2793 = vmatprep.subr.bf16.mxu0 0
        %2794 = vmatpush1.bf16.msra.mxu0 0
        %2795 = vmatprep.subr.bf16.mxu0 0
        %2796 = vmatpush1.bf16.msra.mxu0 0
        %2797 = vmatprep.subr.bf16.mxu0 0
        %2798 = vmatpush1.bf16.msra.mxu0 0
        %2799 = vmatprep.subr.bf16.mxu0 0
        %2800 = vmatpush1.bf16.msra.mxu0 0
        %2801 = vmatprep.subr.bf16.mxu0 0
        %2802 = vmatpush1.bf16.msra.mxu0 0
        %2803 = vmatprep.subr.bf16.mxu0 0
        %2804 = vmatpush1.bf16.msra.mxu0 0
        %2805 = vmatprep.subr.bf16.mxu0 0
        %2806 = vmatpush1.bf16.msra.mxu0 0
        %2807 = vmatprep.subr.bf16.mxu0 0
        %2808 = vmatpush1.bf16.msra.mxu0 0
        %2809 = vmatprep.subr.bf16.mxu0 0
        %2810 = vmatpush1.bf16.msra.mxu0 0
        %2811 = vmatprep.subr.bf16.mxu0 0
        %2812 = vmatpush1.bf16.msra.mxu0 0
        %2813 = vmatprep.subr.bf16.mxu0 0
        %2814 = vmatpush1.bf16.msra.mxu0 0
        %2815 = vmatprep.subr.bf16.mxu0 0
        %2816 = vmatpush1.bf16.msra.mxu0 0
        %2817 = vmatprep.mubr.bf16.mxu0 0
        %2818 = vmatmul.mubr.bf16.gmra.mrb[0].mxu0 %v2783
        %v2819 = vpop.f32.mrb[0].mxu0
        %v2820 = vadd.f32 0.0, %v2819
        %v2821 = vpop.f32.mrb[0].mxu0
        %v2822 = vpop.f32.mrb[0].mxu0
        %v2823 = vadd.f32 0.0, %v2822
        %v2824 = vpop.f32.mrb[0].mxu0
        %2825 = vdwg.mxu0
        %v2827 = vsel %vm1973, %v2337, 0
        %2829 = vmatprep.subr.bf16.mxu0 0
        %2830 = vmatpush1.bf16.msra.mxu0 %v1206
        %2831 = vmatprep.subr.bf16.mxu0 0
        %2832 = vmatpush1.bf16.msra.mxu0 0
        %2833 = vmatprep.subr.bf16.mxu0 0
        %2834 = vmatpush1.bf16.msra.mxu0 0
        %2835 = vmatprep.subr.bf16.mxu0 0
        %2836 = vmatpush1.bf16.msra.mxu0 0
        %2837 = vmatprep.subr.bf16.mxu0 0
        %2838 = vmatpush1.bf16.msra.mxu0 0
        %2839 = vmatprep.subr.bf16.mxu0 0
        %2840 = vmatpush1.bf16.msra.mxu0 0
        %2841 = vmatprep.subr.bf16.mxu0 0
        %2842 = vmatpush1.bf16.msra.mxu0 0
        %2843 = vmatprep.subr.bf16.mxu0 0
        %2844 = vmatpush1.bf16.msra.mxu0 0
        %2845 = vmatprep.subr.bf16.mxu0 0
        %2846 = vmatpush1.bf16.msra.mxu0 0
        %2847 = vmatprep.subr.bf16.mxu0 0
        %2848 = vmatpush1.bf16.msra.mxu0 0
        %2849 = vmatprep.subr.bf16.mxu0 0
        %2850 = vmatpush1.bf16.msra.mxu0 0
        %2851 = vmatprep.subr.bf16.mxu0 0
        %2852 = vmatpush1.bf16.msra.mxu0 0
        %2853 = vmatprep.subr.bf16.mxu0 0
        %2854 = vmatpush1.bf16.msra.mxu0 0
        %2855 = vmatprep.subr.bf16.mxu0 0
        %2856 = vmatpush1.bf16.msra.mxu0 0
        %2857 = vmatprep.subr.bf16.mxu0 0
        %2858 = vmatpush1.bf16.msra.mxu0 0
        %2859 = vmatprep.subr.bf16.mxu0 0
        %2860 = vmatpush1.bf16.msra.mxu0 0
        %2861 = vmatprep.mubr.bf16.mxu0 0
        %2862 = vmatmul.mubr.bf16.gmra.mrb[0].mxu0 %v2827
        %v2863 = vpop.f32.mrb[0].mxu0
        %v2864 = vadd.f32 0.0, %v2863
        %v2865 = vpop.f32.mrb[0].mxu0
        %v2866 = vpop.f32.mrb[0].mxu0
        %v2867 = vadd.f32 0.0, %v2866
        %v2868 = vpop.f32.mrb[0].mxu0
        %2869 = vdwg.mxu0
        %v2871 = vsel %vm1973, %v2338, 0
        %2873 = vmatprep.subr.bf16.mxu0 0
        %2874 = vmatpush1.bf16.msra.mxu0 %v1207
        %2875 = vmatprep.subr.bf16.mxu0 0
        %2876 = vmatpush1.bf16.msra.mxu0 0
        %2877 = vmatprep.subr.bf16.mxu0 0
        %2878 = vmatpush1.bf16.msra.mxu0 0
        %2879 = vmatprep.subr.bf16.mxu0 0
        %2880 = vmatpush1.bf16.msra.mxu0 0
        %2881 = vmatprep.subr.bf16.mxu0 0
        %2882 = vmatpush1.bf16.msra.mxu0 0
        %2883 = vmatprep.subr.bf16.mxu0 0
        %2884 = vmatpush1.bf16.msra.mxu0 0
        %2885 = vmatprep.subr.bf16.mxu0 0
        %2886 = vmatpush1.bf16.msra.mxu0 0
        %2887 = vmatprep.subr.bf16.mxu0 0
        %2888 = vmatpush1.bf16.msra.mxu0 0
        %2889 = vmatprep.subr.bf16.mxu0 0
        %2890 = vmatpush1.bf16.msra.mxu0 0
        %2891 = vmatprep.subr.bf16.mxu0 0
        %2892 = vmatpush1.bf16.msra.mxu0 0
        %2893 = vmatprep.subr.bf16.mxu0 0
        %2894 = vmatpush1.bf16.msra.mxu0 0
        %2895 = vmatprep.subr.bf16.mxu0 0
        %2896 = vmatpush1.bf16.msra.mxu0 0
        %2897 = vmatprep.subr.bf16.mxu0 0
        %2898 = vmatpush1.bf16.msra.mxu0 0
        %2899 = vmatprep.subr.bf16.mxu0 0
        %2900 = vmatpush1.bf16.msra.mxu0 0
        %2901 = vmatprep.subr.bf16.mxu0 0
        %2902 = vmatpush1.bf16.msra.mxu0 0
        %2903 = vmatprep.subr.bf16.mxu0 0
        %2904 = vmatpush1.bf16.msra.mxu0 0
        %2905 = vmatprep.mubr.bf16.mxu0 0
        %2906 = vmatmul.mubr.bf16.gmra.mrb[0].mxu0 %v2871
        %v2907 = vpop.f32.mrb[0].mxu0
        %v2908 = vadd.f32 0.0, %v2907
        %v2909 = vpop.f32.mrb[0].mxu0
        %v2910 = vpop.f32.mrb[0].mxu0
        %v2911 = vadd.f32 0.0, %v2910
        %v2912 = vpop.f32.mrb[0].mxu0
        %2913 = vdwg.mxu0
        %v2915 = vsel %vm1973, %v2339, 0
        %2917 = vmatprep.subr.bf16.mxu0 0
        %2918 = vmatpush1.bf16.msra.mxu0 %v1208
        %2919 = vmatprep.subr.bf16.mxu0 0
        %2920 = vmatpush1.bf16.msra.mxu0 0
        %2921 = vmatprep.subr.bf16.mxu0 0
        %2922 = vmatpush1.bf16.msra.mxu0 0
        %2923 = vmatprep.subr.bf16.mxu0 0
        %2924 = vmatpush1.bf16.msra.mxu0 0
        %2925 = vmatprep.subr.bf16.mxu0 0
        %2926 = vmatpush1.bf16.msra.mxu0 0
        %2927 = vmatprep.subr.bf16.mxu0 0
        %2928 = vmatpush1.bf16.msra.mxu0 0
        %2929 = vmatprep.subr.bf16.mxu0 0
        %2930 = vmatpush1.bf16.msra.mxu0 0
        %2931 = vmatprep.subr.bf16.mxu0 0
        %2932 = vmatpush1.bf16.msra.mxu0 0
        %2933 = vmatprep.subr.bf16.mxu0 0
        %2934 = vmatpush1.bf16.msra.mxu0 0
        %2935 = vmatprep.subr.bf16.mxu0 0
        %2936 = vmatpush1.bf16.msra.mxu0 0
        %2937 = vmatprep.subr.bf16.mxu0 0
        %2938 = vmatpush1.bf16.msra.mxu0 0
        %2939 = vmatprep.subr.bf16.mxu0 0
        %2940 = vmatpush1.bf16.msra.mxu0 0
        %2941 = vmatprep.subr.bf16.mxu0 0
        %2942 = vmatpush1.bf16.msra.mxu0 0
        %2943 = vmatprep.subr.bf16.mxu0 0
        %2944 = vmatpush1.bf16.msra.mxu0 0
        %2945 = vmatprep.subr.bf16.mxu0 0
        %2946 = vmatpush1.bf16.msra.mxu0 0
        %2947 = vmatprep.subr.bf16.mxu0 0
        %2948 = vmatpush1.bf16.msra.mxu0 0
        %2949 = vmatprep.mubr.bf16.mxu0 0
        %2950 = vmatmul.mubr.bf16.gmra.mrb[0].mxu0 %v2915
        %v2951 = vpop.f32.mrb[0].mxu0
        %v2952 = vadd.f32 0.0, %v2951
        %v2953 = vpop.f32.mrb[0].mxu0
        %v2954 = vpop.f32.mrb[0].mxu0
        %v2955 = vadd.f32 0.0, %v2954
        %v2956 = vpop.f32.mrb[0].mxu0
        %2957 = vdwg.mxu0
        %v2959 = vsel %vm1973, %v2340, 0
        %2961 = vmatprep.subr.bf16.mxu0 0
        %2962 = vmatpush1.bf16.msra.mxu0 %v1209
        %2963 = vmatprep.subr.bf16.mxu0 0
        %2964 = vmatpush1.bf16.msra.mxu0 0
        %2965 = vmatprep.subr.bf16.mxu0 0
        %2966 = vmatpush1.bf16.msra.mxu0 0
        %2967 = vmatprep.subr.bf16.mxu0 0
        %2968 = vmatpush1.bf16.msra.mxu0 0
        %2969 = vmatprep.subr.bf16.mxu0 0
        %2970 = vmatpush1.bf16.msra.mxu0 0
        %2971 = vmatprep.subr.bf16.mxu0 0
        %2972 = vmatpush1.bf16.msra.mxu0 0
        %2973 = vmatprep.subr.bf16.mxu0 0
        %2974 = vmatpush1.bf16.msra.mxu0 0
        %2975 = vmatprep.subr.bf16.mxu0 0
        %2976 = vmatpush1.bf16.msra.mxu0 0
        %2977 = vmatprep.subr.bf16.mxu0 0
        %2978 = vmatpush1.bf16.msra.mxu0 0
        %2979 = vmatprep.subr.bf16.mxu0 0
        %2980 = vmatpush1.bf16.msra.mxu0 0
        %2981 = vmatprep.subr.bf16.mxu0 0
        %2982 = vmatpush1.bf16.msra.mxu0 0
        %2983 = vmatprep.subr.bf16.mxu0 0
        %2984 = vmatpush1.bf16.msra.mxu0 0
        %2985 = vmatprep.subr.bf16.mxu0 0
        %2986 = vmatpush1.bf16.msra.mxu0 0
        %2987 = vmatprep.subr.bf16.mxu0 0
        %2988 = vmatpush1.bf16.msra.mxu0 0
        %2989 = vmatprep.subr.bf16.mxu0 0
        %2990 = vmatpush1.bf16.msra.mxu0 0
        %2991 = vmatprep.subr.bf16.mxu0 0
        %2992 = vmatpush1.bf16.msra.mxu0 0
        %2993 = vmatprep.mubr.bf16.mxu0 0
        %2994 = vmatmul.mubr.bf16.gmra.mrb[0].mxu0 %v2959
        %v2995 = vpop.f32.mrb[0].mxu0
        %v2996 = vadd.f32 0.0, %v2995
        %v2997 = vpop.f32.mrb[0].mxu0
        %v2998 = vpop.f32.mrb[0].mxu0
        %v2999 = vadd.f32 0.0, %v2998
        %v3000 = vpop.f32.mrb[0].mxu0
        %3001 = vdwg.mxu0
        %v3003 = vsel %vm1973, %v2341, 0
        %3005 = vmatprep.subr.bf16.mxu0 0
        %3006 = vmatpush1.bf16.msra.mxu0 %v1210
        %3007 = vmatprep.subr.bf16.mxu0 0
        %3008 = vmatpush1.bf16.msra.mxu0 0
        %3009 = vmatprep.subr.bf16.mxu0 0
        %3010 = vmatpush1.bf16.msra.mxu0 0
        %3011 = vmatprep.subr.bf16.mxu0 0
        %3012 = vmatpush1.bf16.msra.mxu0 0
        %3013 = vmatprep.subr.bf16.mxu0 0
        %3014 = vmatpush1.bf16.msra.mxu0 0
        %3015 = vmatprep.subr.bf16.mxu0 0
        %3016 = vmatpush1.bf16.msra.mxu0 0
        %3017 = vmatprep.subr.bf16.mxu0 0
        %3018 = vmatpush1.bf16.msra.mxu0 0
        %3019 = vmatprep.subr.bf16.mxu0 0
        %3020 = vmatpush1.bf16.msra.mxu0 0
        %3021 = vmatprep.subr.bf16.mxu0 0
        %3022 = vmatpush1.bf16.msra.mxu0 0
        %3023 = vmatprep.subr.bf16.mxu0 0
        %3024 = vmatpush1.bf16.msra.mxu0 0
        %3025 = vmatprep.subr.bf16.mxu0 0
        %3026 = vmatpush1.bf16.msra.mxu0 0
        %3027 = vmatprep.subr.bf16.mxu0 0
        %3028 = vmatpush1.bf16.msra.mxu0 0
        %3029 = vmatprep.subr.bf16.mxu0 0
        %3030 = vmatpush1.bf16.msra.mxu0 0
        %3031 = vmatprep.subr.bf16.mxu0 0
        %3032 = vmatpush1.bf16.msra.mxu0 0
        %3033 = vmatprep.subr.bf16.mxu0 0
        %3034 = vmatpush1.bf16.msra.mxu0 0
        %3035 = vmatprep.subr.bf16.mxu0 0
        %3036 = vmatpush1.bf16.msra.mxu0 0
        %3037 = vmatprep.mubr.bf16.mxu0 0
        %3038 = vmatmul.mubr.bf16.gmra.mrb[0].mxu0 %v3003
        %v3039 = vpop.f32.mrb[0].mxu0
        %v3040 = vadd.f32 0.0, %v3039
        %v3041 = vpop.f32.mrb[0].mxu0
        %v3042 = vpop.f32.mrb[0].mxu0
        %v3043 = vadd.f32 0.0, %v3042
        %v3044 = vpop.f32.mrb[0].mxu0
        %3045 = vdwg.mxu0
        %3054 = vrot.lane.b32.xlu0 %v2556, 32
        %v3055 = vpop.permute.xlu0 %3054
        %3056 = vrot.lane.b32.xlu0 %v2559, 32
        %v3057 = vpop.permute.xlu0 %3056
        %3058 = vrot.lane.b32.xlu0 %v2600, 32
        %v3059 = vpop.permute.xlu0 %3058
        %3060 = vrot.lane.b32.xlu0 %v2603, 32
        %v3061 = vpop.permute.xlu0 %3060
        %3062 = vrot.lane.b32.xlu0 %v2644, 32
        %v3063 = vpop.permute.xlu0 %3062
        %3064 = vrot.lane.b32.xlu0 %v2647, 32
        %v3065 = vpop.permute.xlu0 %3064
        %3066 = vrot.lane.b32.xlu0 %v2688, 32
        %v3067 = vpop.permute.xlu0 %3066
        %3068 = vrot.lane.b32.xlu0 %v2691, 32
        %v3069 = vpop.permute.xlu0 %3068
        %3086 = vrot.lane.b32.xlu0 %v2732, 64
        %v3087 = vpop.permute.xlu0 %3086
        %3088 = vrot.lane.b32.xlu0 %v2735, 64
        %v3089 = vpop.permute.xlu0 %3088
        %3090 = vrot.lane.b32.xlu0 %v2776, 64
        %v3091 = vpop.permute.xlu0 %3090
        %3092 = vrot.lane.b32.xlu0 %v2779, 64
        %v3093 = vpop.permute.xlu0 %3092
        %3094 = vrot.lane.b32.xlu0 %v2820, 64
        %v3095 = vpop.permute.xlu0 %3094
        %3096 = vrot.lane.b32.xlu0 %v2823, 64
        %v3097 = vpop.permute.xlu0 %3096
        %3098 = vrot.lane.b32.xlu0 %v2864, 64
        %v3099 = vpop.permute.xlu0 %3098
        %3100 = vrot.lane.b32.xlu0 %v2867, 64
        %v3101 = vpop.permute.xlu0 %3100
        %3118 = vrot.lane.b32.xlu0 %v2908, 96
        %v3119 = vpop.permute.xlu0 %3118
        %3120 = vrot.lane.b32.xlu0 %v2911, 96
        %v3121 = vpop.permute.xlu0 %3120
        %3122 = vrot.lane.b32.xlu0 %v2952, 96
        %v3123 = vpop.permute.xlu0 %3122
        %3124 = vrot.lane.b32.xlu0 %v2955, 96
        %v3125 = vpop.permute.xlu0 %3124
        %3126 = vrot.lane.b32.xlu0 %v2996, 96
        %v3127 = vpop.permute.xlu0 %3126
        %3128 = vrot.lane.b32.xlu0 %v2999, 96
        %v3129 = vpop.permute.xlu0 %3128
        %3130 = vrot.lane.b32.xlu0 %v3040, 96
        %v3131 = vpop.permute.xlu0 %3130
        %3132 = vrot.lane.b32.xlu0 %v3043, 96
        %v3133 = vpop.permute.xlu0 %3132
        %v3142 = vsel %vm1220, %v2380, %v3055
        %v3143 = vsel %vm1220, %v2383, %v3057
        %v3144 = vsel %vm1220, %v2424, %v3059
        %v3145 = vsel %vm1220, %v2427, %v3061
        %v3146 = vsel %vm1220, %v2468, %v3063
        %v3147 = vsel %vm1220, %v2471, %v3065
        %v3148 = vsel %vm1220, %v2512, %v3067
        %v3149 = vsel %vm1220, %v2515, %v3069
        %vm3150 = vcmask 523264
        %v3151 = vsel %vm3150, %v3142, %v3087
        %v3152 = vsel %vm3150, %v3143, %v3089
        %v3153 = vsel %vm3150, %v3144, %v3091
        %v3154 = vsel %vm3150, %v3145, %v3093
        %v3155 = vsel %vm3150, %v3146, %v3095
        %v3156 = vsel %vm3150, %v3147, %v3097
        %v3157 = vsel %vm3150, %v3148, %v3099
        %v3158 = vsel %vm3150, %v3149, %v3101
        %vm3159 = vcmask 785408
        %v3160 = vsel %vm3159, %v3151, %v3119
        %v3161 = vsel %vm3159, %v3152, %v3121
        %v3162 = vsel %vm3159, %v3153, %v3123
        %v3163 = vsel %vm3159, %v3154, %v3125
        %v3164 = vsel %vm3159, %v3155, %v3127
        %v3165 = vsel %vm3159, %v3156, %v3129
        %v3166 = vsel %vm3159, %v3157, %v3131
        %v3167 = vsel %vm3159, %v3158, %v3133
        %v3168 = vpack.c.bf16 %v3161, %v3160
        %v3169 = vpack.c.bf16 %v3163, %v3162
        %v3170 = vpack.c.bf16 %v3165, %v3164
        %v3171 = vpack.c.bf16 %v3167, %v3166
        %v3172 = vld [vmem:[#allocation7] sm:$0xf]
        %v3173 = vld [vmem:[#allocation7 + $0x4] sm:$0xf]
        %v3174 = vld [vmem:[#allocation7 + $0x8] sm:$0xf]
        %v3175 = vld [vmem:[#allocation7 + $0xc] sm:$0xf]
        %v3176 = vld [vmem:[#allocation7 + $0x10] sm:$0xf]
        %v3177 = vld [vmem:[#allocation7 + $0x14] sm:$0xf]
        %v3178 = vld [vmem:[#allocation7 + $0x18] sm:$0xf]
        %v3179 = vld [vmem:[#allocation7 + $0x1c] sm:$0xf]
        %v3180 = vld [vmem:[#allocation7 + $0x20] sm:$0xf]
        %v3181 = vld [vmem:[#allocation7 + $0x24] sm:$0xf]
        %v3182 = vld [vmem:[#allocation7 + $0x28] sm:$0xf]
        %v3183 = vld [vmem:[#allocation7 + $0x2c] sm:$0xf]
        %v3184 = vld [vmem:[#allocation7 + $0x30] sm:$0xf]
        %v3185 = vld [vmem:[#allocation7 + $0x34] sm:$0xf]
        %v3186 = vld [vmem:[#allocation7 + $0x38] sm:$0xf]
        %v3187 = vld [vmem:[#allocation7 + $0x3c] sm:$0xf]
        %v3188 = vld [vmem:[%s5] sm:$0x1]
        %v3190 = vlaneseq
        %v3191 = vshrl.u32 %v3190, 7
        %v3192 = vsub.s32 0, %v3191
        %v3193 = vrot.slane %v3188, %v3192
        %v3211 = vunpack.c.l.b16 %v3172
        %v3212 = vunpack.c.l.b16 %v3173
        %v3213 = vunpack.c.l.b16 %v3174
        %v3214 = vunpack.c.l.b16 %v3175
        %v3215 = vunpack.c.l.b16 %v3176
        %v3216 = vunpack.c.l.b16 %v3177
        %v3217 = vunpack.c.l.b16 %v3178
        %v3218 = vunpack.c.l.b16 %v3179
        %v3219 = vunpack.c.l.b16 %v3180
        %v3220 = vunpack.c.l.b16 %v3181
        %v3221 = vunpack.c.l.b16 %v3182
        %v3222 = vunpack.c.l.b16 %v3183
        %v3223 = vunpack.c.l.b16 %v3184
        %v3224 = vunpack.c.l.b16 %v3185
        %v3225 = vunpack.c.l.b16 %v3186
        %v3226 = vunpack.c.l.b16 %v3187
        %v3227 = vpack.c.b16 %v3212, %v3211
        %v3228 = vpack.c.b16 %v3214, %v3213
        %v3229 = vpack.c.b16 %v3216, %v3215
        %v3230 = vpack.c.b16 %v3218, %v3217
        %v3231 = vpack.c.b16 %v3220, %v3219
        %v3232 = vpack.c.b16 %v3222, %v3221
        %v3233 = vpack.c.b16 %v3224, %v3223
        %v3234 = vpack.c.b16 %v3226, %v3225
        %3243 = vmatprep.subr.bf16.mxu0 0
        %3244 = vmatpush1.bf16.msra.mxu0 %v3227
        %3245 = vmatprep.subr.bf16.mxu0 0
        %3246 = vmatpush1.bf16.msra.mxu0 %v3228
        %3247 = vmatprep.subr.bf16.mxu0 0
        %3248 = vmatpush1.bf16.msra.mxu0 %v3229
        %3249 = vmatprep.subr.bf16.mxu0 0
        %3250 = vmatpush1.bf16.msra.mxu0 %v3230
        %3251 = vmatprep.subr.bf16.mxu0 0
        %3252 = vmatpush1.bf16.msra.mxu0 %v3231
        %3253 = vmatprep.subr.bf16.mxu0 0
        %3254 = vmatpush1.bf16.msra.mxu0 %v3232
        %3255 = vmatprep.subr.bf16.mxu0 0
        %3256 = vmatpush1.bf16.msra.mxu0 %v3233
        %3257 = vmatprep.subr.bf16.mxu0 0
        %3258 = vmatpush1.bf16.msra.mxu0 %v3234
        %3259 = vmatprep.subr.bf16.mxu0 0
        %3260 = vmatpush1.bf16.msra.mxu0 0
        %3261 = vmatprep.subr.bf16.mxu0 0
        %3262 = vmatpush1.bf16.msra.mxu0 0
        %3263 = vmatprep.subr.bf16.mxu0 0
        %3264 = vmatpush1.bf16.msra.mxu0 0
        %3265 = vmatprep.subr.bf16.mxu0 0
        %3266 = vmatpush1.bf16.msra.mxu0 0
        %3267 = vmatprep.subr.bf16.mxu0 0
        %3268 = vmatpush1.bf16.msra.mxu0 0
        %3269 = vmatprep.subr.bf16.mxu0 0
        %3270 = vmatpush1.bf16.msra.mxu0 0
        %3271 = vmatprep.subr.bf16.mxu0 0
        %3272 = vmatpush1.bf16.msra.mxu0 0
        %3273 = vmatprep.subr.bf16.mxu0 0
        %3274 = vmatpush1.bf16.msra.mxu0 0
        %3275 = vmatprep.mubr.bf16.mxu0 0
        %3276 = vmatmul.mubr.bf16.gmra.mrb[0].mxu0 %v3168
        %v3277 = vpop.f32.mrb[0].mxu0
        %v3278 = vadd.f32 %v3193, %v3277
        %v3279 = vpop.f32.mrb[0].mxu0
        %v3280 = vpop.f32.mrb[0].mxu0
        %v3281 = vadd.f32 %v3193, %v3280
        %v3282 = vpop.f32.mrb[0].mxu0
        %3283 = vmatprep.mubr.bf16.mxu0 0
        %3284 = vmatmul.mubr.bf16.gmra.mrb[0].mxu0 %v3169
        %v3285 = vpop.f32.mrb[0].mxu0
        %v3286 = vadd.f32 %v3193, %v3285
        %v3287 = vpop.f32.mrb[0].mxu0
        %v3288 = vpop.f32.mrb[0].mxu0
        %v3289 = vadd.f32 %v3193, %v3288
        %v3290 = vpop.f32.mrb[0].mxu0
        %3291 = vmatprep.mubr.bf16.mxu0 0
        %3292 = vmatmul.mubr.bf16.gmra.mrb[0].mxu0 %v3170
        %v3293 = vpop.f32.mrb[0].mxu0
        %v3294 = vadd.f32 %v3193, %v3293
        %v3295 = vpop.f32.mrb[0].mxu0
        %v3296 = vpop.f32.mrb[0].mxu0
        %v3297 = vadd.f32 %v3193, %v3296
        %v3298 = vpop.f32.mrb[0].mxu0
        %3299 = vmatprep.mubr.bf16.mxu0 0
        %3300 = vmatmul.mubr.bf16.gmra.mrb[0].mxu0 %v3171
        %v3301 = vpop.f32.mrb[0].mxu0
        %v3302 = vadd.f32 %v3193, %v3301
        %v3303 = vpop.f32.mrb[0].mxu0
        %v3304 = vpop.f32.mrb[0].mxu0
        %v3305 = vadd.f32 %v3193, %v3304
        %v3306 = vpop.f32.mrb[0].mxu0
        %3307 = vdwg.mxu0
        %v3308 = vadd.f32 %v494, %v3278
        %v3309 = vadd.f32 %v495, %v3281
        %v3310 = vadd.f32 %v496, %v3286
        %v3311 = vadd.f32 %v497, %v3289
        %v3312 = vadd.f32 %v498, %v3294
        %v3313 = vadd.f32 %v499, %v3297
        %v3314 = vadd.f32 %v500, %v3302
        %v3315 = vadd.f32 %v501, %v3305
        %v3316 = vld [vmem:[%s6] sm:$0x1]
        %v3317 = vld [vmem:[%s7] sm:$0x1]
        %3318 = vadd.xlane.f32.xlu0 %v3308
        %v3319 = vpop.xlane.xlu0 %3318
        %3320 = vadd.xlane.f32.xlu0 %v3309
        %v3321 = vpop.xlane.xlu0 %3320
        %3322 = vadd.xlane.f32.xlu0 %v3310
        %v3323 = vpop.xlane.xlu0 %3322
        %3324 = vadd.xlane.f32.xlu0 %v3311
        %v3325 = vpop.xlane.xlu0 %3324
        %3326 = vadd.xlane.f32.xlu0 %v3312
        %v3327 = vpop.xlane.xlu0 %3326
        %3328 = vadd.xlane.f32.xlu0 %v3313
        %v3329 = vpop.xlane.xlu0 %3328
        %3330 = vadd.xlane.f32.xlu0 %v3314
        %v3331 = vpop.xlane.xlu0 %3330
        %3332 = vadd.xlane.f32.xlu0 %v3315
        %v3333 = vpop.xlane.xlu0 %3332
        %v3334 = vmul.f32 %v3319, %v520
        %v3335 = vmul.f32 %v3321, %v520
        %v3336 = vmul.f32 %v3323, %v520
        %v3337 = vmul.f32 %v3325, %v520
        %v3338 = vmul.f32 %v3327, %v520
        %v3339 = vmul.f32 %v3329, %v520
        %v3340 = vmul.f32 %v3331, %v520
        %v3341 = vmul.f32 %v3333, %v520
        %v3342 = vsub.f32 %v3308, %v3334
        %v3343 = vsub.f32 %v3309, %v3335
        %v3344 = vsub.f32 %v3310, %v3336
        %v3345 = vsub.f32 %v3311, %v3337
        %v3346 = vsub.f32 %v3312, %v3338
        %v3347 = vsub.f32 %v3313, %v3339
        %v3348 = vsub.f32 %v3314, %v3340
        %v3349 = vsub.f32 %v3315, %v3341
        %v3350 = vmul.f32 %v3342, %v3342
        %v3351 = vmul.f32 %v3343, %v3343
        %v3352 = vmul.f32 %v3344, %v3344
        %v3353 = vmul.f32 %v3345, %v3345
        %v3354 = vmul.f32 %v3346, %v3346
        %v3355 = vmul.f32 %v3347, %v3347
        %v3356 = vmul.f32 %v3348, %v3348
        %v3357 = vmul.f32 %v3349, %v3349
        %3358 = vadd.xlane.f32.xlu0 %v3350
        %v3359 = vpop.xlane.xlu0 %3358
        %3360 = vadd.xlane.f32.xlu0 %v3351
        %v3361 = vpop.xlane.xlu0 %3360
        %3362 = vadd.xlane.f32.xlu0 %v3352
        %v3363 = vpop.xlane.xlu0 %3362
        %3364 = vadd.xlane.f32.xlu0 %v3353
        %v3365 = vpop.xlane.xlu0 %3364
        %3366 = vadd.xlane.f32.xlu0 %v3354
        %v3367 = vpop.xlane.xlu0 %3366
        %3368 = vadd.xlane.f32.xlu0 %v3355
        %v3369 = vpop.xlane.xlu0 %3368
        %3370 = vadd.xlane.f32.xlu0 %v3356
        %v3371 = vpop.xlane.xlu0 %3370
        %3372 = vadd.xlane.f32.xlu0 %v3357
        %v3373 = vpop.xlane.xlu0 %3372
        %v3374 = vmul.f32 %v3359, %v520
        %v3375 = vmul.f32 %v3361, %v520
        %v3376 = vmul.f32 %v3363, %v520
        %v3377 = vmul.f32 %v3365, %v520
        %v3378 = vmul.f32 %v3367, %v520
        %v3379 = vmul.f32 %v3369, %v520
        %v3380 = vmul.f32 %v3371, %v520
        %v3381 = vmul.f32 %v3373, %v520
        %v3382 = vadd.f32 %v3374, 1e-05
        %v3383 = vadd.f32 %v3375, 1e-05
        %v3384 = vadd.f32 %v3376, 1e-05
        %v3385 = vadd.f32 %v3377, 1e-05
        %v3386 = vadd.f32 %v3378, 1e-05
        %v3387 = vadd.f32 %v3379, 1e-05
        %v3388 = vadd.f32 %v3380, 1e-05
        %v3389 = vadd.f32 %v3381, 1e-05
        %v3390 = vrsqrt.pop %v3382
        %v3391 = vrsqrt.pop %v3383
        %v3392 = vrsqrt.pop %v3384
        %v3393 = vrsqrt.pop %v3385
        %v3394 = vrsqrt.pop %v3386
        %v3395 = vrsqrt.pop %v3387
        %v3396 = vrsqrt.pop %v3388
        %v3397 = vrsqrt.pop %v3389
        %v3398 = vmul.f32 %v3342, %v3390
        %v3399 = vmul.f32 %v3343, %v3391
        %v3400 = vmul.f32 %v3344, %v3392
        %v3401 = vmul.f32 %v3345, %v3393
        %v3402 = vmul.f32 %v3346, %v3394
        %v3403 = vmul.f32 %v3347, %v3395
        %v3404 = vmul.f32 %v3348, %v3396
        %v3405 = vmul.f32 %v3349, %v3397
        %v3407 = vlaneseq
        %v3408 = vshrl.u32 %v3407, 7
        %v3409 = vsub.s32 0, %v3408
        %v3410 = vrot.slane %v3316, %v3409
        %v3412 = vmul.f32 %v3398, %v3410
        %v3413 = vmul.f32 %v3399, %v3410
        %v3414 = vmul.f32 %v3400, %v3410
        %v3415 = vmul.f32 %v3401, %v3410
        %v3416 = vmul.f32 %v3402, %v3410
        %v3417 = vmul.f32 %v3403, %v3410
        %v3418 = vmul.f32 %v3404, %v3410
        %v3419 = vmul.f32 %v3405, %v3410
        %v3421 = vlaneseq
        %v3422 = vshrl.u32 %v3421, 7
        %v3423 = vsub.s32 0, %v3422
        %v3424 = vrot.slane %v3317, %v3423
        %v3426 = vadd.f32 %v3412, %v3424
        %v3427 = vadd.f32 %v3413, %v3424
        %v3428 = vadd.f32 %v3414, %v3424
        %v3429 = vadd.f32 %v3415, %v3424
        %v3430 = vadd.f32 %v3416, %v3424
        %v3431 = vadd.f32 %v3417, %v3424
        %v3432 = vadd.f32 %v3418, %v3424
        %v3433 = vadd.f32 %v3419, %v3424
        %v3434 = vpack.c.bf16 %v3427, %v3426
        %v3435 = vpack.c.bf16 %v3429, %v3428
        %v3436 = vpack.c.bf16 %v3431, %v3430
        %v3437 = vpack.c.bf16 %v3433, %v3432
        %v3438 = vld [vmem:[#allocation8] sm:$0xff]
        %v3439 = vld [vmem:[#allocation8 + $0x8] sm:$0xff]
        %v3440 = vld [vmem:[#allocation8 + $0x10] sm:$0xff]
        %v3441 = vld [vmem:[#allocation8 + $0x18] sm:$0xff]
        %v3442 = vld [vmem:[#allocation8 + $0x20] sm:$0xff]
        %v3443 = vld [vmem:[#allocation8 + $0x28] sm:$0xff]
        %v3444 = vld [vmem:[#allocation8 + $0x30] sm:$0xff]
        %v3445 = vld [vmem:[#allocation8 + $0x38] sm:$0xff]
        %v3446 = vld [vmem:[#allocation8 + $0x40] sm:$0xff]
        %v3447 = vld [vmem:[#allocation8 + $0x48] sm:$0xff]
        %v3448 = vld [vmem:[#allocation8 + $0x50] sm:$0xff]
        %v3449 = vld [vmem:[#allocation8 + $0x58] sm:$0xff]
        %v3450 = vld [vmem:[#allocation8 + $0x60] sm:$0xff]
        %v3451 = vld [vmem:[#allocation8 + $0x68] sm:$0xff]
        %v3452 = vld [vmem:[#allocation8 + $0x70] sm:$0xff]
        %v3453 = vld [vmem:[#allocation8 + $0x78] sm:$0xff]
        %v3454 = vld [vmem:[#allocation8 + $0x80] sm:$0xff]
        %v3455 = vld [vmem:[#allocation8 + $0x88] sm:$0xff]
        %v3456 = vld [vmem:[#allocation8 + $0x90] sm:$0xff]
        %v3457 = vld [vmem:[#allocation8 + $0x98] sm:$0xff]
        %v3458 = vld [vmem:[#allocation8 + $0xa0] sm:$0xff]
        %v3459 = vld [vmem:[#allocation8 + $0xa8] sm:$0xff]
        %v3460 = vld [vmem:[#allocation8 + $0xb0] sm:$0xff]
        %v3461 = vld [vmem:[#allocation8 + $0xb8] sm:$0xff]
        %v3462 = vld [vmem:[#allocation8 + $0xc0] sm:$0xff]
        %v3463 = vld [vmem:[#allocation8 + $0xc8] sm:$0xff]
        %v3464 = vld [vmem:[#allocation8 + $0xd0] sm:$0xff]
        %v3465 = vld [vmem:[#allocation8 + $0xd8] sm:$0xff]
        %v3466 = vld [vmem:[#allocation8 + $0xe0] sm:$0xff]
        %v3467 = vld [vmem:[#allocation8 + $0xe8] sm:$0xff]
        %v3468 = vld [vmem:[#allocation8 + $0xf0] sm:$0xff]
        %v3469 = vld [vmem:[#allocation8 + $0xf8] sm:$0xff]
        %v3470 = vld [vmem:[%s9] sm:$0xf]
        %v3472 = vlaneseq
        %v3473 = vshrl.u32 %v3472, 7
        %v3474 = vsub.s32 0, %v3473
        %v3475 = vrot.slane %v3470, %v3474
        %v3476 = vlaneseq
        %v3477 = vshrl.u32 %v3476, 7
        %v3478 = vsub.s32 1, %v3477
        %v3479 = vrot.slane %v3470, %v3478
        %v3480 = vlaneseq
        %v3481 = vshrl.u32 %v3480, 7
        %v3482 = vsub.s32 2, %v3481
        %v3483 = vrot.slane %v3470, %v3482
        %v3484 = vlaneseq
        %v3485 = vshrl.u32 %v3484, 7
        %v3486 = vsub.s32 3, %v3485
        %v3487 = vrot.slane %v3470, %v3486
        %v3524 = vunpack.c.l.b16 %v3438
        %v3525 = vunpack.c.h.b16 %v3438
        %v3526 = vunpack.c.l.b16 %v3439
        %v3527 = vunpack.c.h.b16 %v3439
        %v3528 = vunpack.c.l.b16 %v3440
        %v3529 = vunpack.c.h.b16 %v3440
        %v3530 = vunpack.c.l.b16 %v3441
        %v3531 = vunpack.c.h.b16 %v3441
        %v3532 = vunpack.c.l.b16 %v3442
        %v3533 = vunpack.c.h.b16 %v3442
        %v3534 = vunpack.c.l.b16 %v3443
        %v3535 = vunpack.c.h.b16 %v3443
        %v3536 = vunpack.c.l.b16 %v3444
        %v3537 = vunpack.c.h.b16 %v3444
        %v3538 = vunpack.c.l.b16 %v3445
        %v3539 = vunpack.c.h.b16 %v3445
        %v3540 = vunpack.c.l.b16 %v3446
        %v3541 = vunpack.c.h.b16 %v3446
        %v3542 = vunpack.c.l.b16 %v3447
        %v3543 = vunpack.c.h.b16 %v3447
        %v3544 = vunpack.c.l.b16 %v3448
        %v3545 = vunpack.c.h.b16 %v3448
        %v3546 = vunpack.c.l.b16 %v3449
        %v3547 = vunpack.c.h.b16 %v3449
        %v3548 = vunpack.c.l.b16 %v3450
        %v3549 = vunpack.c.h.b16 %v3450
        %v3550 = vunpack.c.l.b16 %v3451
        %v3551 = vunpack.c.h.b16 %v3451
        %v3552 = vunpack.c.l.b16 %v3452
        %v3553 = vunpack.c.h.b16 %v3452
        %v3554 = vunpack.c.l.b16 %v3453
        %v3555 = vunpack.c.h.b16 %v3453
        %v3556 = vunpack.c.l.b16 %v3454
        %v3557 = vunpack.c.h.b16 %v3454
        %v3558 = vunpack.c.l.b16 %v3455
        %v3559 = vunpack.c.h.b16 %v3455
        %v3560 = vunpack.c.l.b16 %v3456
        %v3561 = vunpack.c.h.b16 %v3456
        %v3562 = vunpack.c.l.b16 %v3457
        %v3563 = vunpack.c.h.b16 %v3457
        %v3564 = vunpack.c.l.b16 %v3458
        %v3565 = vunpack.c.h.b16 %v3458
        %v3566 = vunpack.c.l.b16 %v3459
        %v3567 = vunpack.c.h.b16 %v3459
        %v3568 = vunpack.c.l.b16 %v3460
        %v3569 = vunpack.c.h.b16 %v3460
        %v3570 = vunpack.c.l.b16 %v3461
        %v3571 = vunpack.c.h.b16 %v3461
        %v3572 = vunpack.c.l.b16 %v3462
        %v3573 = vunpack.c.h.b16 %v3462
        %v3574 = vunpack.c.l.b16 %v3463
        %v3575 = vunpack.c.h.b16 %v3463
        %v3576 = vunpack.c.l.b16 %v3464
        %v3577 = vunpack.c.h.b16 %v3464
        %v3578 = vunpack.c.l.b16 %v3465
        %v3579 = vunpack.c.h.b16 %v3465
        %v3580 = vunpack.c.l.b16 %v3466
        %v3581 = vunpack.c.h.b16 %v3466
        %v3582 = vunpack.c.l.b16 %v3467
        %v3583 = vunpack.c.h.b16 %v3467
        %v3584 = vunpack.c.l.b16 %v3468
        %v3585 = vunpack.c.h.b16 %v3468
        %v3586 = vunpack.c.l.b16 %v3469
        %v3587 = vunpack.c.h.b16 %v3469
        %v3588 = vpack.c.b16 %v3528, %v3524
        %v3589 = vpack.c.b16 %v3529, %v3525
        %v3590 = vpack.c.b16 %v3530, %v3526
        %v3591 = vpack.c.b16 %v3531, %v3527
        %v3592 = vpack.c.b16 %v3536, %v3532
        %v3593 = vpack.c.b16 %v3537, %v3533
        %v3594 = vpack.c.b16 %v3538, %v3534
        %v3595 = vpack.c.b16 %v3539, %v3535
        %v3596 = vpack.c.b16 %v3544, %v3540
        %v3597 = vpack.c.b16 %v3545, %v3541
        %v3598 = vpack.c.b16 %v3546, %v3542
        %v3599 = vpack.c.b16 %v3547, %v3543
        %v3600 = vpack.c.b16 %v3552, %v3548
        %v3601 = vpack.c.b16 %v3553, %v3549
        %v3602 = vpack.c.b16 %v3554, %v3550
        %v3603 = vpack.c.b16 %v3555, %v3551
        %v3604 = vpack.c.b16 %v3560, %v3556
        %v3605 = vpack.c.b16 %v3561, %v3557
        %v3606 = vpack.c.b16 %v3562, %v3558
        %v3607 = vpack.c.b16 %v3563, %v3559
        %v3608 = vpack.c.b16 %v3568, %v3564
        %v3609 = vpack.c.b16 %v3569, %v3565
        %v3610 = vpack.c.b16 %v3570, %v3566
        %v3611 = vpack.c.b16 %v3571, %v3567
        %v3612 = vpack.c.b16 %v3576, %v3572
        %v3613 = vpack.c.b16 %v3577, %v3573
        %v3614 = vpack.c.b16 %v3578, %v3574
        %v3615 = vpack.c.b16 %v3579, %v3575
        %v3616 = vpack.c.b16 %v3584, %v3580
        %v3617 = vpack.c.b16 %v3585, %v3581
        %v3618 = vpack.c.b16 %v3586, %v3582
        %v3619 = vpack.c.b16 %v3587, %v3583
        %3652 = vmatprep.subr.bf16.mxu0 %v3589
        %3653 = vmatpush1.bf16.msra.mxu0 %v3588
        %3654 = vmatprep.subr.bf16.mxu0 %v3593
        %3655 = vmatpush1.bf16.msra.mxu0 %v3592
        %3656 = vmatprep.subr.bf16.mxu0 %v3597
        %3657 = vmatpush1.bf16.msra.mxu0 %v3596
        %3658 = vmatprep.subr.bf16.mxu0 %v3601
        %3659 = vmatpush1.bf16.msra.mxu0 %v3600
        %3660 = vmatprep.subr.bf16.mxu0 %v3605
        %3661 = vmatpush1.bf16.msra.mxu0 %v3604
        %3662 = vmatprep.subr.bf16.mxu0 %v3609
        %3663 = vmatpush1.bf16.msra.mxu0 %v3608
        %3664 = vmatprep.subr.bf16.mxu0 %v3613
        %3665 = vmatpush1.bf16.msra.mxu0 %v3612
        %3666 = vmatprep.subr.bf16.mxu0 %v3617
        %3667 = vmatpush1.bf16.msra.mxu0 %v3616
        %3668 = vmatprep.subr.bf16.mxu0 0
        %3669 = vmatpush1.bf16.msra.mxu0 0
        %3670 = vmatprep.subr.bf16.mxu0 0
        %3671 = vmatpush1.bf16.msra.mxu0 0
        %3672 = vmatprep.subr.bf16.mxu0 0
        %3673 = vmatpush1.bf16.msra.mxu0 0
        %3674 = vmatprep.subr.bf16.mxu0 0
        %3675 = vmatpush1.bf16.msra.mxu0 0
        %3676 = vmatprep.subr.bf16.mxu0 0
        %3677 = vmatpush1.bf16.msra.mxu0 0
        %3678 = vmatprep.subr.bf16.mxu0 0
        %3679 = vmatpush1.bf16.msra.mxu0 0
        %3680 = vmatprep.subr.bf16.mxu0 0
        %3681 = vmatpush1.bf16.msra.mxu0 0
        %3682 = vmatprep.subr.bf16.mxu0 0
        %3683 = vmatpush1.bf16.msra.mxu0 0
        %3684 = vmatprep.mubr.bf16.mxu0 0
        %3685 = vmatmul.mubr.bf16.gmra.mrb[0].mxu0 %v3434
        %v3686 = vpop.f32.mrb[0].mxu0
        %v3687 = vadd.f32 %v3475, %v3686
        %v3688 = vpop.f32.mrb[0].mxu0
        %v3689 = vadd.f32 %v3479, %v3688
        %v3690 = vpop.f32.mrb[0].mxu0
        %v3691 = vadd.f32 %v3475, %v3690
        %v3692 = vpop.f32.mrb[0].mxu0
        %v3693 = vadd.f32 %v3479, %v3692
        %3694 = vmatprep.mubr.bf16.mxu0 0
        %3695 = vmatmul.mubr.bf16.gmra.mrb[0].mxu0 %v3435
        %v3696 = vpop.f32.mrb[0].mxu0
        %v3697 = vadd.f32 %v3475, %v3696
        %v3698 = vpop.f32.mrb[0].mxu0
        %v3699 = vadd.f32 %v3479, %v3698
        %v3700 = vpop.f32.mrb[0].mxu0
        %v3701 = vadd.f32 %v3475, %v3700
        %v3702 = vpop.f32.mrb[0].mxu0
        %v3703 = vadd.f32 %v3479, %v3702
        %3704 = vmatprep.mubr.bf16.mxu0 0
        %3705 = vmatmul.mubr.bf16.gmra.mrb[0].mxu0 %v3436
        %v3706 = vpop.f32.mrb[0].mxu0
        %v3707 = vadd.f32 %v3475, %v3706
        %v3708 = vpop.f32.mrb[0].mxu0
        %v3709 = vadd.f32 %v3479, %v3708
        %v3710 = vpop.f32.mrb[0].mxu0
        %v3711 = vadd.f32 %v3475, %v3710
        %v3712 = vpop.f32.mrb[0].mxu0
        %v3713 = vadd.f32 %v3479, %v3712
        %3714 = vmatprep.mubr.bf16.mxu0 0
        %3715 = vmatmul.mubr.bf16.gmra.mrb[0].mxu0 %v3437
        %v3716 = vpop.f32.mrb[0].mxu0
        %v3717 = vadd.f32 %v3475, %v3716
        %v3718 = vpop.f32.mrb[0].mxu0
        %v3719 = vadd.f32 %v3479, %v3718
        %v3720 = vpop.f32.mrb[0].mxu0
        %v3721 = vadd.f32 %v3475, %v3720
        %v3722 = vpop.f32.mrb[0].mxu0
        %v3723 = vadd.f32 %v3479, %v3722
        %3724 = vdwg.mxu0
        %3725 = vmatprep.subr.bf16.mxu0 %v3591
        %3726 = vmatpush1.bf16.msra.mxu0 %v3590
        %3727 = vmatprep.subr.bf16.mxu0 %v3595
        %3728 = vmatpush1.bf16.msra.mxu0 %v3594
        %3729 = vmatprep.subr.bf16.mxu0 %v3599
        %3730 = vmatpush1.bf16.msra.mxu0 %v3598
        %3731 = vmatprep.subr.bf16.mxu0 %v3603
        %3732 = vmatpush1.bf16.msra.mxu0 %v3602
        %3733 = vmatprep.subr.bf16.mxu0 %v3607
        %3734 = vmatpush1.bf16.msra.mxu0 %v3606
        %3735 = vmatprep.subr.bf16.mxu0 %v3611
        %3736 = vmatpush1.bf16.msra.mxu0 %v3610
        %3737 = vmatprep.subr.bf16.mxu0 %v3615
        %3738 = vmatpush1.bf16.msra.mxu0 %v3614
        %3739 = vmatprep.subr.bf16.mxu0 %v3619
        %3740 = vmatpush1.bf16.msra.mxu0 %v3618
        %3741 = vmatprep.subr.bf16.mxu0 0
        %3742 = vmatpush1.bf16.msra.mxu0 0
        %3743 = vmatprep.subr.bf16.mxu0 0
        %3744 = vmatpush1.bf16.msra.mxu0 0
        %3745 = vmatprep.subr.bf16.mxu0 0
        %3746 = vmatpush1.bf16.msra.mxu0 0
        %3747 = vmatprep.subr.bf16.mxu0 0
        %3748 = vmatpush1.bf16.msra.mxu0 0
        %3749 = vmatprep.subr.bf16.mxu0 0
        %3750 = vmatpush1.bf16.msra.mxu0 0
        %3751 = vmatprep.subr.bf16.mxu0 0
        %3752 = vmatpush1.bf16.msra.mxu0 0
        %3753 = vmatprep.subr.bf16.mxu0 0
        %3754 = vmatpush1.bf16.msra.mxu0 0
        %3755 = vmatprep.subr.bf16.mxu0 0
        %3756 = vmatpush1.bf16.msra.mxu0 0
        %3757 = vmatprep.mubr.bf16.mxu0 0
        %3758 = vmatmul.mubr.bf16.gmra.mrb[0].mxu0 %v3434
        %v3759 = vpop.f32.mrb[0].mxu0
        %v3760 = vadd.f32 %v3483, %v3759
        %v3761 = vpop.f32.mrb[0].mxu0
        %v3762 = vadd.f32 %v3487, %v3761
        %v3763 = vpop.f32.mrb[0].mxu0
        %v3764 = vadd.f32 %v3483, %v3763
        %v3765 = vpop.f32.mrb[0].mxu0
        %v3766 = vadd.f32 %v3487, %v3765
        %3767 = vmatprep.mubr.bf16.mxu0 0
        %3768 = vmatmul.mubr.bf16.gmra.mrb[0].mxu0 %v3435
        %v3769 = vpop.f32.mrb[0].mxu0
        %v3770 = vadd.f32 %v3483, %v3769
        %v3771 = vpop.f32.mrb[0].mxu0
        %v3772 = vadd.f32 %v3487, %v3771
        %v3773 = vpop.f32.mrb[0].mxu0
        %v3774 = vadd.f32 %v3483, %v3773
        %v3775 = vpop.f32.mrb[0].mxu0
        %v3776 = vadd.f32 %v3487, %v3775
        %3777 = vmatprep.mubr.bf16.mxu0 0
        %3778 = vmatmul.mubr.bf16.gmra.mrb[0].mxu0 %v3436
        %v3779 = vpop.f32.mrb[0].mxu0
        %v3780 = vadd.f32 %v3483, %v3779
        %v3781 = vpop.f32.mrb[0].mxu0
        %v3782 = vadd.f32 %v3487, %v3781
        %v3783 = vpop.f32.mrb[0].mxu0
        %v3784 = vadd.f32 %v3483, %v3783
        %v3785 = vpop.f32.mrb[0].mxu0
        %v3786 = vadd.f32 %v3487, %v3785
        %3787 = vmatprep.mubr.bf16.mxu0 0
        %3788 = vmatmul.mubr.bf16.gmra.mrb[0].mxu0 %v3437
        %v3789 = vpop.f32.mrb[0].mxu0
        %v3790 = vadd.f32 %v3483, %v3789
        %v3791 = vpop.f32.mrb[0].mxu0
        %v3792 = vadd.f32 %v3487, %v3791
        %v3793 = vpop.f32.mrb[0].mxu0
        %v3794 = vadd.f32 %v3483, %v3793
        %v3795 = vpop.f32.mrb[0].mxu0
        %v3796 = vadd.f32 %v3487, %v3795
        %3797 = vdwg.mxu0
        %v3798 = vmax.f32 %v3687, 0.0
        %v3799 = vmax.f32 %v3689, 0.0
        %v3800 = vmax.f32 %v3760, 0.0
        %v3801 = vmax.f32 %v3762, 0.0
        %v3802 = vmax.f32 %v3691, 0.0
        %v3803 = vmax.f32 %v3693, 0.0
        %v3804 = vmax.f32 %v3764, 0.0
        %v3805 = vmax.f32 %v3766, 0.0
        %v3806 = vmax.f32 %v3697, 0.0
        %v3807 = vmax.f32 %v3699, 0.0
        %v3808 = vmax.f32 %v3770, 0.0
        %v3809 = vmax.f32 %v3772, 0.0
        %v3810 = vmax.f32 %v3701, 0.0
        %v3811 = vmax.f32 %v3703, 0.0
        %v3812 = vmax.f32 %v3774, 0.0
        %v3813 = vmax.f32 %v3776, 0.0
        %v3814 = vmax.f32 %v3707, 0.0
        %v3815 = vmax.f32 %v3709, 0.0
        %v3816 = vmax.f32 %v3780, 0.0
        %v3817 = vmax.f32 %v3782, 0.0
        %v3818 = vmax.f32 %v3711, 0.0
        %v3819 = vmax.f32 %v3713, 0.0
        %v3820 = vmax.f32 %v3784, 0.0
        %v3821 = vmax.f32 %v3786, 0.0
        %v3822 = vmax.f32 %v3717, 0.0
        %v3823 = vmax.f32 %v3719, 0.0
        %v3824 = vmax.f32 %v3790, 0.0
        %v3825 = vmax.f32 %v3792, 0.0
        %v3826 = vmax.f32 %v3721, 0.0
        %v3827 = vmax.f32 %v3723, 0.0
        %v3828 = vmax.f32 %v3794, 0.0
        %v3829 = vmax.f32 %v3796, 0.0
        %v3830 = vpack.c.bf16 %v3802, %v3798
        %v3831 = vpack.c.bf16 %v3803, %v3799
        %v3832 = vpack.c.bf16 %v3804, %v3800
        %v3833 = vpack.c.bf16 %v3805, %v3801
        %v3834 = vpack.c.bf16 %v3810, %v3806
        %v3835 = vpack.c.bf16 %v3811, %v3807
        %v3836 = vpack.c.bf16 %v3812, %v3808
        %v3837 = vpack.c.bf16 %v3813, %v3809
        %v3838 = vpack.c.bf16 %v3818, %v3814
        %v3839 = vpack.c.bf16 %v3819, %v3815
        %v3840 = vpack.c.bf16 %v3820, %v3816
        %v3841 = vpack.c.bf16 %v3821, %v3817
        %v3842 = vpack.c.bf16 %v3826, %v3822
        %v3843 = vpack.c.bf16 %v3827, %v3823
        %v3844 = vpack.c.bf16 %v3828, %v3824
        %v3845 = vpack.c.bf16 %v3829, %v3825
        %v3846 = vld [vmem:[#allocation10] sm:$0xf]
        %v3847 = vld [vmem:[#allocation10 + $0x4] sm:$0xf]
        %v3848 = vld [vmem:[#allocation10 + $0x8] sm:$0xf]
        %v3849 = vld [vmem:[#allocation10 + $0xc] sm:$0xf]
        %v3850 = vld [vmem:[#allocation10 + $0x10] sm:$0xf]
        %v3851 = vld [vmem:[#allocation10 + $0x14] sm:$0xf]
        %v3852 = vld [vmem:[#allocation10 + $0x18] sm:$0xf]
        %v3853 = vld [vmem:[#allocation10 + $0x1c] sm:$0xf]
        %v3854 = vld [vmem:[#allocation10 + $0x20] sm:$0xf]
        %v3855 = vld [vmem:[#allocation10 + $0x24] sm:$0xf]
        %v3856 = vld [vmem:[#allocation10 + $0x28] sm:$0xf]
        %v3857 = vld [vmem:[#allocation10 + $0x2c] sm:$0xf]
        %v3858 = vld [vmem:[#allocation10 + $0x30] sm:$0xf]
        %v3859 = vld [vmem:[#allocation10 + $0x34] sm:$0xf]
        %v3860 = vld [vmem:[#allocation10 + $0x38] sm:$0xf]
        %v3861 = vld [vmem:[#allocation10 + $0x3c] sm:$0xf]
        %v3862 = vld [vmem:[#allocation10 + $0x40] sm:$0xf]
        %v3863 = vld [vmem:[#allocation10 + $0x44] sm:$0xf]
        %v3864 = vld [vmem:[#allocation10 + $0x48] sm:$0xf]
        %v3865 = vld [vmem:[#allocation10 + $0x4c] sm:$0xf]
        %v3866 = vld [vmem:[#allocation10 + $0x50] sm:$0xf]
        %v3867 = vld [vmem:[#allocation10 + $0x54] sm:$0xf]
        %v3868 = vld [vmem:[#allocation10 + $0x58] sm:$0xf]
        %v3869 = vld [vmem:[#allocation10 + $0x5c] sm:$0xf]
        %v3870 = vld [vmem:[#allocation10 + $0x60] sm:$0xf]
        %v3871 = vld [vmem:[#allocation10 + $0x64] sm:$0xf]
        %v3872 = vld [vmem:[#allocation10 + $0x68] sm:$0xf]
        %v3873 = vld [vmem:[#allocation10 + $0x6c] sm:$0xf]
        %v3874 = vld [vmem:[#allocation10 + $0x70] sm:$0xf]
        %v3875 = vld [vmem:[#allocation10 + $0x74] sm:$0xf]
        %v3876 = vld [vmem:[#allocation10 + $0x78] sm:$0xf]
        %v3877 = vld [vmem:[#allocation10 + $0x7c] sm:$0xf]
        %v3878 = vld [vmem:[#allocation10 + $0x80] sm:$0xf]
        %v3879 = vld [vmem:[#allocation10 + $0x84] sm:$0xf]
        %v3880 = vld [vmem:[#allocation10 + $0x88] sm:$0xf]
        %v3881 = vld [vmem:[#allocation10 + $0x8c] sm:$0xf]
        %v3882 = vld [vmem:[#allocation10 + $0x90] sm:$0xf]
        %v3883 = vld [vmem:[#allocation10 + $0x94] sm:$0xf]
        %v3884 = vld [vmem:[#allocation10 + $0x98] sm:$0xf]
        %v3885 = vld [vmem:[#allocation10 + $0x9c] sm:$0xf]
        %v3886 = vld [vmem:[#allocation10 + $0xa0] sm:$0xf]
        %v3887 = vld [vmem:[#allocation10 + $0xa4] sm:$0xf]
        %v3888 = vld [vmem:[#allocation10 + $0xa8] sm:$0xf]
        %v3889 = vld [vmem:[#allocation10 + $0xac] sm:$0xf]
        %v3890 = vld [vmem:[#allocation10 + $0xb0] sm:$0xf]
        %v3891 = vld [vmem:[#allocation10 + $0xb4] sm:$0xf]
        %v3892 = vld [vmem:[#allocation10 + $0xb8] sm:$0xf]
        %v3893 = vld [vmem:[#allocation10 + $0xbc] sm:$0xf]
        %v3894 = vld [vmem:[#allocation10 + $0xc0] sm:$0xf]
        %v3895 = vld [vmem:[#allocation10 + $0xc4] sm:$0xf]
        %v3896 = vld [vmem:[#allocation10 + $0xc8] sm:$0xf]
        %v3897 = vld [vmem:[#allocation10 + $0xcc] sm:$0xf]
        %v3898 = vld [vmem:[#allocation10 + $0xd0] sm:$0xf]
        %v3899 = vld [vmem:[#allocation10 + $0xd4] sm:$0xf]
        %v3900 = vld [vmem:[#allocation10 + $0xd8] sm:$0xf]
        %v3901 = vld [vmem:[#allocation10 + $0xdc] sm:$0xf]
        %v3902 = vld [vmem:[#allocation10 + $0xe0] sm:$0xf]
        %v3903 = vld [vmem:[#allocation10 + $0xe4] sm:$0xf]
        %v3904 = vld [vmem:[#allocation10 + $0xe8] sm:$0xf]
        %v3905 = vld [vmem:[#allocation10 + $0xec] sm:$0xf]
        %v3906 = vld [vmem:[#allocation10 + $0xf0] sm:$0xf]
        %v3907 = vld [vmem:[#allocation10 + $0xf4] sm:$0xf]
        %v3908 = vld [vmem:[#allocation10 + $0xf8] sm:$0xf]
        %v3909 = vld [vmem:[#allocation10 + $0xfc] sm:$0xf]
        %v3910 = vld [vmem:[%s11] sm:$0x1]
        %v3912 = vlaneseq
        %v3913 = vshrl.u32 %v3912, 7
        %v3914 = vsub.s32 0, %v3913
        %v3915 = vrot.slane %v3910, %v3914
        %v3981 = vunpack.c.l.b16 %v3846
        %v3982 = vunpack.c.l.b16 %v3847
        %v3983 = vunpack.c.l.b16 %v3848
        %v3984 = vunpack.c.l.b16 %v3849
        %v3985 = vunpack.c.l.b16 %v3850
        %v3986 = vunpack.c.l.b16 %v3851
        %v3987 = vunpack.c.l.b16 %v3852
        %v3988 = vunpack.c.l.b16 %v3853
        %v3989 = vunpack.c.l.b16 %v3854
        %v3990 = vunpack.c.l.b16 %v3855
        %v3991 = vunpack.c.l.b16 %v3856
        %v3992 = vunpack.c.l.b16 %v3857
        %v3993 = vunpack.c.l.b16 %v3858
        %v3994 = vunpack.c.l.b16 %v3859
        %v3995 = vunpack.c.l.b16 %v3860
        %v3996 = vunpack.c.l.b16 %v3861
        %v3997 = vunpack.c.l.b16 %v3862
        %v3998 = vunpack.c.l.b16 %v3863
        %v3999 = vunpack.c.l.b16 %v3864
        %v4000 = vunpack.c.l.b16 %v3865
        %v4001 = vunpack.c.l.b16 %v3866
        %v4002 = vunpack.c.l.b16 %v3867
        %v4003 = vunpack.c.l.b16 %v3868
        %v4004 = vunpack.c.l.b16 %v3869
        %v4005 = vunpack.c.l.b16 %v3870
        %v4006 = vunpack.c.l.b16 %v3871
        %v4007 = vunpack.c.l.b16 %v3872
        %v4008 = vunpack.c.l.b16 %v3873
        %v4009 = vunpack.c.l.b16 %v3874
        %v4010 = vunpack.c.l.b16 %v3875
        %v4011 = vunpack.c.l.b16 %v3876
        %v4012 = vunpack.c.l.b16 %v3877
        %v4013 = vunpack.c.l.b16 %v3878
        %v4014 = vunpack.c.l.b16 %v3879
        %v4015 = vunpack.c.l.b16 %v3880
        %v4016 = vunpack.c.l.b16 %v3881
        %v4017 = vunpack.c.l.b16 %v3882
        %v4018 = vunpack.c.l.b16 %v3883
        %v4019 = vunpack.c.l.b16 %v3884
        %v4020 = vunpack.c.l.b16 %v3885
        %v4021 = vunpack.c.l.b16 %v3886
        %v4022 = vunpack.c.l.b16 %v3887
        %v4023 = vunpack.c.l.b16 %v3888
        %v4024 = vunpack.c.l.b16 %v3889
        %v4025 = vunpack.c.l.b16 %v3890
        %v4026 = vunpack.c.l.b16 %v3891
        %v4027 = vunpack.c.l.b16 %v3892
        %v4028 = vunpack.c.l.b16 %v3893
        %v4029 = vunpack.c.l.b16 %v3894
        %v4030 = vunpack.c.l.b16 %v3895
        %v4031 = vunpack.c.l.b16 %v3896
        %v4032 = vunpack.c.l.b16 %v3897
        %v4033 = vunpack.c.l.b16 %v3898
        %v4034 = vunpack.c.l.b16 %v3899
        %v4035 = vunpack.c.l.b16 %v3900
        %v4036 = vunpack.c.l.b16 %v3901
        %v4037 = vunpack.c.l.b16 %v3902
        %v4038 = vunpack.c.l.b16 %v3903
        %v4039 = vunpack.c.l.b16 %v3904
        %v4040 = vunpack.c.l.b16 %v3905
        %v4041 = vunpack.c.l.b16 %v3906
        %v4042 = vunpack.c.l.b16 %v3907
        %v4043 = vunpack.c.l.b16 %v3908
        %v4044 = vunpack.c.l.b16 %v3909
        %v4045 = vpack.c.b16 %v3982, %v3981
        %v4046 = vpack.c.b16 %v3984, %v3983
        %v4047 = vpack.c.b16 %v3986, %v3985
        %v4048 = vpack.c.b16 %v3988, %v3987
        %v4049 = vpack.c.b16 %v3990, %v3989
        %v4050 = vpack.c.b16 %v3992, %v3991
        %v4051 = vpack.c.b16 %v3994, %v3993
        %v4052 = vpack.c.b16 %v3996, %v3995
        %v4053 = vpack.c.b16 %v3998, %v3997
        %v4054 = vpack.c.b16 %v4000, %v3999
        %v4055 = vpack.c.b16 %v4002, %v4001
        %v4056 = vpack.c.b16 %v4004, %v4003
        %v4057 = vpack.c.b16 %v4006, %v4005
        %v4058 = vpack.c.b16 %v4008, %v4007
        %v4059 = vpack.c.b16 %v4010, %v4009
        %v4060 = vpack.c.b16 %v4012, %v4011
        %v4061 = vpack.c.b16 %v4014, %v4013
        %v4062 = vpack.c.b16 %v4016, %v4015
        %v4063 = vpack.c.b16 %v4018, %v4017
        %v4064 = vpack.c.b16 %v4020, %v4019
        %v4065 = vpack.c.b16 %v4022, %v4021
        %v4066 = vpack.c.b16 %v4024, %v4023
        %v4067 = vpack.c.b16 %v4026, %v4025
        %v4068 = vpack.c.b16 %v4028, %v4027
        %v4069 = vpack.c.b16 %v4030, %v4029
        %v4070 = vpack.c.b16 %v4032, %v4031
        %v4071 = vpack.c.b16 %v4034, %v4033
        %v4072 = vpack.c.b16 %v4036, %v4035
        %v4073 = vpack.c.b16 %v4038, %v4037
        %v4074 = vpack.c.b16 %v4040, %v4039
        %v4075 = vpack.c.b16 %v4042, %v4041
        %v4076 = vpack.c.b16 %v4044, %v4043
        %4109 = vmatprep.subr.bf16.mxu0 0
        %4110 = vmatpush1.bf16.msra.mxu0 %v4045
        %4111 = vmatprep.subr.bf16.mxu0 0
        %4112 = vmatpush1.bf16.msra.mxu0 %v4046
        %4113 = vmatprep.subr.bf16.mxu0 0
        %4114 = vmatpush1.bf16.msra.mxu0 %v4047
        %4115 = vmatprep.subr.bf16.mxu0 0
        %4116 = vmatpush1.bf16.msra.mxu0 %v4048
        %4117 = vmatprep.subr.bf16.mxu0 0
        %4118 = vmatpush1.bf16.msra.mxu0 %v4049
        %4119 = vmatprep.subr.bf16.mxu0 0
        %4120 = vmatpush1.bf16.msra.mxu0 %v4050
        %4121 = vmatprep.subr.bf16.mxu0 0
        %4122 = vmatpush1.bf16.msra.mxu0 %v4051
        %4123 = vmatprep.subr.bf16.mxu0 0
        %4124 = vmatpush1.bf16.msra.mxu0 %v4052
        %4125 = vmatprep.subr.bf16.mxu0 0
        %4126 = vmatpush1.bf16.msra.mxu0 %v4053
        %4127 = vmatprep.subr.bf16.mxu0 0
        %4128 = vmatpush1.bf16.msra.mxu0 %v4054
        %4129 = vmatprep.subr.bf16.mxu0 0
        %4130 = vmatpush1.bf16.msra.mxu0 %v4055
        %4131 = vmatprep.subr.bf16.mxu0 0
        %4132 = vmatpush1.bf16.msra.mxu0 %v4056
        %4133 = vmatprep.subr.bf16.mxu0 0
        %4134 = vmatpush1.bf16.msra.mxu0 %v4057
        %4135 = vmatprep.subr.bf16.mxu0 0
        %4136 = vmatpush1.bf16.msra.mxu0 %v4058
        %4137 = vmatprep.subr.bf16.mxu0 0
        %4138 = vmatpush1.bf16.msra.mxu0 %v4059
        %4139 = vmatprep.subr.bf16.mxu0 0
        %4140 = vmatpush1.bf16.msra.mxu0 %v4060
        %4141 = vmatprep.mubr.bf16.mxu0 %v3831
        %4142 = vmatmul.mubr.bf16.gmra.mrb[0].mxu0 %v3830
        %v4143 = vpop.f32.mrb[0].mxu0
        %v4144 = vadd.f32 %v3915, %v4143
        %v4145 = vpop.f32.mrb[0].mxu0
        %v4146 = vpop.f32.mrb[0].mxu0
        %v4147 = vadd.f32 %v3915, %v4146
        %v4148 = vpop.f32.mrb[0].mxu0
        %4149 = vmatprep.mubr.bf16.mxu0 %v3835
        %4150 = vmatmul.mubr.bf16.gmra.mrb[0].mxu0 %v3834
        %v4151 = vpop.f32.mrb[0].mxu0
        %v4152 = vadd.f32 %v3915, %v4151
        %v4153 = vpop.f32.mrb[0].mxu0
        %v4154 = vpop.f32.mrb[0].mxu0
        %v4155 = vadd.f32 %v3915, %v4154
        %v4156 = vpop.f32.mrb[0].mxu0
        %4157 = vmatprep.mubr.bf16.mxu0 %v3839
        %4158 = vmatmul.mubr.bf16.gmra.mrb[0].mxu0 %v3838
        %v4159 = vpop.f32.mrb[0].mxu0
        %v4160 = vadd.f32 %v3915, %v4159
        %v4161 = vpop.f32.mrb[0].mxu0
        %v4162 = vpop.f32.mrb[0].mxu0
        %v4163 = vadd.f32 %v3915, %v4162
        %v4164 = vpop.f32.mrb[0].mxu0
        %4165 = vmatprep.mubr.bf16.mxu0 %v3843
        %4166 = vmatmul.mubr.bf16.gmra.mrb[0].mxu0 %v3842
        %v4167 = vpop.f32.mrb[0].mxu0
        %v4168 = vadd.f32 %v3915, %v4167
        %v4169 = vpop.f32.mrb[0].mxu0
        %v4170 = vpop.f32.mrb[0].mxu0
        %v4171 = vadd.f32 %v3915, %v4170
        %v4172 = vpop.f32.mrb[0].mxu0
        %4173 = vdwg.mxu0
        %4174 = vmatprep.subr.bf16.mxu0 0
        %4175 = vmatpush1.bf16.msra.mxu0 %v4061
        %4176 = vmatprep.subr.bf16.mxu0 0
        %4177 = vmatpush1.bf16.msra.mxu0 %v4062
        %4178 = vmatprep.subr.bf16.mxu0 0
        %4179 = vmatpush1.bf16.msra.mxu0 %v4063
        %4180 = vmatprep.subr.bf16.mxu0 0
        %4181 = vmatpush1.bf16.msra.mxu0 %v4064
        %4182 = vmatprep.subr.bf16.mxu0 0
        %4183 = vmatpush1.bf16.msra.mxu0 %v4065
        %4184 = vmatprep.subr.bf16.mxu0 0
        %4185 = vmatpush1.bf16.msra.mxu0 %v4066
        %4186 = vmatprep.subr.bf16.mxu0 0
        %4187 = vmatpush1.bf16.msra.mxu0 %v4067
        %4188 = vmatprep.subr.bf16.mxu0 0
        %4189 = vmatpush1.bf16.msra.mxu0 %v4068
        %4190 = vmatprep.subr.bf16.mxu0 0
        %4191 = vmatpush1.bf16.msra.mxu0 %v4069
        %4192 = vmatprep.subr.bf16.mxu0 0
        %4193 = vmatpush1.bf16.msra.mxu0 %v4070
        %4194 = vmatprep.subr.bf16.mxu0 0
        %4195 = vmatpush1.bf16.msra.mxu0 %v4071
        %4196 = vmatprep.subr.bf16.mxu0 0
        %4197 = vmatpush1.bf16.msra.mxu0 %v4072
        %4198 = vmatprep.subr.bf16.mxu0 0
        %4199 = vmatpush1.bf16.msra.mxu0 %v4073
        %4200 = vmatprep.subr.bf16.mxu0 0
        %4201 = vmatpush1.bf16.msra.mxu0 %v4074
        %4202 = vmatprep.subr.bf16.mxu0 0
        %4203 = vmatpush1.bf16.msra.mxu0 %v4075
        %4204 = vmatprep.subr.bf16.mxu0 0
        %4205 = vmatpush1.bf16.msra.mxu0 %v4076
        %4206 = vmatprep.mubr.bf16.mxu0 %v3833
        %4207 = vmatmul.mubr.bf16.gmra.mrb[0].mxu0 %v3832
        %v4208 = vpop.f32.mrb[0].mxu0
        %v4209 = vadd.f32 %v4144, %v4208
        %v4210 = vpop.f32.mrb[0].mxu0
        %v4211 = vpop.f32.mrb[0].mxu0
        %v4212 = vadd.f32 %v4147, %v4211
        %v4213 = vpop.f32.mrb[0].mxu0
        %4214 = vmatprep.mubr.bf16.mxu0 %v3837
        %4215 = vmatmul.mubr.bf16.gmra.mrb[0].mxu0 %v3836
        %v4216 = vpop.f32.mrb[0].mxu0
        %v4217 = vadd.f32 %v4152, %v4216
        %v4218 = vpop.f32.mrb[0].mxu0
        %v4219 = vpop.f32.mrb[0].mxu0
        %v4220 = vadd.f32 %v4155, %v4219
        %v4221 = vpop.f32.mrb[0].mxu0
        %4222 = vmatprep.mubr.bf16.mxu0 %v3841
        %4223 = vmatmul.mubr.bf16.gmra.mrb[0].mxu0 %v3840
        %v4224 = vpop.f32.mrb[0].mxu0
        %v4225 = vadd.f32 %v4160, %v4224
        %v4226 = vpop.f32.mrb[0].mxu0
        %v4227 = vpop.f32.mrb[0].mxu0
        %v4228 = vadd.f32 %v4163, %v4227
        %v4229 = vpop.f32.mrb[0].mxu0
        %4230 = vmatprep.mubr.bf16.mxu0 %v3845
        %4231 = vmatmul.mubr.bf16.gmra.mrb[0].mxu0 %v3844
        %v4232 = vpop.f32.mrb[0].mxu0
        %v4233 = vadd.f32 %v4168, %v4232
        %v4234 = vpop.f32.mrb[0].mxu0
        %v4235 = vpop.f32.mrb[0].mxu0
        %v4236 = vadd.f32 %v4171, %v4235
        %v4237 = vpop.f32.mrb[0].mxu0
        %4238 = vdwg.mxu0
        %v4239 = vadd.f32 %v3308, %v4209
        %v4240 = vadd.f32 %v3309, %v4212
        %v4241 = vadd.f32 %v3310, %v4217
        %v4242 = vadd.f32 %v3311, %v4220
        %v4243 = vadd.f32 %v3312, %v4225
        %v4244 = vadd.f32 %v3313, %v4228
        %v4245 = vadd.f32 %v3314, %v4233
        %v4246 = vadd.f32 %v3315, %v4236
        %4247 = vst [vmem:[%s490] sm:$0xff] %v4239
        %4248 = vst [vmem:[%s490 + $0x8] sm:$0xff] %v4240
        %4249 = vst [vmem:[%s490 + $0x10] sm:$0xff] %v4241
        %4250 = vst [vmem:[%s490 + $0x18] sm:$0xff] %v4242
        %4251 = vst [vmem:[%s490 + $0x20] sm:$0xff] %v4243
        %4252 = vst [vmem:[%s490 + $0x28] sm:$0xff] %v4244
        %4253 = vst [vmem:[%s490 + $0x30] sm:$0xff] %v4245
        %4254 = vst [vmem:[%s490 + $0x38] sm:$0xff] %v4246
        %s4255 = sand.u32 %s296, 1
        %s4256 = scalar_lea.sflag [#allocation4], %s4255
        %s4257 = sand.u32 %s296, 1
        %s4258 = smul.addr %s4257, 64
        %s4259 = scalar_lea.vmem [#allocation11], %s4258
        // Predicated region
        $region89: #{tpu_custom_call.1} parent=67 // pred_check
          %p4260 = pneg %p306
        $region90: #{tpu_custom_call.1} parent=67 // pred_check_branch
          %4262 = sbr.rel (%p4260) target = $region92
        $region91: #{tpu_custom_call.1} parent=67 // pred_region
          %s4263 = smul.u32 4, %s31
          %s4265 = ssub.s32 1024, 1024
          %4266 = vsyncadd %s4256, %s4265
          %s4267 = smul.addr %s4263, 2
          %s4268 = smul.addr %s4267, 128
          %s4269 = scalar_lea.hbm %s12, %s4268
          %s4270 = sshll.u32 %s4259, 4
          %s4271 = int_to_ptr.vmem [resolvable:$true] %s4270
          %4276 = dma.vmem_to_hbm [thread:$0]  %s4271, 1024, %s4269, %s4256, 128, 128, 8
        $region92: #{tpu_custom_call.1} parent=67 // pred_fallthru
          _
      $region68: #{tpu_custom_call.1} parent=5 // pred_fallthru
        _
      %p4277 = scmp.le.s32.totalorder 2, %s26
      // Predicated region
      $region93: #{tpu_custom_call.1} parent=5 // pred_check
        %p4278 = pneg %p4277
      $region94: #{tpu_custom_call.1} parent=5 // pred_check_branch
        %4280 = sbr.rel (%p4278) target = $region96
      $region95: #{tpu_custom_call.1} parent=5 // pred_region
        %s4281 = ssub.s32 %s26, 2
        // Predicated region
        $region97: #{tpu_custom_call.1} parent=95 // pred_check
          %p4282 = pneg %p312
        $region98: #{tpu_custom_call.1} parent=95 // pred_check_branch
          %4284 = sbr.rel (%p4282) target = $region100
        $region99: #{tpu_custom_call.1} parent=95 // pred_region
          %s4285 = sand.u32 %s297, 1
          %s4286 = scalar_lea.sflag [#allocation4], %s4285
          %s4287 = sand.u32 %s297, 1
          %s4288 = smul.addr %s4287, 64
          %s4289 = scalar_lea.vmem [#allocation11], %s4288
          %4290 = dma.done %s4286, 1024
        $region100: #{tpu_custom_call.1} parent=95 // pred_fallthru
          _
      $region96: #{tpu_custom_call.1} parent=5 // pred_fallthru
        _
    $region6: #{tpu_custom_call.1} parent=1 // loop_footer
      %s30 = sadd.s32 1, %s26
    $region7: #{tpu_custom_call.1} parent=1 // loop_footer_branch
      %25 = sbr.rel target = $region3
    $region8: #{tpu_custom_call.1} parent=1 // loop_exit
      _
    %4291 = vsyncpa [#allocation3], 1
    %s4292 = scalar_lea.sflag [#allocation3], 1
    %4293 = vsyncpa %s4292, 1
    %4294 = vsyncpa [#allocation6], 1
    %4295 = vsyncpa [#allocation9], 1
    %4296 = vsyncpa [#allocation4], 1
    %s4297 = scalar_lea.sflag [#allocation4], 1
    %4298 = vsyncpa %s4297, 1

</llo_original>
